<compile_context>
chip_gen: v5e
topology: v5e:2x2
jax: 0.10.0
libtpu: 0.0.40
codegen_flags: <defaults>
</compile_context>

<pallas_src>
import jax
import jax.numpy as jnp
from jax.experimental import pallas as pl
from jax.experimental.pallas import tpu as pltpu

N_FEATURES = 100
H0, H1, H2 = 256, 512, 1024
N_OUT = 784

K_PAD = 128     # latent dim padded to a lane multiple (100 -> 128)
OUT_PAD = 896   # output dim padded to a lane multiple (784 -> 7*128)


def _round_up(x, m):
    return (x + m - 1) // m * m


def _pad2d(a, rows, cols):
    r, c = a.shape
    return jnp.pad(a, ((0, rows - r), (0, cols - c)))


def _lrelu_bf16(h):
    """LeakyReLU(0.2) in f32 (max-form), stored bf16 for the next MXU operand."""
    return jnp.maximum(h, 0.2 * h).astype(jnp.bfloat16)


def generator_kernel_overlap(x_ref,
                             w0_ref, b0_ref, b1_ref, b2_ref, b3_ref,
                             w1_hbm, w2_hbm, w3_hbm,
                             o_ref,
                             w1_buf, w2_buf, w3_buf, sem):
    """Single-grid-step fused MLP; W1/W2/W3 DMAs overlap earlier layers."""
    # Kick off the bulk weight fetches immediately; they complete while the
    # earlier (smaller) layers run on the MXU.
    w1_cp = pltpu.make_async_copy(w1_hbm, w1_buf, sem.at[0]); w1_cp.start()
    w2_cp = pltpu.make_async_copy(w2_hbm, w2_buf, sem.at[1]); w2_cp.start()
    w3_cp = pltpu.make_async_copy(w3_hbm, w3_buf, sem.at[2]); w3_cp.start()

    h = jnp.dot(x_ref[...], w0_ref[...],
                preferred_element_type=jnp.float32) + b0_ref[...]
    h = _lrelu_bf16(h)

    w1_cp.wait()
    h = jnp.dot(h, w1_buf[...], preferred_element_type=jnp.float32) + b1_ref[...]
    h = _lrelu_bf16(h)

    w2_cp.wait()
    h = jnp.dot(h, w2_buf[...], preferred_element_type=jnp.float32) + b2_ref[...]
    h = _lrelu_bf16(h)

    w3_cp.wait()
    h = jnp.dot(h, w3_buf[...], preferred_element_type=jnp.float32) + b3_ref[...]
    o_ref[...] = jnp.tanh(h).astype(o_ref.dtype)


def generator_kernel_tiled(x_ref,
                           w0_ref, b0_ref,
                           w1_ref, b1_ref,
                           w2_ref, b2_ref,
                           w3_ref, b3_ref,
                           o_ref):
    """Multi-tile fused MLP; weights auto-pipelined (constant block index)."""
    h = jnp.dot(x_ref[...], w0_ref[...],
                preferred_element_type=jnp.float32) + b0_ref[...]
    h = _lrelu_bf16(h)
    h = jnp.dot(h, w1_ref[...], preferred_element_type=jnp.float32) + b1_ref[...]
    h = _lrelu_bf16(h)
    h = jnp.dot(h, w2_ref[...], preferred_element_type=jnp.float32) + b2_ref[...]
    h = _lrelu_bf16(h)
    h = jnp.dot(h, w3_ref[...], preferred_element_type=jnp.float32) + b3_ref[...]
    o_ref[...] = jnp.tanh(h).astype(o_ref.dtype)


def generator_forward(x, params, *, block_batch=512):
    """x: [B, 100] float32. params: pre-transposed f32 weights/biases.

    Returns [B, 784] float32. Batch and lane dims are padded internally and
    sliced back, so any B >= 1 works.
    """
    B = x.shape[0]
    assert x.shape[1] == N_FEATURES

    # Batch tile: always a multiple of 16 (bf16 sublane packing).  No forced
    # tile split: for B <= block_batch the batch is one grid step (small-batch
    # regime is weight-DMA bound; splitting only duplicates the weight fetch).
    bm = _round_up(min(block_batch, B), 16)
    b_pad = _round_up(B, bm)
    grid_m = b_pad // bm

    # --- lane/batch padding + bf16 casts (wrapper-side plumbing) -------------
    xp = jnp.zeros((b_pad, K_PAD), jnp.bfloat16).at[:B, :N_FEATURES].set(
        x.astype(jnp.bfloat16))

    w0 = _pad2d(params["w0"], K_PAD, H0).astype(jnp.bfloat16)    # zero rows: no effect
    w1 = params["w1"].astype(jnp.bfloat16)
    w2 = params["w2"].astype(jnp.bfloat16)
    w3 = _pad2d(params["w3"], H2, OUT_PAD).astype(jnp.bfloat16)  # zero cols: sliced off
    b0, b1, b2 = params["b0"], params["b1"], params["b2"]
    b3 = _pad2d(params["b3"], 1, OUT_PAD)

    out_shape = jax.ShapeDtypeStruct((b_pad, OUT_PAD), jnp.float32)
    x_spec = pl.BlockSpec((bm, K_PAD), lambda i: (i, 0))
    o_spec = pl.BlockSpec((bm, OUT_PAD), lambda i: (i, 0))
    full = lambda a: pl.BlockSpec(a.shape, lambda i: (0, 0))
    any_spec = pl.BlockSpec(memory_space=pl.ANY)

    if grid_m == 1:
        # Single grid step: overlap the W1/W2/W3 HBM fetch with compute.
        out = pl.pallas_call(
            generator_kernel_overlap,
            out_shape=out_shape,
            grid_spec=pltpu.PrefetchScalarGridSpec(
                num_scalar_prefetch=0,
                grid=(1,),
                in_specs=[x_spec,
                          full(w0), full(b0), full(b1), full(b2), full(b3),
                          any_spec, any_spec, any_spec],
                out_specs=o_spec,
                scratch_shapes=[
                    pltpu.VMEM(w1.shape, jnp.bfloat16),
                    pltpu.VMEM(w2.shape, jnp.bfloat16),
                    pltpu.VMEM(w3.shape, jnp.bfloat16),
                    pltpu.SemaphoreType.DMA((3,)),
                ]),
            compiler_params=pltpu.CompilerParams(
                dimension_semantics=("arbitrary",)),
        )(xp, w0, b0, b1, b2, b3, w1, w2, w3)
    else:
        # Large batch (compute-bound): tile the batch; "parallel" lets v7x's
        # second TensorCore share the grid.  Constant-index weight blocks are
        # fetched once per core and reused across steps.
        out = pl.pallas_call(
            generator_kernel_tiled,
            out_shape=out_shape,
            grid_spec=pltpu.PrefetchScalarGridSpec(
                num_scalar_prefetch=0,
                grid=(grid_m,),
                in_specs=[x_spec,
                          full(w0), full(b0),
                          full(w1), full(b1),
                          full(w2), full(b2),
                          full(w3), full(b3)],
                out_specs=o_spec),
            compiler_params=pltpu.CompilerParams(
                dimension_semantics=("parallel",)),
        )(xp, w0, b0, w1, b1, w2, b2, w3, b3)

    return out[:B, :N_OUT]


def init_params(key):
    """Deterministic init mimicking torch.nn.Linear default U(-1/sqrt(in), 1/sqrt(in)).
    Weights are stored pre-transposed as [in, out]; biases as [1, out]; all f32."""
    dims = [(N_FEATURES, H0), (H0, H1), (H1, H2), (H2, N_OUT)]
    params = {}
    keys = jax.random.split(key, 2 * len(dims))
    for idx, (fan_in, fan_out) in enumerate(dims):
        bound = 1.0 / (fan_in ** 0.5)
        params[f"w{idx}"] = jax.random.uniform(keys[2 * idx], (fan_in, fan_out),
                                               jnp.float32, -bound, bound)
        params[f"b{idx}"] = jax.random.uniform(keys[2 * idx + 1], (1, fan_out),
                                               jnp.float32, -bound, bound)
    return params


def reference_forward(x, params):
    """Pure-JAX reference using the same bf16-operand / f32-accumulate math."""
    def dot_bf16(a, w):
        return jnp.dot(a.astype(jnp.bfloat16), w.astype(jnp.bfloat16),
                       preferred_element_type=jnp.float32)

    h = x
    for i in range(3):
        h = dot_bf16(h, params[f"w{i}"]) + params[f"b{i}"]
        h = jnp.where(h > 0, h, 0.2 * h)
    h = dot_bf16(h, params["w3"]) + params["b3"]
    return jnp.tanh(h)


if __name__ == "__main__":
    key = jax.random.PRNGKey(0)
    pkey, xkey = jax.random.split(key)
    params = init_params(pkey)

    # Small-batch path: single grid step, weight fetch overlapped with compute.
    x_small = jax.random.normal(xkey, (8, N_FEATURES), jnp.float32)
    out_small = jax.block_until_ready(generator_forward(x_small, params))
    ref_small = reference_forward(x_small, params)
    assert out_small.shape == (8, N_OUT)
    err_s = float(jnp.max(jnp.abs(out_small - ref_small)))
    assert jnp.allclose(out_small, ref_small, atol=1e-2, rtol=1e-2), \
        f"small-batch mismatch vs reference: {err_s}"

    # Multi-tile path: several "parallel" grid steps, exercised at a small size
    # by shrinking the batch tile.
    x_big = jax.random.normal(xkey, (40, N_FEATURES), jnp.float32)
    out_big = jax.block_until_ready(
        generator_forward(x_big, params, block_batch=16))
    ref_big = reference_forward(x_big, params)
    assert out_big.shape == (40, N_OUT)
    err_b = float(jnp.max(jnp.abs(out_big - ref_big)))
    assert jnp.allclose(out_big, ref_big, atol=1e-2, rtol=1e-2), \
        f"multi-tile mismatch vs reference: {err_b}"

    print("KERNEL_OK")
</pallas_src>

<mosaic_0001>
module attributes {stable_mosaic.version = 11 : i64} {
  func.func @generator_kernel_overlap(%arg0: i32, %arg1: memref<16x128xbf16, #tpu.memory_space<vmem>>, %arg2: memref<128x256xbf16, #tpu.memory_space<vmem>>, %arg3: memref<1x256xf32, #tpu.memory_space<vmem>>, %arg4: memref<1x512xf32, #tpu.memory_space<vmem>>, %arg5: memref<1x1024xf32, #tpu.memory_space<vmem>>, %arg6: memref<1x896xf32, #tpu.memory_space<vmem>>, %arg7: memref<256x512xbf16, #tpu.memory_space<any>>, %arg8: memref<512x1024xbf16, #tpu.memory_space<any>>, %arg9: memref<1024x896xbf16, #tpu.memory_space<any>>, %arg10: memref<16x896xf32, #tpu.memory_space<vmem>>, %arg11: memref<256x512xbf16, #tpu.memory_space<vmem>>, %arg12: memref<512x1024xbf16, #tpu.memory_space<vmem>>, %arg13: memref<1024x896xbf16, #tpu.memory_space<vmem>>, %arg14: memref<3x!tpu.dma_semaphore, #tpu.memory_space<semaphore_mem>>) attributes {dimension_semantics = [#tpu.dimension_semantics<arbitrary>], iteration_bounds = array<i64: 1>, scalar_prefetch = 0 : i64, scratch_operands = 4 : i64, tpu.core_type = #tpu.core_type<tc>, window_params = [{transform_indices = @transform_0, window_bounds = array<i64: 16, 128>}, {pipeline_mode = #tpu.pipeline_mode<synchronous>, transform_indices = @transform_1, window_bounds = array<i64: 128, 256>}, {pipeline_mode = #tpu.pipeline_mode<synchronous>, transform_indices = @transform_2, window_bounds = array<i64: 1, 256>}, {pipeline_mode = #tpu.pipeline_mode<synchronous>, transform_indices = @transform_3, window_bounds = array<i64: 1, 512>}, {pipeline_mode = #tpu.pipeline_mode<synchronous>, transform_indices = @transform_4, window_bounds = array<i64: 1, 1024>}, {pipeline_mode = #tpu.pipeline_mode<synchronous>, transform_indices = @transform_5, window_bounds = array<i64: 1, 896>}, {}, {}, {}, {transform_indices = @transform_9, window_bounds = array<i64: 16, 896>}]} {
    %c0_i32 = arith.constant 0 : i32
    %0 = tpu.memref_slice %arg14[%c0_i32] : memref<3x!tpu.dma_semaphore, #tpu.memory_space<semaphore_mem>> -> memref<1x!tpu.dma_semaphore, #tpu.memory_space<semaphore_mem>>
    %1 = tpu.memref_squeeze %0 : memref<1x!tpu.dma_semaphore, #tpu.memory_space<semaphore_mem>> -> memref<!tpu.dma_semaphore, #tpu.memory_space<semaphore_mem>>
    tpu.enqueue_dma source(%arg7 : memref<256x512xbf16, #tpu.memory_space<any>>) target(%arg11 : memref<256x512xbf16, #tpu.memory_space<vmem>>) target_semaphore(%1 : memref<!tpu.dma_semaphore, #tpu.memory_space<semaphore_mem>>)
    %c1_i32 = arith.constant 1 : i32
    %2 = tpu.memref_slice %arg14[%c1_i32] : memref<3x!tpu.dma_semaphore, #tpu.memory_space<semaphore_mem>> -> memref<1x!tpu.dma_semaphore, #tpu.memory_space<semaphore_mem>>
    %3 = tpu.memref_squeeze %2 : memref<1x!tpu.dma_semaphore, #tpu.memory_space<semaphore_mem>> -> memref<!tpu.dma_semaphore, #tpu.memory_space<semaphore_mem>>
    tpu.enqueue_dma source(%arg8 : memref<512x1024xbf16, #tpu.memory_space<any>>) target(%arg12 : memref<512x1024xbf16, #tpu.memory_space<vmem>>) target_semaphore(%3 : memref<!tpu.dma_semaphore, #tpu.memory_space<semaphore_mem>>)
    %c2_i32 = arith.constant 2 : i32
    %4 = tpu.memref_slice %arg14[%c2_i32] : memref<3x!tpu.dma_semaphore, #tpu.memory_space<semaphore_mem>> -> memref<1x!tpu.dma_semaphore, #tpu.memory_space<semaphore_mem>>
    %5 = tpu.memref_squeeze %4 : memref<1x!tpu.dma_semaphore, #tpu.memory_space<semaphore_mem>> -> memref<!tpu.dma_semaphore, #tpu.memory_space<semaphore_mem>>
    tpu.enqueue_dma source(%arg9 : memref<1024x896xbf16, #tpu.memory_space<any>>) target(%arg13 : memref<1024x896xbf16, #tpu.memory_space<vmem>>) target_semaphore(%5 : memref<!tpu.dma_semaphore, #tpu.memory_space<semaphore_mem>>)
    %c0 = arith.constant 0 : index
    %c0_0 = arith.constant 0 : index
    %6 = vector.load %arg1[%c0, %c0_0] : memref<16x128xbf16, #tpu.memory_space<vmem>>, vector<16x128xbf16>
    %c0_1 = arith.constant 0 : index
    %c0_2 = arith.constant 0 : index
    %7 = vector.load %arg2[%c0_1, %c0_2] : memref<128x256xbf16, #tpu.memory_space<vmem>>, vector<128x256xbf16>
    %cst = arith.constant dense<0.000000e+00> : vector<16x256xf32>
    %8 = tpu.matmul %6, %7, %cst {dimension_numbers = #tpu.dot_dimension_numbers<[1], [0], [0], [1], [0, 0, 1, 1], [], []>} : vector<16x128xbf16>, vector<128x256xbf16>, vector<16x256xf32> -> vector<16x256xf32>
    %c0_3 = arith.constant 0 : index
    %c0_4 = arith.constant 0 : index
    %9 = vector.load %arg3[%c0_3, %c0_4] : memref<1x256xf32, #tpu.memory_space<vmem>>, vector<1x256xf32>
    %10 = vector.broadcast %9 : vector<1x256xf32> to vector<16x256xf32>
    %11 = arith.addf %8, %10 : vector<16x256xf32>
    %cst_5 = arith.constant 2.000000e-01 : f32
    %12 = vector.broadcast %cst_5 : f32 to vector<16x256xf32>
    %13 = arith.mulf %12, %11 : vector<16x256xf32>
    %14 = arith.maximumf %11, %13 : vector<16x256xf32>
    %15 = arith.truncf %14 : vector<16x256xf32> to vector<16x256xbf16>
    %c0_i32_6 = arith.constant 0 : i32
    %16 = tpu.memref_slice %arg14[%c0_i32_6] : memref<3x!tpu.dma_semaphore, #tpu.memory_space<semaphore_mem>> -> memref<1x!tpu.dma_semaphore, #tpu.memory_space<semaphore_mem>>
    %17 = tpu.memref_squeeze %16 : memref<1x!tpu.dma_semaphore, #tpu.memory_space<semaphore_mem>> -> memref<!tpu.dma_semaphore, #tpu.memory_space<semaphore_mem>>
    tpu.wait_dma2 semaphore(%17 : memref<!tpu.dma_semaphore, #tpu.memory_space<semaphore_mem>>) src(%arg7 : memref<256x512xbf16, #tpu.memory_space<any>>) dst(%arg11 : memref<256x512xbf16, #tpu.memory_space<vmem>>)
    %c0_7 = arith.constant 0 : index
    %c0_8 = arith.constant 0 : index
    %18 = vector.load %arg11[%c0_7, %c0_8] : memref<256x512xbf16, #tpu.memory_space<vmem>>, vector<256x512xbf16>
    %cst_9 = arith.constant dense<0.000000e+00> : vector<16x512xf32>
    %19 = tpu.matmul %15, %18, %cst_9 {dimension_numbers = #tpu.dot_dimension_numbers<[1], [0], [0], [1], [0, 0, 1, 1], [], []>} : vector<16x256xbf16>, vector<256x512xbf16>, vector<16x512xf32> -> vector<16x512xf32>
    %c0_10 = arith.constant 0 : index
    %c0_11 = arith.constant 0 : index
    %20 = vector.load %arg4[%c0_10, %c0_11] : memref<1x512xf32, #tpu.memory_space<vmem>>, vector<1x512xf32>
    %21 = vector.broadcast %20 : vector<1x512xf32> to vector<16x512xf32>
    %22 = arith.addf %19, %21 : vector<16x512xf32>
    %cst_12 = arith.constant 2.000000e-01 : f32
    %23 = vector.broadcast %cst_12 : f32 to vector<16x512xf32>
    %24 = arith.mulf %23, %22 : vector<16x512xf32>
    %25 = arith.maximumf %22, %24 : vector<16x512xf32>
    %26 = arith.truncf %25 : vector<16x512xf32> to vector<16x512xbf16>
    %c1_i32_13 = arith.constant 1 : i32
    %27 = tpu.memref_slice %arg14[%c1_i32_13] : memref<3x!tpu.dma_semaphore, #tpu.memory_space<semaphore_mem>> -> memref<1x!tpu.dma_semaphore, #tpu.memory_space<semaphore_mem>>
    %28 = tpu.memref_squeeze %27 : memref<1x!tpu.dma_semaphore, #tpu.memory_space<semaphore_mem>> -> memref<!tpu.dma_semaphore, #tpu.memory_space<semaphore_mem>>
    tpu.wait_dma2 semaphore(%28 : memref<!tpu.dma_semaphore, #tpu.memory_space<semaphore_mem>>) src(%arg8 : memref<512x1024xbf16, #tpu.memory_space<any>>) dst(%arg12 : memref<512x1024xbf16, #tpu.memory_space<vmem>>)
    %c0_14 = arith.constant 0 : index
    %c0_15 = arith.constant 0 : index
    %29 = vector.load %arg12[%c0_14, %c0_15] : memref<512x1024xbf16, #tpu.memory_space<vmem>>, vector<512x1024xbf16>
    %cst_16 = arith.constant dense<0.000000e+00> : vector<16x1024xf32>
    %30 = tpu.matmul %26, %29, %cst_16 {dimension_numbers = #tpu.dot_dimension_numbers<[1], [0], [0], [1], [0, 0, 1, 1], [], []>} : vector<16x512xbf16>, vector<512x1024xbf16>, vector<16x1024xf32> -> vector<16x1024xf32>
    %c0_17 = arith.constant 0 : index
    %c0_18 = arith.constant 0 : index
    %31 = vector.load %arg5[%c0_17, %c0_18] : memref<1x1024xf32, #tpu.memory_space<vmem>>, vector<1x1024xf32>
    %32 = vector.broadcast %31 : vector<1x1024xf32> to vector<16x1024xf32>
    %33 = arith.addf %30, %32 : vector<16x1024xf32>
    %cst_19 = arith.constant 2.000000e-01 : f32
    %34 = vector.broadcast %cst_19 : f32 to vector<16x1024xf32>
    %35 = arith.mulf %34, %33 : vector<16x1024xf32>
    %36 = arith.maximumf %33, %35 : vector<16x1024xf32>
    %37 = arith.truncf %36 : vector<16x1024xf32> to vector<16x1024xbf16>
    %c2_i32_20 = arith.constant 2 : i32
    %38 = tpu.memref_slice %arg14[%c2_i32_20] : memref<3x!tpu.dma_semaphore, #tpu.memory_space<semaphore_mem>> -> memref<1x!tpu.dma_semaphore, #tpu.memory_space<semaphore_mem>>
    %39 = tpu.memref_squeeze %38 : memref<1x!tpu.dma_semaphore, #tpu.memory_space<semaphore_mem>> -> memref<!tpu.dma_semaphore, #tpu.memory_space<semaphore_mem>>
    tpu.wait_dma2 semaphore(%39 : memref<!tpu.dma_semaphore, #tpu.memory_space<semaphore_mem>>) src(%arg9 : memref<1024x896xbf16, #tpu.memory_space<any>>) dst(%arg13 : memref<1024x896xbf16, #tpu.memory_space<vmem>>)
    %c0_21 = arith.constant 0 : index
    %c0_22 = arith.constant 0 : index
    %40 = vector.load %arg13[%c0_21, %c0_22] : memref<1024x896xbf16, #tpu.memory_space<vmem>>, vector<1024x896xbf16>
    %cst_23 = arith.constant dense<0.000000e+00> : vector<16x896xf32>
    %41 = tpu.matmul %37, %40, %cst_23 {dimension_numbers = #tpu.dot_dimension_numbers<[1], [0], [0], [1], [0, 0, 1, 1], [], []>} : vector<16x1024xbf16>, vector<1024x896xbf16>, vector<16x896xf32> -> vector<16x896xf32>
    %c0_24 = arith.constant 0 : index
    %c0_25 = arith.constant 0 : index
    %42 = vector.load %arg6[%c0_24, %c0_25] : memref<1x896xf32, #tpu.memory_space<vmem>>, vector<1x896xf32>
    %43 = vector.broadcast %42 : vector<1x896xf32> to vector<16x896xf32>
    %44 = arith.addf %41, %43 : vector<16x896xf32>
    %45 = math.tanh %44 : vector<16x896xf32>
    %c0_26 = arith.constant 0 : index
    %c0_27 = arith.constant 0 : index
    %46 = vector.load %arg10[%c0_26, %c0_27] : memref<16x896xf32, #tpu.memory_space<vmem>>, vector<16x896xf32>
    tpu.vector_store %arg10[%c0_26, %c0_27], %45 {strides = array<i32>} : memref<16x896xf32, #tpu.memory_space<vmem>>, vector<16x896xf32>,
    return
  }
  func.func @transform_0(%arg0: i32) -> (i32, i32) {
    %c0_i32 = arith.constant 0 : i32
    %c0_i32_0 = arith.constant 0 : i32
    return %arg0, %c0_i32 : i32, i32
  }
  func.func @transform_1(%arg0: i32) -> (i32, i32) {
    %c0_i32 = arith.constant 0 : i32
    %c0_i32_0 = arith.constant 0 : i32
    %c0_i32_1 = arith.constant 0 : i32
    return %c0_i32, %c0_i32_0 : i32, i32
  }
  func.func @transform_2(%arg0: i32) -> (i32, i32) {
    %c0_i32 = arith.constant 0 : i32
    %c0_i32_0 = arith.constant 0 : i32
    %c0_i32_1 = arith.constant 0 : i32
    return %c0_i32, %c0_i32_0 : i32, i32
  }
  func.func @transform_3(%arg0: i32) -> (i32, i32) {
    %c0_i32 = arith.constant 0 : i32
    %c0_i32_0 = arith.constant 0 : i32
    %c0_i32_1 = arith.constant 0 : i32
    return %c0_i32, %c0_i32_0 : i32, i32
  }
  func.func @transform_4(%arg0: i32) -> (i32, i32) {
    %c0_i32 = arith.constant 0 : i32
    %c0_i32_0 = arith.constant 0 : i32
    %c0_i32_1 = arith.constant 0 : i32
    return %c0_i32, %c0_i32_0 : i32, i32
  }
  func.func @transform_5(%arg0: i32) -> (i32, i32) {
    %c0_i32 = arith.constant 0 : i32
    %c0_i32_0 = arith.constant 0 : i32
    %c0_i32_1 = arith.constant 0 : i32
    return %c0_i32, %c0_i32_0 : i32, i32
  }
  func.func @transform_9(%arg0: i32) -> (i32, i32) {
    %c0_i32 = arith.constant 0 : i32
    %c0_i32_0 = arith.constant 0 : i32
    return %arg0, %c0_i32 : i32, i32
  }
}

</mosaic_0001>

<llo_original>
// kernel: tpu_custom_call.1
$region0: #{tpu_custom_call.1}
  #allocation0 [shape = 'u32[]', space=smem, size = 0x4, offset = 0x4, fixed_abs, tag = 'smem constant byte address 0x4 - core index']
  #allocation1 [shape = 'u32[72,128]{1,0:T(1,128)}', space=vmem, size = 0x9000, scoped, tag = 'internal scratch']
  #allocation2 [shape = 'bf16[256,512]{1,0:T(8,128)(2,1)}', space=vmem, size = 0x40000, scoped, tag = 'scratch operand']
  #allocation3 [shape = 'bf16[512,1024]{1,0:T(8,128)(2,1)}', space=vmem, size = 0x100000, scoped, tag = 'scratch operand']
  #allocation4 [shape = 'bf16[1024,896]{1,0:T(8,128)(2,1)}', space=vmem, size = 0x1c0000, scoped, tag = 'scratch operand']
  #allocation5 [shape = 's32[3]{0}', space=sflag, size = 0xc, scoped, tag = 'scratch operand']
  #allocation18 [shape = 's32[]', space=sflag, size = 0x4, offset = 0, fixed_abs, tag = 'sflag constant byte address 0x0 - dummy sync flag']
  #allocation19 [shape = 's32[]', space=sflag, size = 0x4, offset = 0, fixed_abs, tag = 'sflag constant byte address 0x0 - dummy sync flag']
  #allocation20 [shape = 'u32[]', space=smem, size = 0x4, offset = 0x44, fixed_abs, tag = 'smem constant byte address 0x44 - assertion arg 0']
  #allocation21 [shape = 'u32[]', space=smem, size = 0x4, offset = 0x48, fixed_abs, tag = 'smem constant byte address 0x48 - assertion arg 1']
  #allocation22 [shape = 's32[]', space=sflag, size = 0x4, offset = 0, fixed_abs, tag = 'sflag constant byte address 0x0 - dummy sync flag']
  #allocation23 [shape = 's32[]', space=sflag, size = 0x4, offset = 0, fixed_abs, tag = 'sflag constant byte address 0x0 - dummy sync flag']
  #allocation24 [shape = 's32[]', space=sflag, size = 0x4, offset = 0, fixed_abs, tag = 'sflag constant byte address 0x0 - dummy sync flag']
  #allocation25 [shape = 's32[]', space=sflag, size = 0x4, offset = 0, fixed_abs, tag = 'sflag constant byte address 0x0 - dummy sync flag']
  %s0 = inlined_call_operand.hbm [shape: bf16[16,128], index: 0, kind: input, shape index: {}]
  %s1 = inlined_call_operand.hbm [shape: bf16[128,256], index: 1, kind: input, shape index: {}]
  %s2 = inlined_call_operand.hbm [shape: f32[1,256], index: 2, kind: input, shape index: {}]
  %s3 = inlined_call_operand.hbm [shape: f32[1,512], index: 3, kind: input, shape index: {}]
  %s4 = inlined_call_operand.hbm [shape: f32[1,1024], index: 4, kind: input, shape index: {}]
  %s5 = inlined_call_operand.hbm [shape: f32[1,896], index: 5, kind: input, shape index: {}]
  %s6 = inlined_call_operand.hbm [shape: bf16[256,512], index: 6, kind: input, shape index: {}]
  %s7 = inlined_call_operand.hbm [shape: bf16[512,1024], index: 7, kind: input, shape index: {}]
  %s8 = inlined_call_operand.hbm [shape: bf16[1024,896], index: 8, kind: input, shape index: {}]
  %s9 = inlined_call_operand.hbm [shape: f32[16,896], index: 9, kind: output, shape index: {}]
  %s10 = sld [smem:[#allocation0]]
  $region70: #{tpu_custom_call.1} parent=0
    _
  %s12 = ssub.s32 1, %s10
  %s13 = scalar_select 0, %s12, %s10
  $region1: #{tpu_custom_call.1} parent=0
    #allocation6 [shape = 'u8[4096]{0}', space=vmem, size = 0x1000, scoped, tag = 'input window, operand 0, single buffered']
    #allocation7 [shape = 's32[1]{0}', space=sflag, size = 0x4, scoped, tag = 'scoped memory for tpu_custom_call.1']
    #allocation8 [shape = 's32[1]{0}', space=sflag, size = 0x4, scoped, tag = 'scoped memory for tpu_custom_call.1']
    #allocation9 [shape = 'u8[65536]{0}', space=vmem, size = 0x10000, scoped, tag = 'input window, operand 1, single buffered']
    #allocation10 [shape = 's32[1]{0}', space=sflag, size = 0x4, scoped, tag = 'scoped memory for tpu_custom_call.1']
    #allocation11 [shape = 'u8[1024]{0}', space=vmem, size = 0x400, scoped, tag = 'input window, operand 2, single buffered']
    #allocation12 [shape = 'u8[2048]{0}', space=vmem, size = 0x800, scoped, tag = 'input window, operand 3, single buffered']
    #allocation13 [shape = 's32[1]{0}', space=sflag, size = 0x4, scoped, tag = 'scoped memory for tpu_custom_call.1']
    #allocation14 [shape = 'u8[4096]{0}', space=vmem, size = 0x1000, scoped, tag = 'input window, operand 4, single buffered']
    #allocation15 [shape = 'u8[3584]{0}', space=vmem, size = 0x1000, scoped, tag = 'input window, operand 5, single buffered']
    #allocation16 [shape = 's32[1]{0}', space=sflag, size = 0x4, scoped, tag = 'scoped memory for tpu_custom_call.1']
    #allocation17 [shape = 'u8[57344]{0}', space=vmem, size = 0xe000, scoped, tag = 'output window, operand 0, single buffered']
    %14 = vsyncpa [#allocation7], 0
    %15 = vsyncpa [#allocation10], 0
    %16 = vsyncpa [#allocation13], 0
    %17 = vsyncpa [#allocation16], 0
    %18 = vsyncpa [#allocation8], 0
    // Predicated region
    $region2: #{tpu_custom_call.1} parent=1 // pred_check
      _
    $region3: #{tpu_custom_call.1} parent=1 // pred_check_branch
      %20 = sbr.rel (0) target = $region5
    $region4: #{tpu_custom_call.1} parent=1 // pred_region
      %22 = vsyncadd [#allocation7], 0
      %s23 = sshll.u32 %s0, 4
      %s24 = int_to_ptr.hbm [resolvable:$true] %s23
      %s25 = sshll.u32 [#allocation6], 4
      %s26 = int_to_ptr.vmem [resolvable:$true] %s25
      %31 = dma.hbm_to_vmem [thread:$0]  %s24, 128, %s26, [#allocation7], 64, 64, 4
    $region5: #{tpu_custom_call.1} parent=1 // pred_fallthru
      _
    // Predicated region
    $region6: #{tpu_custom_call.1} parent=1 // pred_check
      _
    $region7: #{tpu_custom_call.1} parent=1 // pred_check_branch
      %33 = sbr.rel (0) target = $region9
    $region8: #{tpu_custom_call.1} parent=1 // pred_region
      %35 = vsyncadd [#allocation10], 0
      %s36 = sshll.u32 %s1, 4
      %s37 = int_to_ptr.hbm [resolvable:$true] %s36
      %s38 = sshll.u32 [#allocation9], 4
      %s39 = int_to_ptr.vmem [resolvable:$true] %s38
      %44 = dma.hbm_to_vmem [thread:$0]  %s37, 2048, %s39, [#allocation10], 128, 128, 8
    $region9: #{tpu_custom_call.1} parent=1 // pred_fallthru
      _
    // Predicated region
    $region10: #{tpu_custom_call.1} parent=1 // pred_check
      _
    $region11: #{tpu_custom_call.1} parent=1 // pred_check_branch
      %46 = sbr.rel (0) target = $region13
    $region12: #{tpu_custom_call.1} parent=1 // pred_region
      %48 = vsyncadd [#allocation10], 0
      %s50 = sshll.u32 %s2, 4
      %s51 = int_to_ptr.hbm [resolvable:$true] %s50
      %s52 = sshll.u32 [#allocation11], 4
      %s53 = int_to_ptr.vmem [resolvable:$true] %s52
      %55 = dma.hbm_to_vmem [thread:$0]  %s51, 32, %s53, [#allocation10]
    $region13: #{tpu_custom_call.1} parent=1 // pred_fallthru
      _
    // Predicated region
    $region14: #{tpu_custom_call.1} parent=1 // pred_check
      _
    $region15: #{tpu_custom_call.1} parent=1 // pred_check_branch
      %57 = sbr.rel (0) target = $region17
    $region16: #{tpu_custom_call.1} parent=1 // pred_region
      %59 = vsyncadd [#allocation13], 0
      %s61 = sshll.u32 %s3, 4
      %s62 = int_to_ptr.hbm [resolvable:$true] %s61
      %s63 = sshll.u32 [#allocation12], 4
      %s64 = int_to_ptr.vmem [resolvable:$true] %s63
      %66 = dma.hbm_to_vmem [thread:$0]  %s62, 64, %s64, [#allocation13]
    $region17: #{tpu_custom_call.1} parent=1 // pred_fallthru
      _
    // Predicated region
    $region18: #{tpu_custom_call.1} parent=1 // pred_check
      _
    $region19: #{tpu_custom_call.1} parent=1 // pred_check_branch
      %68 = sbr.rel (0) target = $region21
    $region20: #{tpu_custom_call.1} parent=1 // pred_region
      %70 = vsyncadd [#allocation13], 0
      %s72 = sshll.u32 %s4, 4
      %s73 = int_to_ptr.hbm [resolvable:$true] %s72
      %s74 = sshll.u32 [#allocation14], 4
      %s75 = int_to_ptr.vmem [resolvable:$true] %s74
      %77 = dma.hbm_to_vmem [thread:$0]  %s73, 128, %s75, [#allocation13]
    $region21: #{tpu_custom_call.1} parent=1 // pred_fallthru
      _
    // Predicated region
    $region22: #{tpu_custom_call.1} parent=1 // pred_check
      _
    $region23: #{tpu_custom_call.1} parent=1 // pred_check_branch
      %79 = sbr.rel (0) target = $region25
    $region24: #{tpu_custom_call.1} parent=1 // pred_region
      %81 = vsyncadd [#allocation16], 0
      %s83 = sshll.u32 %s5, 4
      %s84 = int_to_ptr.hbm [resolvable:$true] %s83
      %s85 = sshll.u32 [#allocation15], 4
      %s86 = int_to_ptr.vmem [resolvable:$true] %s85
      %88 = dma.hbm_to_vmem [thread:$0]  %s84, 112, %s86, [#allocation16]
    $region25: #{tpu_custom_call.1} parent=1 // pred_fallthru
      _
    // Predicated region
    $region26: #{tpu_custom_call.1} parent=1 // pred_check
      _
    $region27: #{tpu_custom_call.1} parent=1 // pred_check_branch
      %90 = sbr.rel (0) target = $region29
    $region28: #{tpu_custom_call.1} parent=1 // pred_region
      %92 = dma.done [#allocation7], 128
    $region29: #{tpu_custom_call.1} parent=1 // pred_fallthru
      _
    // Predicated region
    $region30: #{tpu_custom_call.1} parent=1 // pred_check
      _
    $region31: #{tpu_custom_call.1} parent=1 // pred_check_branch
      %94 = sbr.rel (0) target = $region33
    $region32: #{tpu_custom_call.1} parent=1 // pred_region
      %96 = dma.done [#allocation10], 2048
    $region33: #{tpu_custom_call.1} parent=1 // pred_fallthru
      _
    // Predicated region
    $region34: #{tpu_custom_call.1} parent=1 // pred_check
      _
    $region35: #{tpu_custom_call.1} parent=1 // pred_check_branch
      %98 = sbr.rel (0) target = $region37
    $region36: #{tpu_custom_call.1} parent=1 // pred_region
      %100 = dma.done [#allocation10], 32
    $region37: #{tpu_custom_call.1} parent=1 // pred_fallthru
      _
    // Predicated region
    $region38: #{tpu_custom_call.1} parent=1 // pred_check
      _
    $region39: #{tpu_custom_call.1} parent=1 // pred_check_branch
      %102 = sbr.rel (0) target = $region41
    $region40: #{tpu_custom_call.1} parent=1 // pred_region
      %104 = dma.done [#allocation13], 64
    $region41: #{tpu_custom_call.1} parent=1 // pred_fallthru
      _
    // Predicated region
    $region42: #{tpu_custom_call.1} parent=1 // pred_check
      _
    $region43: #{tpu_custom_call.1} parent=1 // pred_check_branch
      %106 = sbr.rel (0) target = $region45
    $region44: #{tpu_custom_call.1} parent=1 // pred_region
      %108 = dma.done [#allocation13], 128
    $region45: #{tpu_custom_call.1} parent=1 // pred_fallthru
      _
    // Predicated region
    $region46: #{tpu_custom_call.1} parent=1 // pred_check
      _
    $region47: #{tpu_custom_call.1} parent=1 // pred_check_branch
      %110 = sbr.rel (0) target = $region49
    $region48: #{tpu_custom_call.1} parent=1 // pred_region
      %112 = dma.done [#allocation16], 112
    $region49: #{tpu_custom_call.1} parent=1 // pred_fallthru
      _
    // Predicated region
    $region50: #{tpu_custom_call.1} parent=1 // pred_check
      _
    $region51: #{tpu_custom_call.1} parent=1 // pred_check_branch
      %114 = sbr.rel target = $region53
    $region52: #{tpu_custom_call.1} parent=1 // pred_region
      %115 = sst [smem:[#allocation20]] [#allocation19]
      %116 = sst [smem:[#allocation21]] [#allocation18]
    $region53: #{tpu_custom_call.1} parent=1 // pred_fallthru
      _
    %118 = shalt.err (0)
    %s120 = sshll.u32 %s6, 4
    %s121 = int_to_ptr.hbm [resolvable:$true] %s120
    %s122 = sshll.u32 [#allocation2], 4
    %s123 = int_to_ptr.vmem [resolvable:$true] %s122
    %125 = dma.hbm_to_vmem [thread:$0]  %s121, 8192, %s123, [#allocation5]
    %s126 = scalar_lea.sflag [#allocation5], 1
    // Predicated region
    $region54: #{tpu_custom_call.1} parent=1 // pred_check
      _
    $region55: #{tpu_custom_call.1} parent=1 // pred_check_branch
      %128 = sbr.rel target = $region57
    $region56: #{tpu_custom_call.1} parent=1 // pred_region
      %129 = sst [smem:[#allocation20]] [#allocation23]
      %130 = sst [smem:[#allocation21]] [#allocation22]
    $region57: #{tpu_custom_call.1} parent=1 // pred_fallthru
      _
    %132 = shalt.err (0)
    %s134 = sshll.u32 %s7, 4
    %s135 = int_to_ptr.hbm [resolvable:$true] %s134
    %s136 = sshll.u32 [#allocation3], 4
    %s137 = int_to_ptr.vmem [resolvable:$true] %s136
    %139 = dma.hbm_to_vmem [thread:$0]  %s135, 32768, %s137, %s126
    %s140 = scalar_lea.sflag [#allocation5], 2
    // Predicated region
    $region58: #{tpu_custom_call.1} parent=1 // pred_check
      _
    $region59: #{tpu_custom_call.1} parent=1 // pred_check_branch
      %142 = sbr.rel target = $region61
    $region60: #{tpu_custom_call.1} parent=1 // pred_region
      %143 = sst [smem:[#allocation20]] [#allocation25]
      %144 = sst [smem:[#allocation21]] [#allocation24]
    $region61: #{tpu_custom_call.1} parent=1 // pred_fallthru
      _
    %146 = shalt.err (0)
    %s148 = sshll.u32 %s8, 4
    %s149 = int_to_ptr.hbm [resolvable:$true] %s148
    %s150 = sshll.u32 [#allocation4], 4
    %s151 = int_to_ptr.vmem [resolvable:$true] %s150
    %153 = dma.hbm_to_vmem [thread:$0]  %s149, 57344, %s151, %s140
    %v154 = vld [vmem:[#allocation6] sm:$0xf]
    %v155 = vld [vmem:[#allocation6 + $0x4] sm:$0xf]
    %v156 = vld [vmem:[#allocation9] sm:$0xff]
    %v157 = vld [vmem:[#allocation9 + $0x8] sm:$0xff]
    %v158 = vld [vmem:[#allocation9 + $0x10] sm:$0xff]
    %v159 = vld [vmem:[#allocation9 + $0x18] sm:$0xff]
    %v160 = vld [vmem:[#allocation9 + $0x20] sm:$0xff]
    %v161 = vld [vmem:[#allocation9 + $0x28] sm:$0xff]
    %v162 = vld [vmem:[#allocation9 + $0x30] sm:$0xff]
    %v163 = vld [vmem:[#allocation9 + $0x38] sm:$0xff]
    %v164 = vld [vmem:[#allocation9 + $0x40] sm:$0xff]
    %v165 = vld [vmem:[#allocation9 + $0x48] sm:$0xff]
    %v166 = vld [vmem:[#allocation9 + $0x50] sm:$0xff]
    %v167 = vld [vmem:[#allocation9 + $0x58] sm:$0xff]
    %v168 = vld [vmem:[#allocation9 + $0x60] sm:$0xff]
    %v169 = vld [vmem:[#allocation9 + $0x68] sm:$0xff]
    %v170 = vld [vmem:[#allocation9 + $0x70] sm:$0xff]
    %v171 = vld [vmem:[#allocation9 + $0x78] sm:$0xff]
    %v172 = vld [vmem:[#allocation11] sm:$0x3]
    %v174 = vperm.slane %v172, 0
    %v175 = vperm.slane %v172, 1
    %v180 = vunpack.c.l.b16 %v154
    %v181 = vunpack.c.l.b16 %v155
    %v182 = vpack.c.b16 %v181, %v180
    %v200 = vunpack.c.l.b16 %v156
    %v201 = vunpack.c.h.b16 %v156
    %v202 = vunpack.c.l.b16 %v157
    %v203 = vunpack.c.h.b16 %v157
    %v204 = vunpack.c.l.b16 %v158
    %v205 = vunpack.c.h.b16 %v158
    %v206 = vunpack.c.l.b16 %v159
    %v207 = vunpack.c.h.b16 %v159
    %v208 = vunpack.c.l.b16 %v160
    %v209 = vunpack.c.h.b16 %v160
    %v210 = vunpack.c.l.b16 %v161
    %v211 = vunpack.c.h.b16 %v161
    %v212 = vunpack.c.l.b16 %v162
    %v213 = vunpack.c.h.b16 %v162
    %v214 = vunpack.c.l.b16 %v163
    %v215 = vunpack.c.h.b16 %v163
    %v216 = vunpack.c.l.b16 %v164
    %v217 = vunpack.c.h.b16 %v164
    %v218 = vunpack.c.l.b16 %v165
    %v219 = vunpack.c.h.b16 %v165
    %v220 = vunpack.c.l.b16 %v166
    %v221 = vunpack.c.h.b16 %v166
    %v222 = vunpack.c.l.b16 %v167
    %v223 = vunpack.c.h.b16 %v167
    %v224 = vunpack.c.l.b16 %v168
    %v225 = vunpack.c.h.b16 %v168
    %v226 = vunpack.c.l.b16 %v169
    %v227 = vunpack.c.h.b16 %v169
    %v228 = vunpack.c.l.b16 %v170
    %v229 = vunpack.c.h.b16 %v170
    %v230 = vunpack.c.l.b16 %v171
    %v231 = vunpack.c.h.b16 %v171
    %v232 = vpack.c.b16 %v202, %v200
    %v233 = vpack.c.b16 %v203, %v201
    %v234 = vpack.c.b16 %v206, %v204
    %v235 = vpack.c.b16 %v207, %v205
    %v236 = vpack.c.b16 %v210, %v208
    %v237 = vpack.c.b16 %v211, %v209
    %v238 = vpack.c.b16 %v214, %v212
    %v239 = vpack.c.b16 %v215, %v213
    %v240 = vpack.c.b16 %v218, %v216
    %v241 = vpack.c.b16 %v219, %v217
    %v242 = vpack.c.b16 %v222, %v220
    %v243 = vpack.c.b16 %v223, %v221
    %v244 = vpack.c.b16 %v226, %v224
    %v245 = vpack.c.b16 %v227, %v225
    %v246 = vpack.c.b16 %v230, %v228
    %v247 = vpack.c.b16 %v231, %v229
    %264 = vmatpush.bf16.msra.mxu0 %v246
    %265 = vmatpush.bf16.msra.mxu0 %v244
    %266 = vmatpush.bf16.msra.mxu0 %v242
    %267 = vmatpush.bf16.msra.mxu0 %v240
    %268 = vmatpush.bf16.msra.mxu0 %v238
    %269 = vmatpush.bf16.msra.mxu0 %v236
    %270 = vmatpush.bf16.msra.mxu0 %v234
    %271 = vmatpush.bf16.msra.mxu0 %v232
    %272 = vmatmul.bf16.gmra.mxu0 %v182
    %v273 = vpop.f32.mrf.mxu0
    %v274 = vadd.f32 %v174, %v273
    %v275 = vpop.f32.mrf.mxu0
    %v276 = vadd.f32 %v174, %v275
    %277 = vdwg.mxu0
    %278 = vmatpush.bf16.msra.mxu0 %v247
    %279 = vmatpush.bf16.msra.mxu0 %v245
    %280 = vmatpush.bf16.msra.mxu0 %v243
    %281 = vmatpush.bf16.msra.mxu0 %v241
    %282 = vmatpush.bf16.msra.mxu0 %v239
    %283 = vmatpush.bf16.msra.mxu0 %v237
    %284 = vmatpush.bf16.msra.mxu0 %v235
    %285 = vmatpush.bf16.msra.mxu0 %v233
    %286 = vmatmul.bf16.gmra.mxu0 %v182
    %v287 = vpop.f32.mrf.mxu0
    %v288 = vadd.f32 %v175, %v287
    %v289 = vpop.f32.mrf.mxu0
    %v290 = vadd.f32 %v175, %v289
    %291 = vdwg.mxu0
    %v292 = vmul.f32 %v274, 0.2
    %v293 = vmul.f32 %v288, 0.2
    %v294 = vmul.f32 %v276, 0.2
    %v295 = vmul.f32 %v290, 0.2
    %v296 = vmax.f32 %v274, %v292
    %v297 = vmax.f32 %v288, %v293
    %v298 = vmax.f32 %v276, %v294
    %v299 = vmax.f32 %v290, %v295
    %v300 = vpack.c.bf16 %v298, %v296
    %v301 = vpack.c.bf16 %v299, %v297
    %s302 = smul.u32 4, 32
    %s303 = smul.u32 %s302, 4
    %s304 = sshll.u32 %s303, 4
    %305 = dma.done [#allocation5], %s304
    %v306 = vld [vmem:[#allocation2] sm:$0xff]
    %v307 = vld [vmem:[#allocation2 + $0x8] sm:$0xff]
    %v308 = vld [vmem:[#allocation2 + $0x10] sm:$0xff]
    %v309 = vld [vmem:[#allocation2 + $0x18] sm:$0xff]
    %v310 = vld [vmem:[#allocation2 + $0x20] sm:$0xff]
    %v311 = vld [vmem:[#allocation2 + $0x28] sm:$0xff]
    %v312 = vld [vmem:[#allocation2 + $0x30] sm:$0xff]
    %v313 = vld [vmem:[#allocation2 + $0x38] sm:$0xff]
    %v314 = vld [vmem:[#allocation2 + $0x40] sm:$0xff]
    %v315 = vld [vmem:[#allocation2 + $0x48] sm:$0xff]
    %v316 = vld [vmem:[#allocation2 + $0x50] sm:$0xff]
    %v317 = vld [vmem:[#allocation2 + $0x58] sm:$0xff]
    %v318 = vld [vmem:[#allocation2 + $0x60] sm:$0xff]
    %v319 = vld [vmem:[#allocation2 + $0x68] sm:$0xff]
    %v320 = vld [vmem:[#allocation2 + $0x70] sm:$0xff]
    %v321 = vld [vmem:[#allocation2 + $0x78] sm:$0xff]
    %v322 = vld [vmem:[#allocation2 + $0x80] sm:$0xff]
    %v323 = vld [vmem:[#allocation2 + $0x88] sm:$0xff]
    %v324 = vld [vmem:[#allocation2 + $0x90] sm:$0xff]
    %v325 = vld [vmem:[#allocation2 + $0x98] sm:$0xff]
    %v326 = vld [vmem:[#allocation2 + $0xa0] sm:$0xff]
    %v327 = vld [vmem:[#allocation2 + $0xa8] sm:$0xff]
    %v328 = vld [vmem:[#allocation2 + $0xb0] sm:$0xff]
    %v329 = vld [vmem:[#allocation2 + $0xb8] sm:$0xff]
    %v330 = vld [vmem:[#allocation2 + $0xc0] sm:$0xff]
    %v331 = vld [vmem:[#allocation2 + $0xc8] sm:$0xff]
    %v332 = vld [vmem:[#allocation2 + $0xd0] sm:$0xff]
    %v333 = vld [vmem:[#allocation2 + $0xd8] sm:$0xff]
    %v334 = vld [vmem:[#allocation2 + $0xe0] sm:$0xff]
    %v335 = vld [vmem:[#allocation2 + $0xe8] sm:$0xff]
    %v336 = vld [vmem:[#allocation2 + $0xf0] sm:$0xff]
    %v337 = vld [vmem:[#allocation2 + $0xf8] sm:$0xff]
    %v338 = vld [vmem:[#allocation2 + $0x100] sm:$0xff]
    %v339 = vld [vmem:[#allocation2 + $0x108] sm:$0xff]
    %v340 = vld [vmem:[#allocation2 + $0x110] sm:$0xff]
    %v341 = vld [vmem:[#allocation2 + $0x118] sm:$0xff]
    %v342 = vld [vmem:[#allocation2 + $0x120] sm:$0xff]
    %v343 = vld [vmem:[#allocation2 + $0x128] sm:$0xff]
    %v344 = vld [vmem:[#allocation2 + $0x130] sm:$0xff]
    %v345 = vld [vmem:[#allocation2 + $0x138] sm:$0xff]
    %v346 = vld [vmem:[#allocation2 + $0x140] sm:$0xff]
    %v347 = vld [vmem:[#allocation2 + $0x148] sm:$0xff]
    %v348 = vld [vmem:[#allocation2 + $0x150] sm:$0xff]
    %v349 = vld [vmem:[#allocation2 + $0x158] sm:$0xff]
    %v350 = vld [vmem:[#allocation2 + $0x160] sm:$0xff]
    %v351 = vld [vmem:[#allocation2 + $0x168] sm:$0xff]
    %v352 = vld [vmem:[#allocation2 + $0x170] sm:$0xff]
    %v353 = vld [vmem:[#allocation2 + $0x178] sm:$0xff]
    %v354 = vld [vmem:[#allocation2 + $0x180] sm:$0xff]
    %v355 = vld [vmem:[#allocation2 + $0x188] sm:$0xff]
    %v356 = vld [vmem:[#allocation2 + $0x190] sm:$0xff]
    %v357 = vld [vmem:[#allocation2 + $0x198] sm:$0xff]
    %v358 = vld [vmem:[#allocation2 + $0x1a0] sm:$0xff]
    %v359 = vld [vmem:[#allocation2 + $0x1a8] sm:$0xff]
    %v360 = vld [vmem:[#allocation2 + $0x1b0] sm:$0xff]
    %v361 = vld [vmem:[#allocation2 + $0x1b8] sm:$0xff]
    %v362 = vld [vmem:[#allocation2 + $0x1c0] sm:$0xff]
    %v363 = vld [vmem:[#allocation2 + $0x1c8] sm:$0xff]
    %v364 = vld [vmem:[#allocation2 + $0x1d0] sm:$0xff]
    %v365 = vld [vmem:[#allocation2 + $0x1d8] sm:$0xff]
    %v366 = vld [vmem:[#allocation2 + $0x1e0] sm:$0xff]
    %v367 = vld [vmem:[#allocation2 + $0x1e8] sm:$0xff]
    %v368 = vld [vmem:[#allocation2 + $0x1f0] sm:$0xff]
    %v369 = vld [vmem:[#allocation2 + $0x1f8] sm:$0xff]
    %v370 = vld [vmem:[#allocation12] sm:$0xf]
    %v372 = vperm.slane %v370, 0
    %v373 = vperm.slane %v370, 1
    %v374 = vperm.slane %v370, 2
    %v375 = vperm.slane %v370, 3
    %v444 = vunpack.c.l.b16 %v306
    %v445 = vunpack.c.h.b16 %v306
    %v446 = vunpack.c.l.b16 %v307
    %v447 = vunpack.c.h.b16 %v307
    %v448 = vunpack.c.l.b16 %v308
    %v449 = vunpack.c.h.b16 %v308
    %v450 = vunpack.c.l.b16 %v309
    %v451 = vunpack.c.h.b16 %v309
    %v452 = vunpack.c.l.b16 %v310
    %v453 = vunpack.c.h.b16 %v310
    %v454 = vunpack.c.l.b16 %v311
    %v455 = vunpack.c.h.b16 %v311
    %v456 = vunpack.c.l.b16 %v312
    %v457 = vunpack.c.h.b16 %v312
    %v458 = vunpack.c.l.b16 %v313
    %v459 = vunpack.c.h.b16 %v313
    %v460 = vunpack.c.l.b16 %v314
    %v461 = vunpack.c.h.b16 %v314
    %v462 = vunpack.c.l.b16 %v315
    %v463 = vunpack.c.h.b16 %v315
    %v464 = vunpack.c.l.b16 %v316
    %v465 = vunpack.c.h.b16 %v316
    %v466 = vunpack.c.l.b16 %v317
    %v467 = vunpack.c.h.b16 %v317
    %v468 = vunpack.c.l.b16 %v318
    %v469 = vunpack.c.h.b16 %v318
    %v470 = vunpack.c.l.b16 %v319
    %v471 = vunpack.c.h.b16 %v319
    %v472 = vunpack.c.l.b16 %v320
    %v473 = vunpack.c.h.b16 %v320
    %v474 = vunpack.c.l.b16 %v321
    %v475 = vunpack.c.h.b16 %v321
    %v476 = vunpack.c.l.b16 %v322
    %v477 = vunpack.c.h.b16 %v322
    %v478 = vunpack.c.l.b16 %v323
    %v479 = vunpack.c.h.b16 %v323
    %v480 = vunpack.c.l.b16 %v324
    %v481 = vunpack.c.h.b16 %v324
    %v482 = vunpack.c.l.b16 %v325
    %v483 = vunpack.c.h.b16 %v325
    %v484 = vunpack.c.l.b16 %v326
    %v485 = vunpack.c.h.b16 %v326
    %v486 = vunpack.c.l.b16 %v327
    %v487 = vunpack.c.h.b16 %v327
    %v488 = vunpack.c.l.b16 %v328
    %v489 = vunpack.c.h.b16 %v328
    %v490 = vunpack.c.l.b16 %v329
    %v491 = vunpack.c.h.b16 %v329
    %v492 = vunpack.c.l.b16 %v330
    %v493 = vunpack.c.h.b16 %v330
    %v494 = vunpack.c.l.b16 %v331
    %v495 = vunpack.c.h.b16 %v331
    %v496 = vunpack.c.l.b16 %v332
    %v497 = vunpack.c.h.b16 %v332
    %v498 = vunpack.c.l.b16 %v333
    %v499 = vunpack.c.h.b16 %v333
    %v500 = vunpack.c.l.b16 %v334
    %v501 = vunpack.c.h.b16 %v334
    %v502 = vunpack.c.l.b16 %v335
    %v503 = vunpack.c.h.b16 %v335
    %v504 = vunpack.c.l.b16 %v336
    %v505 = vunpack.c.h.b16 %v336
    %v506 = vunpack.c.l.b16 %v337
    %v507 = vunpack.c.h.b16 %v337
    %v508 = vunpack.c.l.b16 %v338
    %v509 = vunpack.c.h.b16 %v338
    %v510 = vunpack.c.l.b16 %v339
    %v511 = vunpack.c.h.b16 %v339
    %v512 = vunpack.c.l.b16 %v340
    %v513 = vunpack.c.h.b16 %v340
    %v514 = vunpack.c.l.b16 %v341
    %v515 = vunpack.c.h.b16 %v341
    %v516 = vunpack.c.l.b16 %v342
    %v517 = vunpack.c.h.b16 %v342
    %v518 = vunpack.c.l.b16 %v343
    %v519 = vunpack.c.h.b16 %v343
    %v520 = vunpack.c.l.b16 %v344
    %v521 = vunpack.c.h.b16 %v344
    %v522 = vunpack.c.l.b16 %v345
    %v523 = vunpack.c.h.b16 %v345
    %v524 = vunpack.c.l.b16 %v346
    %v525 = vunpack.c.h.b16 %v346
    %v526 = vunpack.c.l.b16 %v347
    %v527 = vunpack.c.h.b16 %v347
    %v528 = vunpack.c.l.b16 %v348
    %v529 = vunpack.c.h.b16 %v348
    %v530 = vunpack.c.l.b16 %v349
    %v531 = vunpack.c.h.b16 %v349
    %v532 = vunpack.c.l.b16 %v350
    %v533 = vunpack.c.h.b16 %v350
    %v534 = vunpack.c.l.b16 %v351
    %v535 = vunpack.c.h.b16 %v351
    %v536 = vunpack.c.l.b16 %v352
    %v537 = vunpack.c.h.b16 %v352
    %v538 = vunpack.c.l.b16 %v353
    %v539 = vunpack.c.h.b16 %v353
    %v540 = vunpack.c.l.b16 %v354
    %v541 = vunpack.c.h.b16 %v354
    %v542 = vunpack.c.l.b16 %v355
    %v543 = vunpack.c.h.b16 %v355
    %v544 = vunpack.c.l.b16 %v356
    %v545 = vunpack.c.h.b16 %v356
    %v546 = vunpack.c.l.b16 %v357
    %v547 = vunpack.c.h.b16 %v357
    %v548 = vunpack.c.l.b16 %v358
    %v549 = vunpack.c.h.b16 %v358
    %v550 = vunpack.c.l.b16 %v359
    %v551 = vunpack.c.h.b16 %v359
    %v552 = vunpack.c.l.b16 %v360
    %v553 = vunpack.c.h.b16 %v360
    %v554 = vunpack.c.l.b16 %v361
    %v555 = vunpack.c.h.b16 %v361
    %v556 = vunpack.c.l.b16 %v362
    %v557 = vunpack.c.h.b16 %v362
    %v558 = vunpack.c.l.b16 %v363
    %v559 = vunpack.c.h.b16 %v363
    %v560 = vunpack.c.l.b16 %v364
    %v561 = vunpack.c.h.b16 %v364
    %v562 = vunpack.c.l.b16 %v365
    %v563 = vunpack.c.h.b16 %v365
    %v564 = vunpack.c.l.b16 %v366
    %v565 = vunpack.c.h.b16 %v366
    %v566 = vunpack.c.l.b16 %v367
    %v567 = vunpack.c.h.b16 %v367
    %v568 = vunpack.c.l.b16 %v368
    %v569 = vunpack.c.h.b16 %v368
    %v570 = vunpack.c.l.b16 %v369
    %v571 = vunpack.c.h.b16 %v369
    %v572 = vpack.c.b16 %v448, %v444
    %v573 = vpack.c.b16 %v449, %v445
    %v574 = vpack.c.b16 %v450, %v446
    %v575 = vpack.c.b16 %v451, %v447
    %v576 = vpack.c.b16 %v456, %v452
    %v577 = vpack.c.b16 %v457, %v453
    %v578 = vpack.c.b16 %v458, %v454
    %v579 = vpack.c.b16 %v459, %v455
    %v580 = vpack.c.b16 %v464, %v460
    %v581 = vpack.c.b16 %v465, %v461
    %v582 = vpack.c.b16 %v466, %v462
    %v583 = vpack.c.b16 %v467, %v463
    %v584 = vpack.c.b16 %v472, %v468
    %v585 = vpack.c.b16 %v473, %v469
    %v586 = vpack.c.b16 %v474, %v470
    %v587 = vpack.c.b16 %v475, %v471
    %v588 = vpack.c.b16 %v480, %v476
    %v589 = vpack.c.b16 %v481, %v477
    %v590 = vpack.c.b16 %v482, %v478
    %v591 = vpack.c.b16 %v483, %v479
    %v592 = vpack.c.b16 %v488, %v484
    %v593 = vpack.c.b16 %v489, %v485
    %v594 = vpack.c.b16 %v490, %v486
    %v595 = vpack.c.b16 %v491, %v487
    %v596 = vpack.c.b16 %v496, %v492
    %v597 = vpack.c.b16 %v497, %v493
    %v598 = vpack.c.b16 %v498, %v494
    %v599 = vpack.c.b16 %v499, %v495
    %v600 = vpack.c.b16 %v504, %v500
    %v601 = vpack.c.b16 %v505, %v501
    %v602 = vpack.c.b16 %v506, %v502
    %v603 = vpack.c.b16 %v507, %v503
    %v604 = vpack.c.b16 %v512, %v508
    %v605 = vpack.c.b16 %v513, %v509
    %v606 = vpack.c.b16 %v514, %v510
    %v607 = vpack.c.b16 %v515, %v511
    %v608 = vpack.c.b16 %v520, %v516
    %v609 = vpack.c.b16 %v521, %v517
    %v610 = vpack.c.b16 %v522, %v518
    %v611 = vpack.c.b16 %v523, %v519
    %v612 = vpack.c.b16 %v528, %v524
    %v613 = vpack.c.b16 %v529, %v525
    %v614 = vpack.c.b16 %v530, %v526
    %v615 = vpack.c.b16 %v531, %v527
    %v616 = vpack.c.b16 %v536, %v532
    %v617 = vpack.c.b16 %v537, %v533
    %v618 = vpack.c.b16 %v538, %v534
    %v619 = vpack.c.b16 %v539, %v535
    %v620 = vpack.c.b16 %v544, %v540
    %v621 = vpack.c.b16 %v545, %v541
    %v622 = vpack.c.b16 %v546, %v542
    %v623 = vpack.c.b16 %v547, %v543
    %v624 = vpack.c.b16 %v552, %v548
    %v625 = vpack.c.b16 %v553, %v549
    %v626 = vpack.c.b16 %v554, %v550
    %v627 = vpack.c.b16 %v555, %v551
    %v628 = vpack.c.b16 %v560, %v556
    %v629 = vpack.c.b16 %v561, %v557
    %v630 = vpack.c.b16 %v562, %v558
    %v631 = vpack.c.b16 %v563, %v559
    %v632 = vpack.c.b16 %v568, %v564
    %v633 = vpack.c.b16 %v569, %v565
    %v634 = vpack.c.b16 %v570, %v566
    %v635 = vpack.c.b16 %v571, %v567
    %700 = vmatpush.bf16.msra.mxu0 %v600
    %701 = vmatpush.bf16.msra.mxu0 %v596
    %702 = vmatpush.bf16.msra.mxu0 %v592
    %703 = vmatpush.bf16.msra.mxu0 %v588
    %704 = vmatpush.bf16.msra.mxu0 %v584
    %705 = vmatpush.bf16.msra.mxu0 %v580
    %706 = vmatpush.bf16.msra.mxu0 %v576
    %707 = vmatpush.bf16.msra.mxu0 %v572
    %708 = vmatmul.bf16.gmra.mxu0 %v300
    %v709 = vpop.f32.mrf.mxu0
    %v710 = vadd.f32 %v372, %v709
    %v711 = vpop.f32.mrf.mxu0
    %v712 = vadd.f32 %v372, %v711
    %713 = vdwg.mxu0
    %714 = vmatpush.bf16.msra.mxu0 %v632
    %715 = vmatpush.bf16.msra.mxu0 %v628
    %716 = vmatpush.bf16.msra.mxu0 %v624
    %717 = vmatpush.bf16.msra.mxu0 %v620
    %718 = vmatpush.bf16.msra.mxu0 %v616
    %719 = vmatpush.bf16.msra.mxu0 %v612
    %720 = vmatpush.bf16.msra.mxu0 %v608
    %721 = vmatpush.bf16.msra.mxu0 %v604
    %722 = vmatmul.bf16.gmra.mxu0 %v301
    %v723 = vpop.f32.mrf.mxu0
    %v724 = vadd.f32 %v710, %v723
    %v725 = vpop.f32.mrf.mxu0
    %v726 = vadd.f32 %v712, %v725
    %727 = vdwg.mxu0
    %728 = vmatpush.bf16.msra.mxu0 %v601
    %729 = vmatpush.bf16.msra.mxu0 %v597
    %730 = vmatpush.bf16.msra.mxu0 %v593
    %731 = vmatpush.bf16.msra.mxu0 %v589
    %732 = vmatpush.bf16.msra.mxu0 %v585
    %733 = vmatpush.bf16.msra.mxu0 %v581
    %734 = vmatpush.bf16.msra.mxu0 %v577
    %735 = vmatpush.bf16.msra.mxu0 %v573
    %736 = vmatmul.bf16.gmra.mxu0 %v300
    %v737 = vpop.f32.mrf.mxu0
    %v738 = vadd.f32 %v373, %v737
    %v739 = vpop.f32.mrf.mxu0
    %v740 = vadd.f32 %v373, %v739
    %741 = vdwg.mxu0
    %742 = vmatpush.bf16.msra.mxu0 %v633
    %743 = vmatpush.bf16.msra.mxu0 %v629
    %744 = vmatpush.bf16.msra.mxu0 %v625
    %745 = vmatpush.bf16.msra.mxu0 %v621
    %746 = vmatpush.bf16.msra.mxu0 %v617
    %747 = vmatpush.bf16.msra.mxu0 %v613
    %748 = vmatpush.bf16.msra.mxu0 %v609
    %749 = vmatpush.bf16.msra.mxu0 %v605
    %750 = vmatmul.bf16.gmra.mxu0 %v301
    %v751 = vpop.f32.mrf.mxu0
    %v752 = vadd.f32 %v738, %v751
    %v753 = vpop.f32.mrf.mxu0
    %v754 = vadd.f32 %v740, %v753
    %755 = vdwg.mxu0
    %756 = vmatpush.bf16.msra.mxu0 %v602
    %757 = vmatpush.bf16.msra.mxu0 %v598
    %758 = vmatpush.bf16.msra.mxu0 %v594
    %759 = vmatpush.bf16.msra.mxu0 %v590
    %760 = vmatpush.bf16.msra.mxu0 %v586
    %761 = vmatpush.bf16.msra.mxu0 %v582
    %762 = vmatpush.bf16.msra.mxu0 %v578
    %763 = vmatpush.bf16.msra.mxu0 %v574
    %764 = vmatmul.bf16.gmra.mxu0 %v300
    %v765 = vpop.f32.mrf.mxu0
    %v766 = vadd.f32 %v374, %v765
    %v767 = vpop.f32.mrf.mxu0
    %v768 = vadd.f32 %v374, %v767
    %769 = vdwg.mxu0
    %770 = vmatpush.bf16.msra.mxu0 %v634
    %771 = vmatpush.bf16.msra.mxu0 %v630
    %772 = vmatpush.bf16.msra.mxu0 %v626
    %773 = vmatpush.bf16.msra.mxu0 %v622
    %774 = vmatpush.bf16.msra.mxu0 %v618
    %775 = vmatpush.bf16.msra.mxu0 %v614
    %776 = vmatpush.bf16.msra.mxu0 %v610
    %777 = vmatpush.bf16.msra.mxu0 %v606
    %778 = vmatmul.bf16.gmra.mxu0 %v301
    %v779 = vpop.f32.mrf.mxu0
    %v780 = vadd.f32 %v766, %v779
    %v781 = vpop.f32.mrf.mxu0
    %v782 = vadd.f32 %v768, %v781
    %783 = vdwg.mxu0
    %784 = vmatpush.bf16.msra.mxu0 %v603
    %785 = vmatpush.bf16.msra.mxu0 %v599
    %786 = vmatpush.bf16.msra.mxu0 %v595
    %787 = vmatpush.bf16.msra.mxu0 %v591
    %788 = vmatpush.bf16.msra.mxu0 %v587
    %789 = vmatpush.bf16.msra.mxu0 %v583
    %790 = vmatpush.bf16.msra.mxu0 %v579
    %791 = vmatpush.bf16.msra.mxu0 %v575
    %792 = vmatmul.bf16.gmra.mxu0 %v300
    %v793 = vpop.f32.mrf.mxu0
    %v794 = vadd.f32 %v375, %v793
    %v795 = vpop.f32.mrf.mxu0
    %v796 = vadd.f32 %v375, %v795
    %797 = vdwg.mxu0
    %798 = vmatpush.bf16.msra.mxu0 %v635
    %799 = vmatpush.bf16.msra.mxu0 %v631
    %800 = vmatpush.bf16.msra.mxu0 %v627
    %801 = vmatpush.bf16.msra.mxu0 %v623
    %802 = vmatpush.bf16.msra.mxu0 %v619
    %803 = vmatpush.bf16.msra.mxu0 %v615
    %804 = vmatpush.bf16.msra.mxu0 %v611
    %805 = vmatpush.bf16.msra.mxu0 %v607
    %806 = vmatmul.bf16.gmra.mxu0 %v301
    %v807 = vpop.f32.mrf.mxu0
    %v808 = vadd.f32 %v794, %v807
    %v809 = vpop.f32.mrf.mxu0
    %v810 = vadd.f32 %v796, %v809
    %811 = vdwg.mxu0
    %v812 = vmul.f32 %v724, 0.2
    %v813 = vmul.f32 %v752, 0.2
    %v814 = vmul.f32 %v780, 0.2
    %v815 = vmul.f32 %v808, 0.2
    %v816 = vmul.f32 %v726, 0.2
    %v817 = vmul.f32 %v754, 0.2
    %v818 = vmul.f32 %v782, 0.2
    %v819 = vmul.f32 %v810, 0.2
    %v820 = vmax.f32 %v724, %v812
    %v821 = vmax.f32 %v752, %v813
    %v822 = vmax.f32 %v780, %v814
    %v823 = vmax.f32 %v808, %v815
    %v824 = vmax.f32 %v726, %v816
    %v825 = vmax.f32 %v754, %v817
    %v826 = vmax.f32 %v782, %v818
    %v827 = vmax.f32 %v810, %v819
    %v828 = vpack.c.bf16 %v824, %v820
    %v829 = vpack.c.bf16 %v825, %v821
    %v830 = vpack.c.bf16 %v826, %v822
    %v831 = vpack.c.bf16 %v827, %v823
    %s832 = smul.u32 4, 64
    %s833 = smul.u32 %s832, 8
    %s834 = sshll.u32 %s833, 4
    %835 = dma.done %s126, %s834
    %v836 = vld [vmem:[#allocation3] sm:$0xff]
    %v837 = vld [vmem:[#allocation3 + $0x8] sm:$0xff]
    %v838 = vld [vmem:[#allocation3 + $0x10] sm:$0xff]
    %v839 = vld [vmem:[#allocation3 + $0x18] sm:$0xff]
    %v840 = vld [vmem:[#allocation3 + $0x20] sm:$0xff]
    %v841 = vld [vmem:[#allocation3 + $0x28] sm:$0xff]
    %v842 = vld [vmem:[#allocation3 + $0x30] sm:$0xff]
    %v843 = vld [vmem:[#allocation3 + $0x38] sm:$0xff]
    %v844 = vld [vmem:[#allocation3 + $0x40] sm:$0xff]
    %v845 = vld [vmem:[#allocation3 + $0x48] sm:$0xff]
    %v846 = vld [vmem:[#allocation3 + $0x50] sm:$0xff]
    %v847 = vld [vmem:[#allocation3 + $0x58] sm:$0xff]
    %v848 = vld [vmem:[#allocation3 + $0x60] sm:$0xff]
    %v849 = vld [vmem:[#allocation3 + $0x68] sm:$0xff]
    %v850 = vld [vmem:[#allocation3 + $0x70] sm:$0xff]
    %v851 = vld [vmem:[#allocation3 + $0x78] sm:$0xff]
    %v852 = vld [vmem:[#allocation3 + $0x80] sm:$0xff]
    %v853 = vld [vmem:[#allocation3 + $0x88] sm:$0xff]
    %v854 = vld [vmem:[#allocation3 + $0x90] sm:$0xff]
    %v855 = vld [vmem:[#allocation3 + $0x98] sm:$0xff]
    %v856 = vld [vmem:[#allocation3 + $0xa0] sm:$0xff]
    %v857 = vld [vmem:[#allocation3 + $0xa8] sm:$0xff]
    %v858 = vld [vmem:[#allocation3 + $0xb0] sm:$0xff]
    %v859 = vld [vmem:[#allocation3 + $0xb8] sm:$0xff]
    %v860 = vld [vmem:[#allocation3 + $0xc0] sm:$0xff]
    %v861 = vld [vmem:[#allocation3 + $0xc8] sm:$0xff]
    %v862 = vld [vmem:[#allocation3 + $0xd0] sm:$0xff]
    %v863 = vld [vmem:[#allocation3 + $0xd8] sm:$0xff]
    %v864 = vld [vmem:[#allocation3 + $0xe0] sm:$0xff]
    %v865 = vld [vmem:[#allocation3 + $0xe8] sm:$0xff]
    %v866 = vld [vmem:[#allocation3 + $0xf0] sm:$0xff]
    %v867 = vld [vmem:[#allocation3 + $0xf8] sm:$0xff]
    %v868 = vld [vmem:[#allocation3 + $0x100] sm:$0xff]
    %v869 = vld [vmem:[#allocation3 + $0x108] sm:$0xff]
    %v870 = vld [vmem:[#allocation3 + $0x110] sm:$0xff]
    %v871 = vld [vmem:[#allocation3 + $0x118] sm:$0xff]
    %v872 = vld [vmem:[#allocation3 + $0x120] sm:$0xff]
    %v873 = vld [vmem:[#allocation3 + $0x128] sm:$0xff]
    %v874 = vld [vmem:[#allocation3 + $0x130] sm:$0xff]
    %v875 = vld [vmem:[#allocation3 + $0x138] sm:$0xff]
    %v876 = vld [vmem:[#allocation3 + $0x140] sm:$0xff]
    %v877 = vld [vmem:[#allocation3 + $0x148] sm:$0xff]
    %v878 = vld [vmem:[#allocation3 + $0x150] sm:$0xff]
    %v879 = vld [vmem:[#allocation3 + $0x158] sm:$0xff]
    %v880 = vld [vmem:[#allocation3 + $0x160] sm:$0xff]
    %v881 = vld [vmem:[#allocation3 + $0x168] sm:$0xff]
    %v882 = vld [vmem:[#allocation3 + $0x170] sm:$0xff]
    %v883 = vld [vmem:[#allocation3 + $0x178] sm:$0xff]
    %v884 = vld [vmem:[#allocation3 + $0x180] sm:$0xff]
    %v885 = vld [vmem:[#allocation3 + $0x188] sm:$0xff]
    %v886 = vld [vmem:[#allocation3 + $0x190] sm:$0xff]
    %v887 = vld [vmem:[#allocation3 + $0x198] sm:$0xff]
    %v888 = vld [vmem:[#allocation3 + $0x1a0] sm:$0xff]
    %v889 = vld [vmem:[#allocation3 + $0x1a8] sm:$0xff]
    %v890 = vld [vmem:[#allocation3 + $0x1b0] sm:$0xff]
    %v891 = vld [vmem:[#allocation3 + $0x1b8] sm:$0xff]
    %v892 = vld [vmem:[#allocation3 + $0x1c0] sm:$0xff]
    %v893 = vld [vmem:[#allocation3 + $0x1c8] sm:$0xff]
    %v894 = vld [vmem:[#allocation3 + $0x1d0] sm:$0xff]
    %v895 = vld [vmem:[#allocation3 + $0x1d8] sm:$0xff]
    %v896 = vld [vmem:[#allocation3 + $0x1e0] sm:$0xff]
    %v897 = vld [vmem:[#allocation3 + $0x1e8] sm:$0xff]
    %v898 = vld [vmem:[#allocation3 + $0x1f0] sm:$0xff]
    %v899 = vld [vmem:[#allocation3 + $0x1f8] sm:$0xff]
    %v900 = vld [vmem:[#allocation3 + $0x200] sm:$0xff]
    %v901 = vld [vmem:[#allocation3 + $0x208] sm:$0xff]
    %v902 = vld [vmem:[#allocation3 + $0x210] sm:$0xff]
    %v903 = vld [vmem:[#allocation3 + $0x218] sm:$0xff]
    %v904 = vld [vmem:[#allocation3 + $0x220] sm:$0xff]
    %v905 = vld [vmem:[#allocation3 + $0x228] sm:$0xff]
    %v906 = vld [vmem:[#allocation3 + $0x230] sm:$0xff]
    %v907 = vld [vmem:[#allocation3 + $0x238] sm:$0xff]
    %v908 = vld [vmem:[#allocation3 + $0x240] sm:$0xff]
    %v909 = vld [vmem:[#allocation3 + $0x248] sm:$0xff]
    %v910 = vld [vmem:[#allocation3 + $0x250] sm:$0xff]
    %v911 = vld [vmem:[#allocation3 + $0x258] sm:$0xff]
    %v912 = vld [vmem:[#allocation3 + $0x260] sm:$0xff]
    %v913 = vld [vmem:[#allocation3 + $0x268] sm:$0xff]
    %v914 = vld [vmem:[#allocation3 + $0x270] sm:$0xff]
    %v915 = vld [vmem:[#allocation3 + $0x278] sm:$0xff]
    %v916 = vld [vmem:[#allocation3 + $0x280] sm:$0xff]
    %v917 = vld [vmem:[#allocation3 + $0x288] sm:$0xff]
    %v918 = vld [vmem:[#allocation3 + $0x290] sm:$0xff]
    %v919 = vld [vmem:[#allocation3 + $0x298] sm:$0xff]
    %v920 = vld [vmem:[#allocation3 + $0x2a0] sm:$0xff]
    %v921 = vld [vmem:[#allocation3 + $0x2a8] sm:$0xff]
    %v922 = vld [vmem:[#allocation3 + $0x2b0] sm:$0xff]
    %v923 = vld [vmem:[#allocation3 + $0x2b8] sm:$0xff]
    %v924 = vld [vmem:[#allocation3 + $0x2c0] sm:$0xff]
    %v925 = vld [vmem:[#allocation3 + $0x2c8] sm:$0xff]
    %v926 = vld [vmem:[#allocation3 + $0x2d0] sm:$0xff]
    %v927 = vld [vmem:[#allocation3 + $0x2d8] sm:$0xff]
    %v928 = vld [vmem:[#allocation3 + $0x2e0] sm:$0xff]
    %v929 = vld [vmem:[#allocation3 + $0x2e8] sm:$0xff]
    %v930 = vld [vmem:[#allocation3 + $0x2f0] sm:$0xff]
    %v931 = vld [vmem:[#allocation3 + $0x2f8] sm:$0xff]
    %v932 = vld [vmem:[#allocation3 + $0x300] sm:$0xff]
    %v933 = vld [vmem:[#allocation3 + $0x308] sm:$0xff]
    %v934 = vld [vmem:[#allocation3 + $0x310] sm:$0xff]
    %v935 = vld [vmem:[#allocation3 + $0x318] sm:$0xff]
    %v936 = vld [vmem:[#allocation3 + $0x320] sm:$0xff]
    %v937 = vld [vmem:[#allocation3 + $0x328] sm:$0xff]
    %v938 = vld [vmem:[#allocation3 + $0x330] sm:$0xff]
    %v939 = vld [vmem:[#allocation3 + $0x338] sm:$0xff]
    %v940 = vld [vmem:[#allocation3 + $0x340] sm:$0xff]
    %v941 = vld [vmem:[#allocation3 + $0x348] sm:$0xff]
    %v942 = vld [vmem:[#allocation3 + $0x350] sm:$0xff]
    %v943 = vld [vmem:[#allocation3 + $0x358] sm:$0xff]
    %v944 = vld [vmem:[#allocation3 + $0x360] sm:$0xff]
    %v945 = vld [vmem:[#allocation3 + $0x368] sm:$0xff]
    %v946 = vld [vmem:[#allocation3 + $0x370] sm:$0xff]
    %v947 = vld [vmem:[#allocation3 + $0x378] sm:$0xff]
    %v948 = vld [vmem:[#allocation3 + $0x380] sm:$0xff]
    %v949 = vld [vmem:[#allocation3 + $0x388] sm:$0xff]
    %v950 = vld [vmem:[#allocation3 + $0x390] sm:$0xff]
    %v951 = vld [vmem:[#allocation3 + $0x398] sm:$0xff]
    %v952 = vld [vmem:[#allocation3 + $0x3a0] sm:$0xff]
    %v953 = vld [vmem:[#allocation3 + $0x3a8] sm:$0xff]
    %v954 = vld [vmem:[#allocation3 + $0x3b0] sm:$0xff]
    %v955 = vld [vmem:[#allocation3 + $0x3b8] sm:$0xff]
    %v956 = vld [vmem:[#allocation3 + $0x3c0] sm:$0xff]
    %v957 = vld [vmem:[#allocation3 + $0x3c8] sm:$0xff]
    %v958 = vld [vmem:[#allocation3 + $0x3d0] sm:$0xff]
    %v959 = vld [vmem:[#allocation3 + $0x3d8] sm:$0xff]
    %v960 = vld [vmem:[#allocation3 + $0x3e0] sm:$0xff]
    %v961 = vld [vmem:[#allocation3 + $0x3e8] sm:$0xff]
    %v962 = vld [vmem:[#allocation3 + $0x3f0] sm:$0xff]
    %v963 = vld [vmem:[#allocation3 + $0x3f8] sm:$0xff]
    %v964 = vld [vmem:[#allocation3 + $0x400] sm:$0xff]
    %v965 = vld [vmem:[#allocation3 + $0x408] sm:$0xff]
    %v966 = vld [vmem:[#allocation3 + $0x410] sm:$0xff]
    %v967 = vld [vmem:[#allocation3 + $0x418] sm:$0xff]
    %v968 = vld [vmem:[#allocation3 + $0x420] sm:$0xff]
    %v969 = vld [vmem:[#allocation3 + $0x428] sm:$0xff]
    %v970 = vld [vmem:[#allocation3 + $0x430] sm:$0xff]
    %v971 = vld [vmem:[#allocation3 + $0x438] sm:$0xff]
    %v972 = vld [vmem:[#allocation3 + $0x440] sm:$0xff]
    %v973 = vld [vmem:[#allocation3 + $0x448] sm:$0xff]
    %v974 = vld [vmem:[#allocation3 + $0x450] sm:$0xff]
    %v975 = vld [vmem:[#allocation3 + $0x458] sm:$0xff]
    %v976 = vld [vmem:[#allocation3 + $0x460] sm:$0xff]
    %v977 = vld [vmem:[#allocation3 + $0x468] sm:$0xff]
    %v978 = vld [vmem:[#allocation3 + $0x470] sm:$0xff]
    %v979 = vld [vmem:[#allocation3 + $0x478] sm:$0xff]
    %v980 = vld [vmem:[#allocation3 + $0x480] sm:$0xff]
    %v981 = vld [vmem:[#allocation3 + $0x488] sm:$0xff]
    %v982 = vld [vmem:[#allocation3 + $0x490] sm:$0xff]
    %v983 = vld [vmem:[#allocation3 + $0x498] sm:$0xff]
    %v984 = vld [vmem:[#allocation3 + $0x4a0] sm:$0xff]
    %v985 = vld [vmem:[#allocation3 + $0x4a8] sm:$0xff]
    %v986 = vld [vmem:[#allocation3 + $0x4b0] sm:$0xff]
    %v987 = vld [vmem:[#allocation3 + $0x4b8] sm:$0xff]
    %v988 = vld [vmem:[#allocation3 + $0x4c0] sm:$0xff]
    %v989 = vld [vmem:[#allocation3 + $0x4c8] sm:$0xff]
    %v990 = vld [vmem:[#allocation3 + $0x4d0] sm:$0xff]
    %v991 = vld [vmem:[#allocation3 + $0x4d8] sm:$0xff]
    %v992 = vld [vmem:[#allocation3 + $0x4e0] sm:$0xff]
    %v993 = vld [vmem:[#allocation3 + $0x4e8] sm:$0xff]
    %v994 = vld [vmem:[#allocation3 + $0x4f0] sm:$0xff]
    %v995 = vld [vmem:[#allocation3 + $0x4f8] sm:$0xff]
    %v996 = vld [vmem:[#allocation3 + $0x500] sm:$0xff]
    %v997 = vld [vmem:[#allocation3 + $0x508] sm:$0xff]
    %v998 = vld [vmem:[#allocation3 + $0x510] sm:$0xff]
    %v999 = vld [vmem:[#allocation3 + $0x518] sm:$0xff]
    %v1000 = vld [vmem:[#allocation3 + $0x520] sm:$0xff]
    %v1001 = vld [vmem:[#allocation3 + $0x528] sm:$0xff]
    %v1002 = vld [vmem:[#allocation3 + $0x530] sm:$0xff]
    %v1003 = vld [vmem:[#allocation3 + $0x538] sm:$0xff]
    %v1004 = vld [vmem:[#allocation3 + $0x540] sm:$0xff]
    %v1005 = vld [vmem:[#allocation3 + $0x548] sm:$0xff]
    %v1006 = vld [vmem:[#allocation3 + $0x550] sm:$0xff]
    %v1007 = vld [vmem:[#allocation3 + $0x558] sm:$0xff]
    %v1008 = vld [vmem:[#allocation3 + $0x560] sm:$0xff]
    %v1009 = vld [vmem:[#allocation3 + $0x568] sm:$0xff]
    %v1010 = vld [vmem:[#allocation3 + $0x570] sm:$0xff]
    %v1011 = vld [vmem:[#allocation3 + $0x578] sm:$0xff]
    %v1012 = vld [vmem:[#allocation3 + $0x580] sm:$0xff]
    %v1013 = vld [vmem:[#allocation3 + $0x588] sm:$0xff]
    %v1014 = vld [vmem:[#allocation3 + $0x590] sm:$0xff]
    %v1015 = vld [vmem:[#allocation3 + $0x598] sm:$0xff]
    %v1016 = vld [vmem:[#allocation3 + $0x5a0] sm:$0xff]
    %v1017 = vld [vmem:[#allocation3 + $0x5a8] sm:$0xff]
    %v1018 = vld [vmem:[#allocation3 + $0x5b0] sm:$0xff]
    %v1019 = vld [vmem:[#allocation3 + $0x5b8] sm:$0xff]
    %v1020 = vld [vmem:[#allocation3 + $0x5c0] sm:$0xff]
    %v1021 = vld [vmem:[#allocation3 + $0x5c8] sm:$0xff]
    %v1022 = vld [vmem:[#allocation3 + $0x5d0] sm:$0xff]
    %v1023 = vld [vmem:[#allocation3 + $0x5d8] sm:$0xff]
    %v1024 = vld [vmem:[#allocation3 + $0x5e0] sm:$0xff]
    %v1025 = vld [vmem:[#allocation3 + $0x5e8] sm:$0xff]
    %v1026 = vld [vmem:[#allocation3 + $0x5f0] sm:$0xff]
    %v1027 = vld [vmem:[#allocation3 + $0x5f8] sm:$0xff]
    %v1028 = vld [vmem:[#allocation3 + $0x600] sm:$0xff]
    %v1029 = vld [vmem:[#allocation3 + $0x608] sm:$0xff]
    %v1030 = vld [vmem:[#allocation3 + $0x610] sm:$0xff]
    %v1031 = vld [vmem:[#allocation3 + $0x618] sm:$0xff]
    %v1032 = vld [vmem:[#allocation3 + $0x620] sm:$0xff]
    %v1033 = vld [vmem:[#allocation3 + $0x628] sm:$0xff]
    %v1034 = vld [vmem:[#allocation3 + $0x630] sm:$0xff]
    %v1035 = vld [vmem:[#allocation3 + $0x638] sm:$0xff]
    %v1036 = vld [vmem:[#allocation3 + $0x640] sm:$0xff]
    %v1037 = vld [vmem:[#allocation3 + $0x648] sm:$0xff]
    %v1038 = vld [vmem:[#allocation3 + $0x650] sm:$0xff]
    %v1039 = vld [vmem:[#allocation3 + $0x658] sm:$0xff]
    %v1040 = vld [vmem:[#allocation3 + $0x660] sm:$0xff]
    %v1041 = vld [vmem:[#allocation3 + $0x668] sm:$0xff]
    %v1042 = vld [vmem:[#allocation3 + $0x670] sm:$0xff]
    %v1043 = vld [vmem:[#allocation3 + $0x678] sm:$0xff]
    %v1044 = vld [vmem:[#allocation3 + $0x680] sm:$0xff]
    %v1045 = vld [vmem:[#allocation3 + $0x688] sm:$0xff]
    %v1046 = vld [vmem:[#allocation3 + $0x690] sm:$0xff]
    %v1047 = vld [vmem:[#allocation3 + $0x698] sm:$0xff]
    %v1048 = vld [vmem:[#allocation3 + $0x6a0] sm:$0xff]
    %v1049 = vld [vmem:[#allocation3 + $0x6a8] sm:$0xff]
    %v1050 = vld [vmem:[#allocation3 + $0x6b0] sm:$0xff]
    %v1051 = vld [vmem:[#allocation3 + $0x6b8] sm:$0xff]
    %v1052 = vld [vmem:[#allocation3 + $0x6c0] sm:$0xff]
    %v1053 = vld [vmem:[#allocation3 + $0x6c8] sm:$0xff]
    %v1054 = vld [vmem:[#allocation3 + $0x6d0] sm:$0xff]
    %v1055 = vld [vmem:[#allocation3 + $0x6d8] sm:$0xff]
    %v1056 = vld [vmem:[#allocation3 + $0x6e0] sm:$0xff]
    %v1057 = vld [vmem:[#allocation3 + $0x6e8] sm:$0xff]
    %v1058 = vld [vmem:[#allocation3 + $0x6f0] sm:$0xff]
    %v1059 = vld [vmem:[#allocation3 + $0x6f8] sm:$0xff]
    %v1060 = vld [vmem:[#allocation3 + $0x700] sm:$0xff]
    %v1061 = vld [vmem:[#allocation3 + $0x708] sm:$0xff]
    %v1062 = vld [vmem:[#allocation3 + $0x710] sm:$0xff]
    %v1063 = vld [vmem:[#allocation3 + $0x718] sm:$0xff]
    %v1064 = vld [vmem:[#allocation3 + $0x720] sm:$0xff]
    %v1065 = vld [vmem:[#allocation3 + $0x728] sm:$0xff]
    %v1066 = vld [vmem:[#allocation3 + $0x730] sm:$0xff]
    %v1067 = vld [vmem:[#allocation3 + $0x738] sm:$0xff]
    %v1068 = vld [vmem:[#allocation3 + $0x740] sm:$0xff]
    %v1069 = vld [vmem:[#allocation3 + $0x748] sm:$0xff]
    %v1070 = vld [vmem:[#allocation3 + $0x750] sm:$0xff]
    %v1071 = vld [vmem:[#allocation3 + $0x758] sm:$0xff]
    %v1072 = vld [vmem:[#allocation3 + $0x760] sm:$0xff]
    %v1073 = vld [vmem:[#allocation3 + $0x768] sm:$0xff]
    %v1074 = vld [vmem:[#allocation3 + $0x770] sm:$0xff]
    %v1075 = vld [vmem:[#allocation3 + $0x778] sm:$0xff]
    %v1076 = vld [vmem:[#allocation3 + $0x780] sm:$0xff]
    %v1077 = vld [vmem:[#allocation3 + $0x788] sm:$0xff]
    %v1078 = vld [vmem:[#allocation3 + $0x790] sm:$0xff]
    %v1079 = vld [vmem:[#allocation3 + $0x798] sm:$0xff]
    %v1080 = vld [vmem:[#allocation3 + $0x7a0] sm:$0xff]
    %v1081 = vld [vmem:[#allocation3 + $0x7a8] sm:$0xff]
    %v1082 = vld [vmem:[#allocation3 + $0x7b0] sm:$0xff]
    %v1083 = vld [vmem:[#allocation3 + $0x7b8] sm:$0xff]
    %v1084 = vld [vmem:[#allocation3 + $0x7c0] sm:$0xff]
    %v1085 = vld [vmem:[#allocation3 + $0x7c8] sm:$0xff]
    %v1086 = vld [vmem:[#allocation3 + $0x7d0] sm:$0xff]
    %v1087 = vld [vmem:[#allocation3 + $0x7d8] sm:$0xff]
    %v1088 = vld [vmem:[#allocation3 + $0x7e0] sm:$0xff]
    %v1089 = vld [vmem:[#allocation3 + $0x7e8] sm:$0xff]
    %v1090 = vld [vmem:[#allocation3 + $0x7f0] sm:$0xff]
    %v1091 = vld [vmem:[#allocation3 + $0x7f8] sm:$0xff]
    %v1092 = vld [vmem:[#allocation14] sm:$0xff]
    %v1094 = vperm.slane %v1092, 0
    %v1095 = vperm.slane %v1092, 1
    %v1096 = vperm.slane %v1092, 2
    %v1097 = vperm.slane %v1092, 3
    %v1098 = vperm.slane %v1092, 4
    %v1099 = vperm.slane %v1092, 5
    %v1100 = vperm.slane %v1092, 6
    %v1101 = vperm.slane %v1092, 7
    %v1366 = vunpack.c.l.b16 %v836
    %v1367 = vunpack.c.h.b16 %v836
    %v1368 = vunpack.c.l.b16 %v837
    %v1369 = vunpack.c.h.b16 %v837
    %v1370 = vunpack.c.l.b16 %v838
    %v1371 = vunpack.c.h.b16 %v838
    %v1372 = vunpack.c.l.b16 %v839
    %v1373 = vunpack.c.h.b16 %v839
    %v1374 = vunpack.c.l.b16 %v840
    %v1375 = vunpack.c.h.b16 %v840
    %v1376 = vunpack.c.l.b16 %v841
    %v1377 = vunpack.c.h.b16 %v841
    %v1378 = vunpack.c.l.b16 %v842
    %v1379 = vunpack.c.h.b16 %v842
    %v1380 = vunpack.c.l.b16 %v843
    %v1381 = vunpack.c.h.b16 %v843
    %v1382 = vunpack.c.l.b16 %v844
    %v1383 = vunpack.c.h.b16 %v844
    %v1384 = vunpack.c.l.b16 %v845
    %v1385 = vunpack.c.h.b16 %v845
    %v1386 = vunpack.c.l.b16 %v846
    %v1387 = vunpack.c.h.b16 %v846
    %v1388 = vunpack.c.l.b16 %v847
    %v1389 = vunpack.c.h.b16 %v847
    %v1390 = vunpack.c.l.b16 %v848
    %v1391 = vunpack.c.h.b16 %v848
    %v1392 = vunpack.c.l.b16 %v849
    %v1393 = vunpack.c.h.b16 %v849
    %v1394 = vunpack.c.l.b16 %v850
    %v1395 = vunpack.c.h.b16 %v850
    %v1396 = vunpack.c.l.b16 %v851
    %v1397 = vunpack.c.h.b16 %v851
    %v1398 = vunpack.c.l.b16 %v852
    %v1399 = vunpack.c.h.b16 %v852
    %v1400 = vunpack.c.l.b16 %v853
    %v1401 = vunpack.c.h.b16 %v853
    %v1402 = vunpack.c.l.b16 %v854
    %v1403 = vunpack.c.h.b16 %v854
    %v1404 = vunpack.c.l.b16 %v855
    %v1405 = vunpack.c.h.b16 %v855
    %v1406 = vunpack.c.l.b16 %v856
    %v1407 = vunpack.c.h.b16 %v856
    %v1408 = vunpack.c.l.b16 %v857
    %v1409 = vunpack.c.h.b16 %v857
    %v1410 = vunpack.c.l.b16 %v858
    %v1411 = vunpack.c.h.b16 %v858
    %v1412 = vunpack.c.l.b16 %v859
    %v1413 = vunpack.c.h.b16 %v859
    %v1414 = vunpack.c.l.b16 %v860
    %v1415 = vunpack.c.h.b16 %v860
    %v1416 = vunpack.c.l.b16 %v861
    %v1417 = vunpack.c.h.b16 %v861
    %v1418 = vunpack.c.l.b16 %v862
    %v1419 = vunpack.c.h.b16 %v862
    %v1420 = vunpack.c.l.b16 %v863
    %v1421 = vunpack.c.h.b16 %v863
    %v1422 = vunpack.c.l.b16 %v864
    %v1423 = vunpack.c.h.b16 %v864
    %v1424 = vunpack.c.l.b16 %v865
    %v1425 = vunpack.c.h.b16 %v865
    %v1426 = vunpack.c.l.b16 %v866
    %v1427 = vunpack.c.h.b16 %v866
    %v1428 = vunpack.c.l.b16 %v867
    %v1429 = vunpack.c.h.b16 %v867
    %v1430 = vunpack.c.l.b16 %v868
    %v1431 = vunpack.c.h.b16 %v868
    %v1432 = vunpack.c.l.b16 %v869
    %v1433 = vunpack.c.h.b16 %v869
    %v1434 = vunpack.c.l.b16 %v870
    %v1435 = vunpack.c.h.b16 %v870
    %v1436 = vunpack.c.l.b16 %v871
    %v1437 = vunpack.c.h.b16 %v871
    %v1438 = vunpack.c.l.b16 %v872
    %v1439 = vunpack.c.h.b16 %v872
    %v1440 = vunpack.c.l.b16 %v873
    %v1441 = vunpack.c.h.b16 %v873
    %v1442 = vunpack.c.l.b16 %v874
    %v1443 = vunpack.c.h.b16 %v874
    %v1444 = vunpack.c.l.b16 %v875
    %v1445 = vunpack.c.h.b16 %v875
    %v1446 = vunpack.c.l.b16 %v876
    %v1447 = vunpack.c.h.b16 %v876
    %v1448 = vunpack.c.l.b16 %v877
    %v1449 = vunpack.c.h.b16 %v877
    %v1450 = vunpack.c.l.b16 %v878
    %v1451 = vunpack.c.h.b16 %v878
    %v1452 = vunpack.c.l.b16 %v879
    %v1453 = vunpack.c.h.b16 %v879
    %v1454 = vunpack.c.l.b16 %v880
    %v1455 = vunpack.c.h.b16 %v880
    %v1456 = vunpack.c.l.b16 %v881
    %v1457 = vunpack.c.h.b16 %v881
    %v1458 = vunpack.c.l.b16 %v882
    %v1459 = vunpack.c.h.b16 %v882
    %v1460 = vunpack.c.l.b16 %v883
    %v1461 = vunpack.c.h.b16 %v883
    %v1462 = vunpack.c.l.b16 %v884
    %v1463 = vunpack.c.h.b16 %v884
    %v1464 = vunpack.c.l.b16 %v885
    %v1465 = vunpack.c.h.b16 %v885
    %v1466 = vunpack.c.l.b16 %v886
    %v1467 = vunpack.c.h.b16 %v886
    %v1468 = vunpack.c.l.b16 %v887
    %v1469 = vunpack.c.h.b16 %v887
    %v1470 = vunpack.c.l.b16 %v888
    %v1471 = vunpack.c.h.b16 %v888
    %v1472 = vunpack.c.l.b16 %v889
    %v1473 = vunpack.c.h.b16 %v889
    %v1474 = vunpack.c.l.b16 %v890
    %v1475 = vunpack.c.h.b16 %v890
    %v1476 = vunpack.c.l.b16 %v891
    %v1477 = vunpack.c.h.b16 %v891
    %v1478 = vunpack.c.l.b16 %v892
    %v1479 = vunpack.c.h.b16 %v892
    %v1480 = vunpack.c.l.b16 %v893
    %v1481 = vunpack.c.h.b16 %v893
    %v1482 = vunpack.c.l.b16 %v894
    %v1483 = vunpack.c.h.b16 %v894
    %v1484 = vunpack.c.l.b16 %v895
    %v1485 = vunpack.c.h.b16 %v895
    %v1486 = vunpack.c.l.b16 %v896
    %v1487 = vunpack.c.h.b16 %v896
    %v1488 = vunpack.c.l.b16 %v897
    %v1489 = vunpack.c.h.b16 %v897
    %v1490 = vunpack.c.l.b16 %v898
    %v1491 = vunpack.c.h.b16 %v898
    %v1492 = vunpack.c.l.b16 %v899
    %v1493 = vunpack.c.h.b16 %v899
    %v1494 = vunpack.c.l.b16 %v900
    %v1495 = vunpack.c.h.b16 %v900
    %v1496 = vunpack.c.l.b16 %v901
    %v1497 = vunpack.c.h.b16 %v901
    %v1498 = vunpack.c.l.b16 %v902
    %v1499 = vunpack.c.h.b16 %v902
    %v1500 = vunpack.c.l.b16 %v903
    %v1501 = vunpack.c.h.b16 %v903
    %v1502 = vunpack.c.l.b16 %v904
    %v1503 = vunpack.c.h.b16 %v904
    %v1504 = vunpack.c.l.b16 %v905
    %v1505 = vunpack.c.h.b16 %v905
    %v1506 = vunpack.c.l.b16 %v906
    %v1507 = vunpack.c.h.b16 %v906
    %v1508 = vunpack.c.l.b16 %v907
    %v1509 = vunpack.c.h.b16 %v907
    %v1510 = vunpack.c.l.b16 %v908
    %v1511 = vunpack.c.h.b16 %v908
    %v1512 = vunpack.c.l.b16 %v909
    %v1513 = vunpack.c.h.b16 %v909
    %v1514 = vunpack.c.l.b16 %v910
    %v1515 = vunpack.c.h.b16 %v910
    %v1516 = vunpack.c.l.b16 %v911
    %v1517 = vunpack.c.h.b16 %v911
    %v1518 = vunpack.c.l.b16 %v912
    %v1519 = vunpack.c.h.b16 %v912
    %v1520 = vunpack.c.l.b16 %v913
    %v1521 = vunpack.c.h.b16 %v913
    %v1522 = vunpack.c.l.b16 %v914
    %v1523 = vunpack.c.h.b16 %v914
    %v1524 = vunpack.c.l.b16 %v915
    %v1525 = vunpack.c.h.b16 %v915
    %v1526 = vunpack.c.l.b16 %v916
    %v1527 = vunpack.c.h.b16 %v916
    %v1528 = vunpack.c.l.b16 %v917
    %v1529 = vunpack.c.h.b16 %v917
    %v1530 = vunpack.c.l.b16 %v918
    %v1531 = vunpack.c.h.b16 %v918
    %v1532 = vunpack.c.l.b16 %v919
    %v1533 = vunpack.c.h.b16 %v919
    %v1534 = vunpack.c.l.b16 %v920
    %v1535 = vunpack.c.h.b16 %v920
    %v1536 = vunpack.c.l.b16 %v921
    %v1537 = vunpack.c.h.b16 %v921
    %v1538 = vunpack.c.l.b16 %v922
    %v1539 = vunpack.c.h.b16 %v922
    %v1540 = vunpack.c.l.b16 %v923
    %v1541 = vunpack.c.h.b16 %v923
    %v1542 = vunpack.c.l.b16 %v924
    %v1543 = vunpack.c.h.b16 %v924
    %v1544 = vunpack.c.l.b16 %v925
    %v1545 = vunpack.c.h.b16 %v925
    %v1546 = vunpack.c.l.b16 %v926
    %v1547 = vunpack.c.h.b16 %v926
    %v1548 = vunpack.c.l.b16 %v927
    %v1549 = vunpack.c.h.b16 %v927
    %v1550 = vunpack.c.l.b16 %v928
    %v1551 = vunpack.c.h.b16 %v928
    %v1552 = vunpack.c.l.b16 %v929
    %v1553 = vunpack.c.h.b16 %v929
    %v1554 = vunpack.c.l.b16 %v930
    %v1555 = vunpack.c.h.b16 %v930
    %v1556 = vunpack.c.l.b16 %v931
    %v1557 = vunpack.c.h.b16 %v931
    %v1558 = vunpack.c.l.b16 %v932
    %v1559 = vunpack.c.h.b16 %v932
    %v1560 = vunpack.c.l.b16 %v933
    %v1561 = vunpack.c.h.b16 %v933
    %v1562 = vunpack.c.l.b16 %v934
    %v1563 = vunpack.c.h.b16 %v934
    %v1564 = vunpack.c.l.b16 %v935
    %v1565 = vunpack.c.h.b16 %v935
    %v1566 = vunpack.c.l.b16 %v936
    %v1567 = vunpack.c.h.b16 %v936
    %v1568 = vunpack.c.l.b16 %v937
    %v1569 = vunpack.c.h.b16 %v937
    %v1570 = vunpack.c.l.b16 %v938
    %v1571 = vunpack.c.h.b16 %v938
    %v1572 = vunpack.c.l.b16 %v939
    %v1573 = vunpack.c.h.b16 %v939
    %v1574 = vunpack.c.l.b16 %v940
    %v1575 = vunpack.c.h.b16 %v940
    %v1576 = vunpack.c.l.b16 %v941
    %v1577 = vunpack.c.h.b16 %v941
    %v1578 = vunpack.c.l.b16 %v942
    %v1579 = vunpack.c.h.b16 %v942
    %v1580 = vunpack.c.l.b16 %v943
    %v1581 = vunpack.c.h.b16 %v943
    %v1582 = vunpack.c.l.b16 %v944
    %v1583 = vunpack.c.h.b16 %v944
    %v1584 = vunpack.c.l.b16 %v945
    %v1585 = vunpack.c.h.b16 %v945
    %v1586 = vunpack.c.l.b16 %v946
    %v1587 = vunpack.c.h.b16 %v946
    %v1588 = vunpack.c.l.b16 %v947
    %v1589 = vunpack.c.h.b16 %v947
    %v1590 = vunpack.c.l.b16 %v948
    %v1591 = vunpack.c.h.b16 %v948
    %v1592 = vunpack.c.l.b16 %v949
    %v1593 = vunpack.c.h.b16 %v949
    %v1594 = vunpack.c.l.b16 %v950
    %v1595 = vunpack.c.h.b16 %v950
    %v1596 = vunpack.c.l.b16 %v951
    %v1597 = vunpack.c.h.b16 %v951
    %v1598 = vunpack.c.l.b16 %v952
    %v1599 = vunpack.c.h.b16 %v952
    %v1600 = vunpack.c.l.b16 %v953
    %v1601 = vunpack.c.h.b16 %v953
    %v1602 = vunpack.c.l.b16 %v954
    %v1603 = vunpack.c.h.b16 %v954
    %v1604 = vunpack.c.l.b16 %v955
    %v1605 = vunpack.c.h.b16 %v955
    %v1606 = vunpack.c.l.b16 %v956
    %v1607 = vunpack.c.h.b16 %v956
    %v1608 = vunpack.c.l.b16 %v957
    %v1609 = vunpack.c.h.b16 %v957
    %v1610 = vunpack.c.l.b16 %v958
    %v1611 = vunpack.c.h.b16 %v958
    %v1612 = vunpack.c.l.b16 %v959
    %v1613 = vunpack.c.h.b16 %v959
    %v1614 = vunpack.c.l.b16 %v960
    %v1615 = vunpack.c.h.b16 %v960
    %v1616 = vunpack.c.l.b16 %v961
    %v1617 = vunpack.c.h.b16 %v961
    %v1618 = vunpack.c.l.b16 %v962
    %v1619 = vunpack.c.h.b16 %v962
    %v1620 = vunpack.c.l.b16 %v963
    %v1621 = vunpack.c.h.b16 %v963
    %v1622 = vunpack.c.l.b16 %v964
    %v1623 = vunpack.c.h.b16 %v964
    %v1624 = vunpack.c.l.b16 %v965
    %v1625 = vunpack.c.h.b16 %v965
    %v1626 = vunpack.c.l.b16 %v966
    %v1627 = vunpack.c.h.b16 %v966
    %v1628 = vunpack.c.l.b16 %v967
    %v1629 = vunpack.c.h.b16 %v967
    %v1630 = vunpack.c.l.b16 %v968
    %v1631 = vunpack.c.h.b16 %v968
    %v1632 = vunpack.c.l.b16 %v969
    %v1633 = vunpack.c.h.b16 %v969
    %v1634 = vunpack.c.l.b16 %v970
    %v1635 = vunpack.c.h.b16 %v970
    %v1636 = vunpack.c.l.b16 %v971
    %v1637 = vunpack.c.h.b16 %v971
    %v1638 = vunpack.c.l.b16 %v972
    %v1639 = vunpack.c.h.b16 %v972
    %v1640 = vunpack.c.l.b16 %v973
    %v1641 = vunpack.c.h.b16 %v973
    %v1642 = vunpack.c.l.b16 %v974
    %v1643 = vunpack.c.h.b16 %v974
    %v1644 = vunpack.c.l.b16 %v975
    %v1645 = vunpack.c.h.b16 %v975
    %v1646 = vunpack.c.l.b16 %v976
    %v1647 = vunpack.c.h.b16 %v976
    %v1648 = vunpack.c.l.b16 %v977
    %v1649 = vunpack.c.h.b16 %v977
    %v1650 = vunpack.c.l.b16 %v978
    %v1651 = vunpack.c.h.b16 %v978
    %v1652 = vunpack.c.l.b16 %v979
    %v1653 = vunpack.c.h.b16 %v979
    %v1654 = vunpack.c.l.b16 %v980
    %v1655 = vunpack.c.h.b16 %v980
    %v1656 = vunpack.c.l.b16 %v981
    %v1657 = vunpack.c.h.b16 %v981
    %v1658 = vunpack.c.l.b16 %v982
    %v1659 = vunpack.c.h.b16 %v982
    %v1660 = vunpack.c.l.b16 %v983
    %v1661 = vunpack.c.h.b16 %v983
    %v1662 = vunpack.c.l.b16 %v984
    %v1663 = vunpack.c.h.b16 %v984
    %v1664 = vunpack.c.l.b16 %v985
    %v1665 = vunpack.c.h.b16 %v985
    %v1666 = vunpack.c.l.b16 %v986
    %v1667 = vunpack.c.h.b16 %v986
    %v1668 = vunpack.c.l.b16 %v987
    %v1669 = vunpack.c.h.b16 %v987
    %v1670 = vunpack.c.l.b16 %v988
    %v1671 = vunpack.c.h.b16 %v988
    %v1672 = vunpack.c.l.b16 %v989
    %v1673 = vunpack.c.h.b16 %v989
    %v1674 = vunpack.c.l.b16 %v990
    %v1675 = vunpack.c.h.b16 %v990
    %v1676 = vunpack.c.l.b16 %v991
    %v1677 = vunpack.c.h.b16 %v991
    %v1678 = vunpack.c.l.b16 %v992
    %v1679 = vunpack.c.h.b16 %v992
    %v1680 = vunpack.c.l.b16 %v993
    %v1681 = vunpack.c.h.b16 %v993
    %v1682 = vunpack.c.l.b16 %v994
    %v1683 = vunpack.c.h.b16 %v994
    %v1684 = vunpack.c.l.b16 %v995
    %v1685 = vunpack.c.h.b16 %v995
    %v1686 = vunpack.c.l.b16 %v996
    %v1687 = vunpack.c.h.b16 %v996
    %v1688 = vunpack.c.l.b16 %v997
    %v1689 = vunpack.c.h.b16 %v997
    %v1690 = vunpack.c.l.b16 %v998
    %v1691 = vunpack.c.h.b16 %v998
    %v1692 = vunpack.c.l.b16 %v999
    %v1693 = vunpack.c.h.b16 %v999
    %v1694 = vunpack.c.l.b16 %v1000
    %v1695 = vunpack.c.h.b16 %v1000
    %v1696 = vunpack.c.l.b16 %v1001
    %v1697 = vunpack.c.h.b16 %v1001
    %v1698 = vunpack.c.l.b16 %v1002
    %v1699 = vunpack.c.h.b16 %v1002
    %v1700 = vunpack.c.l.b16 %v1003
    %v1701 = vunpack.c.h.b16 %v1003
    %v1702 = vunpack.c.l.b16 %v1004
    %v1703 = vunpack.c.h.b16 %v1004
    %v1704 = vunpack.c.l.b16 %v1005
    %v1705 = vunpack.c.h.b16 %v1005
    %v1706 = vunpack.c.l.b16 %v1006
    %v1707 = vunpack.c.h.b16 %v1006
    %v1708 = vunpack.c.l.b16 %v1007
    %v1709 = vunpack.c.h.b16 %v1007
    %v1710 = vunpack.c.l.b16 %v1008
    %v1711 = vunpack.c.h.b16 %v1008
    %v1712 = vunpack.c.l.b16 %v1009
    %v1713 = vunpack.c.h.b16 %v1009
    %v1714 = vunpack.c.l.b16 %v1010
    %v1715 = vunpack.c.h.b16 %v1010
    %v1716 = vunpack.c.l.b16 %v1011
    %v1717 = vunpack.c.h.b16 %v1011
    %v1718 = vunpack.c.l.b16 %v1012
    %v1719 = vunpack.c.h.b16 %v1012
    %v1720 = vunpack.c.l.b16 %v1013
    %v1721 = vunpack.c.h.b16 %v1013
    %v1722 = vunpack.c.l.b16 %v1014
    %v1723 = vunpack.c.h.b16 %v1014
    %v1724 = vunpack.c.l.b16 %v1015
    %v1725 = vunpack.c.h.b16 %v1015
    %v1726 = vunpack.c.l.b16 %v1016
    %v1727 = vunpack.c.h.b16 %v1016
    %v1728 = vunpack.c.l.b16 %v1017
    %v1729 = vunpack.c.h.b16 %v1017
    %v1730 = vunpack.c.l.b16 %v1018
    %v1731 = vunpack.c.h.b16 %v1018
    %v1732 = vunpack.c.l.b16 %v1019
    %v1733 = vunpack.c.h.b16 %v1019
    %v1734 = vunpack.c.l.b16 %v1020
    %v1735 = vunpack.c.h.b16 %v1020
    %v1736 = vunpack.c.l.b16 %v1021
    %v1737 = vunpack.c.h.b16 %v1021
    %v1738 = vunpack.c.l.b16 %v1022
    %v1739 = vunpack.c.h.b16 %v1022
    %v1740 = vunpack.c.l.b16 %v1023
    %v1741 = vunpack.c.h.b16 %v1023
    %v1742 = vunpack.c.l.b16 %v1024
    %v1743 = vunpack.c.h.b16 %v1024
    %v1744 = vunpack.c.l.b16 %v1025
    %v1745 = vunpack.c.h.b16 %v1025
    %v1746 = vunpack.c.l.b16 %v1026
    %v1747 = vunpack.c.h.b16 %v1026
    %v1748 = vunpack.c.l.b16 %v1027
    %v1749 = vunpack.c.h.b16 %v1027
    %v1750 = vunpack.c.l.b16 %v1028
    %v1751 = vunpack.c.h.b16 %v1028
    %v1752 = vunpack.c.l.b16 %v1029
    %v1753 = vunpack.c.h.b16 %v1029
    %v1754 = vunpack.c.l.b16 %v1030
    %v1755 = vunpack.c.h.b16 %v1030
    %v1756 = vunpack.c.l.b16 %v1031
    %v1757 = vunpack.c.h.b16 %v1031
    %v1758 = vunpack.c.l.b16 %v1032
    %v1759 = vunpack.c.h.b16 %v1032
    %v1760 = vunpack.c.l.b16 %v1033
    %v1761 = vunpack.c.h.b16 %v1033
    %v1762 = vunpack.c.l.b16 %v1034
    %v1763 = vunpack.c.h.b16 %v1034
    %v1764 = vunpack.c.l.b16 %v1035
    %v1765 = vunpack.c.h.b16 %v1035
    %v1766 = vunpack.c.l.b16 %v1036
    %v1767 = vunpack.c.h.b16 %v1036
    %v1768 = vunpack.c.l.b16 %v1037
    %v1769 = vunpack.c.h.b16 %v1037
    %v1770 = vunpack.c.l.b16 %v1038
    %v1771 = vunpack.c.h.b16 %v1038
    %v1772 = vunpack.c.l.b16 %v1039
    %v1773 = vunpack.c.h.b16 %v1039
    %v1774 = vunpack.c.l.b16 %v1040
    %v1775 = vunpack.c.h.b16 %v1040
    %v1776 = vunpack.c.l.b16 %v1041
    %v1777 = vunpack.c.h.b16 %v1041
    %v1778 = vunpack.c.l.b16 %v1042
    %v1779 = vunpack.c.h.b16 %v1042
    %v1780 = vunpack.c.l.b16 %v1043
    %v1781 = vunpack.c.h.b16 %v1043
    %v1782 = vunpack.c.l.b16 %v1044
    %v1783 = vunpack.c.h.b16 %v1044
    %v1784 = vunpack.c.l.b16 %v1045
    %v1785 = vunpack.c.h.b16 %v1045
    %v1786 = vunpack.c.l.b16 %v1046
    %v1787 = vunpack.c.h.b16 %v1046
    %v1788 = vunpack.c.l.b16 %v1047
    %v1789 = vunpack.c.h.b16 %v1047
    %v1790 = vunpack.c.l.b16 %v1048
    %v1791 = vunpack.c.h.b16 %v1048
    %v1792 = vunpack.c.l.b16 %v1049
    %v1793 = vunpack.c.h.b16 %v1049
    %v1794 = vunpack.c.l.b16 %v1050
    %v1795 = vunpack.c.h.b16 %v1050
    %v1796 = vunpack.c.l.b16 %v1051
    %v1797 = vunpack.c.h.b16 %v1051
    %v1798 = vunpack.c.l.b16 %v1052
    %v1799 = vunpack.c.h.b16 %v1052
    %v1800 = vunpack.c.l.b16 %v1053
    %v1801 = vunpack.c.h.b16 %v1053
    %v1802 = vunpack.c.l.b16 %v1054
    %v1803 = vunpack.c.h.b16 %v1054
    %v1804 = vunpack.c.l.b16 %v1055
    %v1805 = vunpack.c.h.b16 %v1055
    %v1806 = vunpack.c.l.b16 %v1056
    %v1807 = vunpack.c.h.b16 %v1056
    %v1808 = vunpack.c.l.b16 %v1057
    %v1809 = vunpack.c.h.b16 %v1057
    %v1810 = vunpack.c.l.b16 %v1058
    %v1811 = vunpack.c.h.b16 %v1058
    %v1812 = vunpack.c.l.b16 %v1059
    %v1813 = vunpack.c.h.b16 %v1059
    %v1814 = vunpack.c.l.b16 %v1060
    %v1815 = vunpack.c.h.b16 %v1060
    %v1816 = vunpack.c.l.b16 %v1061
    %v1817 = vunpack.c.h.b16 %v1061
    %v1818 = vunpack.c.l.b16 %v1062
    %v1819 = vunpack.c.h.b16 %v1062
    %v1820 = vunpack.c.l.b16 %v1063
    %v1821 = vunpack.c.h.b16 %v1063
    %v1822 = vunpack.c.l.b16 %v1064
    %v1823 = vunpack.c.h.b16 %v1064
    %v1824 = vunpack.c.l.b16 %v1065
    %v1825 = vunpack.c.h.b16 %v1065
    %v1826 = vunpack.c.l.b16 %v1066
    %v1827 = vunpack.c.h.b16 %v1066
    %v1828 = vunpack.c.l.b16 %v1067
    %v1829 = vunpack.c.h.b16 %v1067
    %v1830 = vunpack.c.l.b16 %v1068
    %v1831 = vunpack.c.h.b16 %v1068
    %v1832 = vunpack.c.l.b16 %v1069
    %v1833 = vunpack.c.h.b16 %v1069
    %v1834 = vunpack.c.l.b16 %v1070
    %v1835 = vunpack.c.h.b16 %v1070
    %v1836 = vunpack.c.l.b16 %v1071
    %v1837 = vunpack.c.h.b16 %v1071
    %v1838 = vunpack.c.l.b16 %v1072
    %v1839 = vunpack.c.h.b16 %v1072
    %v1840 = vunpack.c.l.b16 %v1073
    %v1841 = vunpack.c.h.b16 %v1073
    %v1842 = vunpack.c.l.b16 %v1074
    %v1843 = vunpack.c.h.b16 %v1074
    %v1844 = vunpack.c.l.b16 %v1075
    %v1845 = vunpack.c.h.b16 %v1075
    %v1846 = vunpack.c.l.b16 %v1076
    %v1847 = vunpack.c.h.b16 %v1076
    %v1848 = vunpack.c.l.b16 %v1077
    %v1849 = vunpack.c.h.b16 %v1077
    %v1850 = vunpack.c.l.b16 %v1078
    %v1851 = vunpack.c.h.b16 %v1078
    %v1852 = vunpack.c.l.b16 %v1079
    %v1853 = vunpack.c.h.b16 %v1079
    %v1854 = vunpack.c.l.b16 %v1080
    %v1855 = vunpack.c.h.b16 %v1080
    %v1856 = vunpack.c.l.b16 %v1081
    %v1857 = vunpack.c.h.b16 %v1081
    %v1858 = vunpack.c.l.b16 %v1082
    %v1859 = vunpack.c.h.b16 %v1082
    %v1860 = vunpack.c.l.b16 %v1083
    %v1861 = vunpack.c.h.b16 %v1083
    %v1862 = vunpack.c.l.b16 %v1084
    %v1863 = vunpack.c.h.b16 %v1084
    %v1864 = vunpack.c.l.b16 %v1085
    %v1865 = vunpack.c.h.b16 %v1085
    %v1866 = vunpack.c.l.b16 %v1086
    %v1867 = vunpack.c.h.b16 %v1086
    %v1868 = vunpack.c.l.b16 %v1087
    %v1869 = vunpack.c.h.b16 %v1087
    %v1870 = vunpack.c.l.b16 %v1088
    %v1871 = vunpack.c.h.b16 %v1088
    %v1872 = vunpack.c.l.b16 %v1089
    %v1873 = vunpack.c.h.b16 %v1089
    %v1874 = vunpack.c.l.b16 %v1090
    %v1875 = vunpack.c.h.b16 %v1090
    %v1876 = vunpack.c.l.b16 %v1091
    %v1877 = vunpack.c.h.b16 %v1091
    %v1878 = vpack.c.b16 %v1374, %v1366
    %v1879 = vpack.c.b16 %v1375, %v1367
    %v1880 = vpack.c.b16 %v1376, %v1368
    %v1881 = vpack.c.b16 %v1377, %v1369
    %v1882 = vpack.c.b16 %v1378, %v1370
    %v1883 = vpack.c.b16 %v1379, %v1371
    %v1884 = vpack.c.b16 %v1380, %v1372
    %v1885 = vpack.c.b16 %v1381, %v1373
    %v1886 = vpack.c.b16 %v1390, %v1382
    %v1887 = vpack.c.b16 %v1391, %v1383
    %v1888 = vpack.c.b16 %v1392, %v1384
    %v1889 = vpack.c.b16 %v1393, %v1385
    %v1890 = vpack.c.b16 %v1394, %v1386
    %v1891 = vpack.c.b16 %v1395, %v1387
    %v1892 = vpack.c.b16 %v1396, %v1388
    %v1893 = vpack.c.b16 %v1397, %v1389
    %v1894 = vpack.c.b16 %v1406, %v1398
    %v1895 = vpack.c.b16 %v1407, %v1399
    %v1896 = vpack.c.b16 %v1408, %v1400
    %v1897 = vpack.c.b16 %v1409, %v1401
    %v1898 = vpack.c.b16 %v1410, %v1402
    %v1899 = vpack.c.b16 %v1411, %v1403
    %v1900 = vpack.c.b16 %v1412, %v1404
    %v1901 = vpack.c.b16 %v1413, %v1405
    %v1902 = vpack.c.b16 %v1422, %v1414
    %v1903 = vpack.c.b16 %v1423, %v1415
    %v1904 = vpack.c.b16 %v1424, %v1416
    %v1905 = vpack.c.b16 %v1425, %v1417
    %v1906 = vpack.c.b16 %v1426, %v1418
    %v1907 = vpack.c.b16 %v1427, %v1419
    %v1908 = vpack.c.b16 %v1428, %v1420
    %v1909 = vpack.c.b16 %v1429, %v1421
    %v1910 = vpack.c.b16 %v1438, %v1430
    %v1911 = vpack.c.b16 %v1439, %v1431
    %v1912 = vpack.c.b16 %v1440, %v1432
    %v1913 = vpack.c.b16 %v1441, %v1433
    %v1914 = vpack.c.b16 %v1442, %v1434
    %v1915 = vpack.c.b16 %v1443, %v1435
    %v1916 = vpack.c.b16 %v1444, %v1436
    %v1917 = vpack.c.b16 %v1445, %v1437
    %v1918 = vpack.c.b16 %v1454, %v1446
    %v1919 = vpack.c.b16 %v1455, %v1447
    %v1920 = vpack.c.b16 %v1456, %v1448
    %v1921 = vpack.c.b16 %v1457, %v1449
    %v1922 = vpack.c.b16 %v1458, %v1450
    %v1923 = vpack.c.b16 %v1459, %v1451
    %v1924 = vpack.c.b16 %v1460, %v1452
    %v1925 = vpack.c.b16 %v1461, %v1453
    %v1926 = vpack.c.b16 %v1470, %v1462
    %v1927 = vpack.c.b16 %v1471, %v1463
    %v1928 = vpack.c.b16 %v1472, %v1464
    %v1929 = vpack.c.b16 %v1473, %v1465
    %v1930 = vpack.c.b16 %v1474, %v1466
    %v1931 = vpack.c.b16 %v1475, %v1467
    %v1932 = vpack.c.b16 %v1476, %v1468
    %v1933 = vpack.c.b16 %v1477, %v1469
    %v1934 = vpack.c.b16 %v1486, %v1478
    %v1935 = vpack.c.b16 %v1487, %v1479
    %v1936 = vpack.c.b16 %v1488, %v1480
    %v1937 = vpack.c.b16 %v1489, %v1481
    %v1938 = vpack.c.b16 %v1490, %v1482
    %v1939 = vpack.c.b16 %v1491, %v1483
    %v1940 = vpack.c.b16 %v1492, %v1484
    %v1941 = vpack.c.b16 %v1493, %v1485
    %v1942 = vpack.c.b16 %v1502, %v1494
    %v1943 = vpack.c.b16 %v1503, %v1495
    %v1944 = vpack.c.b16 %v1504, %v1496
    %v1945 = vpack.c.b16 %v1505, %v1497
    %v1946 = vpack.c.b16 %v1506, %v1498
    %v1947 = vpack.c.b16 %v1507, %v1499
    %v1948 = vpack.c.b16 %v1508, %v1500
    %v1949 = vpack.c.b16 %v1509, %v1501
    %v1950 = vpack.c.b16 %v1518, %v1510
    %v1951 = vpack.c.b16 %v1519, %v1511
    %v1952 = vpack.c.b16 %v1520, %v1512
    %v1953 = vpack.c.b16 %v1521, %v1513
    %v1954 = vpack.c.b16 %v1522, %v1514
    %v1955 = vpack.c.b16 %v1523, %v1515
    %v1956 = vpack.c.b16 %v1524, %v1516
    %v1957 = vpack.c.b16 %v1525, %v1517
    %v1958 = vpack.c.b16 %v1534, %v1526
    %v1959 = vpack.c.b16 %v1535, %v1527
    %v1960 = vpack.c.b16 %v1536, %v1528
    %v1961 = vpack.c.b16 %v1537, %v1529
    %v1962 = vpack.c.b16 %v1538, %v1530
    %v1963 = vpack.c.b16 %v1539, %v1531
    %v1964 = vpack.c.b16 %v1540, %v1532
    %v1965 = vpack.c.b16 %v1541, %v1533
    %v1966 = vpack.c.b16 %v1550, %v1542
    %v1967 = vpack.c.b16 %v1551, %v1543
    %v1968 = vpack.c.b16 %v1552, %v1544
    %v1969 = vpack.c.b16 %v1553, %v1545
    %v1970 = vpack.c.b16 %v1554, %v1546
    %v1971 = vpack.c.b16 %v1555, %v1547
    %v1972 = vpack.c.b16 %v1556, %v1548
    %v1973 = vpack.c.b16 %v1557, %v1549
    %v1974 = vpack.c.b16 %v1566, %v1558
    %v1975 = vpack.c.b16 %v1567, %v1559
    %v1976 = vpack.c.b16 %v1568, %v1560
    %v1977 = vpack.c.b16 %v1569, %v1561
    %v1978 = vpack.c.b16 %v1570, %v1562
    %v1979 = vpack.c.b16 %v1571, %v1563
    %v1980 = vpack.c.b16 %v1572, %v1564
    %v1981 = vpack.c.b16 %v1573, %v1565
    %v1982 = vpack.c.b16 %v1582, %v1574
    %v1983 = vpack.c.b16 %v1583, %v1575
    %v1984 = vpack.c.b16 %v1584, %v1576
    %v1985 = vpack.c.b16 %v1585, %v1577
    %v1986 = vpack.c.b16 %v1586, %v1578
    %v1987 = vpack.c.b16 %v1587, %v1579
    %v1988 = vpack.c.b16 %v1588, %v1580
    %v1989 = vpack.c.b16 %v1589, %v1581
    %v1990 = vpack.c.b16 %v1598, %v1590
    %v1991 = vpack.c.b16 %v1599, %v1591
    %v1992 = vpack.c.b16 %v1600, %v1592
    %v1993 = vpack.c.b16 %v1601, %v1593
    %v1994 = vpack.c.b16 %v1602, %v1594
    %v1995 = vpack.c.b16 %v1603, %v1595
    %v1996 = vpack.c.b16 %v1604, %v1596
    %v1997 = vpack.c.b16 %v1605, %v1597
    %v1998 = vpack.c.b16 %v1614, %v1606
    %v1999 = vpack.c.b16 %v1615, %v1607
    %v2000 = vpack.c.b16 %v1616, %v1608
    %v2001 = vpack.c.b16 %v1617, %v1609
    %v2002 = vpack.c.b16 %v1618, %v1610
    %v2003 = vpack.c.b16 %v1619, %v1611
    %v2004 = vpack.c.b16 %v1620, %v1612
    %v2005 = vpack.c.b16 %v1621, %v1613
    %v2006 = vpack.c.b16 %v1630, %v1622
    %v2007 = vpack.c.b16 %v1631, %v1623
    %v2008 = vpack.c.b16 %v1632, %v1624
    %v2009 = vpack.c.b16 %v1633, %v1625
    %v2010 = vpack.c.b16 %v1634, %v1626
    %v2011 = vpack.c.b16 %v1635, %v1627
    %v2012 = vpack.c.b16 %v1636, %v1628
    %v2013 = vpack.c.b16 %v1637, %v1629
    %v2014 = vpack.c.b16 %v1646, %v1638
    %v2015 = vpack.c.b16 %v1647, %v1639
    %v2016 = vpack.c.b16 %v1648, %v1640
    %v2017 = vpack.c.b16 %v1649, %v1641
    %v2018 = vpack.c.b16 %v1650, %v1642
    %v2019 = vpack.c.b16 %v1651, %v1643
    %v2020 = vpack.c.b16 %v1652, %v1644
    %v2021 = vpack.c.b16 %v1653, %v1645
    %v2022 = vpack.c.b16 %v1662, %v1654
    %v2023 = vpack.c.b16 %v1663, %v1655
    %v2024 = vpack.c.b16 %v1664, %v1656
    %v2025 = vpack.c.b16 %v1665, %v1657
    %v2026 = vpack.c.b16 %v1666, %v1658
    %v2027 = vpack.c.b16 %v1667, %v1659
    %v2028 = vpack.c.b16 %v1668, %v1660
    %v2029 = vpack.c.b16 %v1669, %v1661
    %v2030 = vpack.c.b16 %v1678, %v1670
    %v2031 = vpack.c.b16 %v1679, %v1671
    %v2032 = vpack.c.b16 %v1680, %v1672
    %v2033 = vpack.c.b16 %v1681, %v1673
    %v2034 = vpack.c.b16 %v1682, %v1674
    %v2035 = vpack.c.b16 %v1683, %v1675
    %v2036 = vpack.c.b16 %v1684, %v1676
    %v2037 = vpack.c.b16 %v1685, %v1677
    %v2038 = vpack.c.b16 %v1694, %v1686
    %v2039 = vpack.c.b16 %v1695, %v1687
    %v2040 = vpack.c.b16 %v1696, %v1688
    %v2041 = vpack.c.b16 %v1697, %v1689
    %v2042 = vpack.c.b16 %v1698, %v1690
    %v2043 = vpack.c.b16 %v1699, %v1691
    %v2044 = vpack.c.b16 %v1700, %v1692
    %v2045 = vpack.c.b16 %v1701, %v1693
    %v2046 = vpack.c.b16 %v1710, %v1702
    %v2047 = vpack.c.b16 %v1711, %v1703
    %v2048 = vpack.c.b16 %v1712, %v1704
    %v2049 = vpack.c.b16 %v1713, %v1705
    %v2050 = vpack.c.b16 %v1714, %v1706
    %v2051 = vpack.c.b16 %v1715, %v1707
    %v2052 = vpack.c.b16 %v1716, %v1708
    %v2053 = vpack.c.b16 %v1717, %v1709
    %v2054 = vpack.c.b16 %v1726, %v1718
    %v2055 = vpack.c.b16 %v1727, %v1719
    %v2056 = vpack.c.b16 %v1728, %v1720
    %v2057 = vpack.c.b16 %v1729, %v1721
    %v2058 = vpack.c.b16 %v1730, %v1722
    %v2059 = vpack.c.b16 %v1731, %v1723
    %v2060 = vpack.c.b16 %v1732, %v1724
    %v2061 = vpack.c.b16 %v1733, %v1725
    %v2062 = vpack.c.b16 %v1742, %v1734
    %v2063 = vpack.c.b16 %v1743, %v1735
    %v2064 = vpack.c.b16 %v1744, %v1736
    %v2065 = vpack.c.b16 %v1745, %v1737
    %v2066 = vpack.c.b16 %v1746, %v1738
    %v2067 = vpack.c.b16 %v1747, %v1739
    %v2068 = vpack.c.b16 %v1748, %v1740
    %v2069 = vpack.c.b16 %v1749, %v1741
    %v2070 = vpack.c.b16 %v1758, %v1750
    %v2071 = vpack.c.b16 %v1759, %v1751
    %v2072 = vpack.c.b16 %v1760, %v1752
    %v2073 = vpack.c.b16 %v1761, %v1753
    %v2074 = vpack.c.b16 %v1762, %v1754
    %v2075 = vpack.c.b16 %v1763, %v1755
    %v2076 = vpack.c.b16 %v1764, %v1756
    %v2077 = vpack.c.b16 %v1765, %v1757
    %v2078 = vpack.c.b16 %v1774, %v1766
    %v2079 = vpack.c.b16 %v1775, %v1767
    %v2080 = vpack.c.b16 %v1776, %v1768
    %v2081 = vpack.c.b16 %v1777, %v1769
    %v2082 = vpack.c.b16 %v1778, %v1770
    %v2083 = vpack.c.b16 %v1779, %v1771
    %v2084 = vpack.c.b16 %v1780, %v1772
    %v2085 = vpack.c.b16 %v1781, %v1773
    %v2086 = vpack.c.b16 %v1790, %v1782
    %v2087 = vpack.c.b16 %v1791, %v1783
    %v2088 = vpack.c.b16 %v1792, %v1784
    %v2089 = vpack.c.b16 %v1793, %v1785
    %v2090 = vpack.c.b16 %v1794, %v1786
    %v2091 = vpack.c.b16 %v1795, %v1787
    %v2092 = vpack.c.b16 %v1796, %v1788
    %v2093 = vpack.c.b16 %v1797, %v1789
    %v2094 = vpack.c.b16 %v1806, %v1798
    %v2095 = vpack.c.b16 %v1807, %v1799
    %v2096 = vpack.c.b16 %v1808, %v1800
    %v2097 = vpack.c.b16 %v1809, %v1801
    %v2098 = vpack.c.b16 %v1810, %v1802
    %v2099 = vpack.c.b16 %v1811, %v1803
    %v2100 = vpack.c.b16 %v1812, %v1804
    %v2101 = vpack.c.b16 %v1813, %v1805
    %v2102 = vpack.c.b16 %v1822, %v1814
    %v2103 = vpack.c.b16 %v1823, %v1815
    %v2104 = vpack.c.b16 %v1824, %v1816
    %v2105 = vpack.c.b16 %v1825, %v1817
    %v2106 = vpack.c.b16 %v1826, %v1818
    %v2107 = vpack.c.b16 %v1827, %v1819
    %v2108 = vpack.c.b16 %v1828, %v1820
    %v2109 = vpack.c.b16 %v1829, %v1821
    %v2110 = vpack.c.b16 %v1838, %v1830
    %v2111 = vpack.c.b16 %v1839, %v1831
    %v2112 = vpack.c.b16 %v1840, %v1832
    %v2113 = vpack.c.b16 %v1841, %v1833
    %v2114 = vpack.c.b16 %v1842, %v1834
    %v2115 = vpack.c.b16 %v1843, %v1835
    %v2116 = vpack.c.b16 %v1844, %v1836
    %v2117 = vpack.c.b16 %v1845, %v1837
    %v2118 = vpack.c.b16 %v1854, %v1846
    %v2119 = vpack.c.b16 %v1855, %v1847
    %v2120 = vpack.c.b16 %v1856, %v1848
    %v2121 = vpack.c.b16 %v1857, %v1849
    %v2122 = vpack.c.b16 %v1858, %v1850
    %v2123 = vpack.c.b16 %v1859, %v1851
    %v2124 = vpack.c.b16 %v1860, %v1852
    %v2125 = vpack.c.b16 %v1861, %v1853
    %v2126 = vpack.c.b16 %v1870, %v1862
    %v2127 = vpack.c.b16 %v1871, %v1863
    %v2128 = vpack.c.b16 %v1872, %v1864
    %v2129 = vpack.c.b16 %v1873, %v1865
    %v2130 = vpack.c.b16 %v1874, %v1866
    %v2131 = vpack.c.b16 %v1875, %v1867
    %v2132 = vpack.c.b16 %v1876, %v1868
    %v2133 = vpack.c.b16 %v1877, %v1869
    %2390 = vmatpush.bf16.msra.mxu0 %v1934
    %2391 = vmatpush.bf16.msra.mxu0 %v1926
    %2392 = vmatpush.bf16.msra.mxu0 %v1918
    %2393 = vmatpush.bf16.msra.mxu0 %v1910
    %2394 = vmatpush.bf16.msra.mxu0 %v1902
    %2395 = vmatpush.bf16.msra.mxu0 %v1894
    %2396 = vmatpush.bf16.msra.mxu0 %v1886
    %2397 = vmatpush.bf16.msra.mxu0 %v1878
    %2398 = vmatmul.bf16.gmra.mxu0 %v828
    %v2399 = vpop.f32.mrf.mxu0
    %v2400 = vadd.f32 %v1094, %v2399
    %v2401 = vpop.f32.mrf.mxu0
    %v2402 = vadd.f32 %v1094, %v2401
    %2403 = vdwg.mxu0
    %2404 = vmatpush.bf16.msra.mxu0 %v1998
    %2405 = vmatpush.bf16.msra.mxu0 %v1990
    %2406 = vmatpush.bf16.msra.mxu0 %v1982
    %2407 = vmatpush.bf16.msra.mxu0 %v1974
    %2408 = vmatpush.bf16.msra.mxu0 %v1966
    %2409 = vmatpush.bf16.msra.mxu0 %v1958
    %2410 = vmatpush.bf16.msra.mxu0 %v1950
    %2411 = vmatpush.bf16.msra.mxu0 %v1942
    %2412 = vmatmul.bf16.gmra.mxu0 %v829
    %v2413 = vpop.f32.mrf.mxu0
    %v2414 = vadd.f32 %v2400, %v2413
    %v2415 = vpop.f32.mrf.mxu0
    %v2416 = vadd.f32 %v2402, %v2415
    %2417 = vdwg.mxu0
    %2418 = vmatpush.bf16.msra.mxu0 %v2062
    %2419 = vmatpush.bf16.msra.mxu0 %v2054
    %2420 = vmatpush.bf16.msra.mxu0 %v2046
    %2421 = vmatpush.bf16.msra.mxu0 %v2038
    %2422 = vmatpush.bf16.msra.mxu0 %v2030
    %2423 = vmatpush.bf16.msra.mxu0 %v2022
    %2424 = vmatpush.bf16.msra.mxu0 %v2014
    %2425 = vmatpush.bf16.msra.mxu0 %v2006
    %2426 = vmatmul.bf16.gmra.mxu0 %v830
    %v2427 = vpop.f32.mrf.mxu0
    %v2428 = vadd.f32 %v2414, %v2427
    %v2429 = vpop.f32.mrf.mxu0
    %v2430 = vadd.f32 %v2416, %v2429
    %2431 = vdwg.mxu0
    %2432 = vmatpush.bf16.msra.mxu0 %v2126
    %2433 = vmatpush.bf16.msra.mxu0 %v2118
    %2434 = vmatpush.bf16.msra.mxu0 %v2110
    %2435 = vmatpush.bf16.msra.mxu0 %v2102
    %2436 = vmatpush.bf16.msra.mxu0 %v2094
    %2437 = vmatpush.bf16.msra.mxu0 %v2086
    %2438 = vmatpush.bf16.msra.mxu0 %v2078
    %2439 = vmatpush.bf16.msra.mxu0 %v2070
    %2440 = vmatmul.bf16.gmra.mxu0 %v831
    %v2441 = vpop.f32.mrf.mxu0
    %v2442 = vadd.f32 %v2428, %v2441
    %v2443 = vpop.f32.mrf.mxu0
    %v2444 = vadd.f32 %v2430, %v2443
    %2445 = vdwg.mxu0
    %2446 = vmatpush.bf16.msra.mxu0 %v1935
    %2447 = vmatpush.bf16.msra.mxu0 %v1927
    %2448 = vmatpush.bf16.msra.mxu0 %v1919
    %2449 = vmatpush.bf16.msra.mxu0 %v1911
    %2450 = vmatpush.bf16.msra.mxu0 %v1903
    %2451 = vmatpush.bf16.msra.mxu0 %v1895
    %2452 = vmatpush.bf16.msra.mxu0 %v1887
    %2453 = vmatpush.bf16.msra.mxu0 %v1879
    %2454 = vmatmul.bf16.gmra.mxu0 %v828
    %v2455 = vpop.f32.mrf.mxu0
    %v2456 = vadd.f32 %v1095, %v2455
    %v2457 = vpop.f32.mrf.mxu0
    %v2458 = vadd.f32 %v1095, %v2457
    %2459 = vdwg.mxu0
    %2460 = vmatpush.bf16.msra.mxu0 %v1999
    %2461 = vmatpush.bf16.msra.mxu0 %v1991
    %2462 = vmatpush.bf16.msra.mxu0 %v1983
    %2463 = vmatpush.bf16.msra.mxu0 %v1975
    %2464 = vmatpush.bf16.msra.mxu0 %v1967
    %2465 = vmatpush.bf16.msra.mxu0 %v1959
    %2466 = vmatpush.bf16.msra.mxu0 %v1951
    %2467 = vmatpush.bf16.msra.mxu0 %v1943
    %2468 = vmatmul.bf16.gmra.mxu0 %v829
    %v2469 = vpop.f32.mrf.mxu0
    %v2470 = vadd.f32 %v2456, %v2469
    %v2471 = vpop.f32.mrf.mxu0
    %v2472 = vadd.f32 %v2458, %v2471
    %2473 = vdwg.mxu0
    %2474 = vmatpush.bf16.msra.mxu0 %v2063
    %2475 = vmatpush.bf16.msra.mxu0 %v2055
    %2476 = vmatpush.bf16.msra.mxu0 %v2047
    %2477 = vmatpush.bf16.msra.mxu0 %v2039
    %2478 = vmatpush.bf16.msra.mxu0 %v2031
    %2479 = vmatpush.bf16.msra.mxu0 %v2023
    %2480 = vmatpush.bf16.msra.mxu0 %v2015
    %2481 = vmatpush.bf16.msra.mxu0 %v2007
    %2482 = vmatmul.bf16.gmra.mxu0 %v830
    %v2483 = vpop.f32.mrf.mxu0
    %v2484 = vadd.f32 %v2470, %v2483
    %v2485 = vpop.f32.mrf.mxu0
    %v2486 = vadd.f32 %v2472, %v2485
    %2487 = vdwg.mxu0
    %2488 = vmatpush.bf16.msra.mxu0 %v2127
    %2489 = vmatpush.bf16.msra.mxu0 %v2119
    %2490 = vmatpush.bf16.msra.mxu0 %v2111
    %2491 = vmatpush.bf16.msra.mxu0 %v2103
    %2492 = vmatpush.bf16.msra.mxu0 %v2095
    %2493 = vmatpush.bf16.msra.mxu0 %v2087
    %2494 = vmatpush.bf16.msra.mxu0 %v2079
    %2495 = vmatpush.bf16.msra.mxu0 %v2071
    %2496 = vmatmul.bf16.gmra.mxu0 %v831
    %v2497 = vpop.f32.mrf.mxu0
    %v2498 = vadd.f32 %v2484, %v2497
    %v2499 = vpop.f32.mrf.mxu0
    %v2500 = vadd.f32 %v2486, %v2499
    %2501 = vdwg.mxu0
    %2502 = vmatpush.bf16.msra.mxu0 %v1936
    %2503 = vmatpush.bf16.msra.mxu0 %v1928
    %2504 = vmatpush.bf16.msra.mxu0 %v1920
    %2505 = vmatpush.bf16.msra.mxu0 %v1912
    %2506 = vmatpush.bf16.msra.mxu0 %v1904
    %2507 = vmatpush.bf16.msra.mxu0 %v1896
    %2508 = vmatpush.bf16.msra.mxu0 %v1888
    %2509 = vmatpush.bf16.msra.mxu0 %v1880
    %2510 = vmatmul.bf16.gmra.mxu0 %v828
    %v2511 = vpop.f32.mrf.mxu0
    %v2512 = vadd.f32 %v1096, %v2511
    %v2513 = vpop.f32.mrf.mxu0
    %v2514 = vadd.f32 %v1096, %v2513
    %2515 = vdwg.mxu0
    %2516 = vmatpush.bf16.msra.mxu0 %v2000
    %2517 = vmatpush.bf16.msra.mxu0 %v1992
    %2518 = vmatpush.bf16.msra.mxu0 %v1984
    %2519 = vmatpush.bf16.msra.mxu0 %v1976
    %2520 = vmatpush.bf16.msra.mxu0 %v1968
    %2521 = vmatpush.bf16.msra.mxu0 %v1960
    %2522 = vmatpush.bf16.msra.mxu0 %v1952
    %2523 = vmatpush.bf16.msra.mxu0 %v1944
    %2524 = vmatmul.bf16.gmra.mxu0 %v829
    %v2525 = vpop.f32.mrf.mxu0
    %v2526 = vadd.f32 %v2512, %v2525
    %v2527 = vpop.f32.mrf.mxu0
    %v2528 = vadd.f32 %v2514, %v2527
    %2529 = vdwg.mxu0
    %2530 = vmatpush.bf16.msra.mxu0 %v2064
    %2531 = vmatpush.bf16.msra.mxu0 %v2056
    %2532 = vmatpush.bf16.msra.mxu0 %v2048
    %2533 = vmatpush.bf16.msra.mxu0 %v2040
    %2534 = vmatpush.bf16.msra.mxu0 %v2032
    %2535 = vmatpush.bf16.msra.mxu0 %v2024
    %2536 = vmatpush.bf16.msra.mxu0 %v2016
    %2537 = vmatpush.bf16.msra.mxu0 %v2008
    %2538 = vmatmul.bf16.gmra.mxu0 %v830
    %v2539 = vpop.f32.mrf.mxu0
    %v2540 = vadd.f32 %v2526, %v2539
    %v2541 = vpop.f32.mrf.mxu0
    %v2542 = vadd.f32 %v2528, %v2541
    %2543 = vdwg.mxu0
    %2544 = vmatpush.bf16.msra.mxu0 %v2128
    %2545 = vmatpush.bf16.msra.mxu0 %v2120
    %2546 = vmatpush.bf16.msra.mxu0 %v2112
    %2547 = vmatpush.bf16.msra.mxu0 %v2104
    %2548 = vmatpush.bf16.msra.mxu0 %v2096
    %2549 = vmatpush.bf16.msra.mxu0 %v2088
    %2550 = vmatpush.bf16.msra.mxu0 %v2080
    %2551 = vmatpush.bf16.msra.mxu0 %v2072
    %2552 = vmatmul.bf16.gmra.mxu0 %v831
    %v2553 = vpop.f32.mrf.mxu0
    %v2554 = vadd.f32 %v2540, %v2553
    %v2555 = vpop.f32.mrf.mxu0
    %v2556 = vadd.f32 %v2542, %v2555
    %2557 = vdwg.mxu0
    %2558 = vmatpush.bf16.msra.mxu0 %v1937
    %2559 = vmatpush.bf16.msra.mxu0 %v1929
    %2560 = vmatpush.bf16.msra.mxu0 %v1921
    %2561 = vmatpush.bf16.msra.mxu0 %v1913
    %2562 = vmatpush.bf16.msra.mxu0 %v1905
    %2563 = vmatpush.bf16.msra.mxu0 %v1897
    %2564 = vmatpush.bf16.msra.mxu0 %v1889
    %2565 = vmatpush.bf16.msra.mxu0 %v1881
    %2566 = vmatmul.bf16.gmra.mxu0 %v828
    %v2567 = vpop.f32.mrf.mxu0
    %v2568 = vadd.f32 %v1097, %v2567
    %v2569 = vpop.f32.mrf.mxu0
    %v2570 = vadd.f32 %v1097, %v2569
    %2571 = vdwg.mxu0
    %2572 = vmatpush.bf16.msra.mxu0 %v2001
    %2573 = vmatpush.bf16.msra.mxu0 %v1993
    %2574 = vmatpush.bf16.msra.mxu0 %v1985
    %2575 = vmatpush.bf16.msra.mxu0 %v1977
    %2576 = vmatpush.bf16.msra.mxu0 %v1969
    %2577 = vmatpush.bf16.msra.mxu0 %v1961
    %2578 = vmatpush.bf16.msra.mxu0 %v1953
    %2579 = vmatpush.bf16.msra.mxu0 %v1945
    %2580 = vmatmul.bf16.gmra.mxu0 %v829
    %v2581 = vpop.f32.mrf.mxu0
    %v2582 = vadd.f32 %v2568, %v2581
    %v2583 = vpop.f32.mrf.mxu0
    %v2584 = vadd.f32 %v2570, %v2583
    %2585 = vdwg.mxu0
    %2586 = vmatpush.bf16.msra.mxu0 %v2065
    %2587 = vmatpush.bf16.msra.mxu0 %v2057
    %2588 = vmatpush.bf16.msra.mxu0 %v2049
    %2589 = vmatpush.bf16.msra.mxu0 %v2041
    %2590 = vmatpush.bf16.msra.mxu0 %v2033
    %2591 = vmatpush.bf16.msra.mxu0 %v2025
    %2592 = vmatpush.bf16.msra.mxu0 %v2017
    %2593 = vmatpush.bf16.msra.mxu0 %v2009
    %2594 = vmatmul.bf16.gmra.mxu0 %v830
    %v2595 = vpop.f32.mrf.mxu0
    %v2596 = vadd.f32 %v2582, %v2595
    %v2597 = vpop.f32.mrf.mxu0
    %v2598 = vadd.f32 %v2584, %v2597
    %2599 = vdwg.mxu0
    %2600 = vmatpush.bf16.msra.mxu0 %v2129
    %2601 = vmatpush.bf16.msra.mxu0 %v2121
    %2602 = vmatpush.bf16.msra.mxu0 %v2113
    %2603 = vmatpush.bf16.msra.mxu0 %v2105
    %2604 = vmatpush.bf16.msra.mxu0 %v2097
    %2605 = vmatpush.bf16.msra.mxu0 %v2089
    %2606 = vmatpush.bf16.msra.mxu0 %v2081
    %2607 = vmatpush.bf16.msra.mxu0 %v2073
    %2608 = vmatmul.bf16.gmra.mxu0 %v831
    %v2609 = vpop.f32.mrf.mxu0
    %v2610 = vadd.f32 %v2596, %v2609
    %v2611 = vpop.f32.mrf.mxu0
    %v2612 = vadd.f32 %v2598, %v2611
    %2613 = vdwg.mxu0
    %2614 = vmatpush.bf16.msra.mxu0 %v1938
    %2615 = vmatpush.bf16.msra.mxu0 %v1930
    %2616 = vmatpush.bf16.msra.mxu0 %v1922
    %2617 = vmatpush.bf16.msra.mxu0 %v1914
    %2618 = vmatpush.bf16.msra.mxu0 %v1906
    %2619 = vmatpush.bf16.msra.mxu0 %v1898
    %2620 = vmatpush.bf16.msra.mxu0 %v1890
    %2621 = vmatpush.bf16.msra.mxu0 %v1882
    %2622 = vmatmul.bf16.gmra.mxu0 %v828
    %v2623 = vpop.f32.mrf.mxu0
    %v2624 = vadd.f32 %v1098, %v2623
    %v2625 = vpop.f32.mrf.mxu0
    %v2626 = vadd.f32 %v1098, %v2625
    %2627 = vdwg.mxu0
    %2628 = vmatpush.bf16.msra.mxu0 %v2002
    %2629 = vmatpush.bf16.msra.mxu0 %v1994
    %2630 = vmatpush.bf16.msra.mxu0 %v1986
    %2631 = vmatpush.bf16.msra.mxu0 %v1978
    %2632 = vmatpush.bf16.msra.mxu0 %v1970
    %2633 = vmatpush.bf16.msra.mxu0 %v1962
    %2634 = vmatpush.bf16.msra.mxu0 %v1954
    %2635 = vmatpush.bf16.msra.mxu0 %v1946
    %2636 = vmatmul.bf16.gmra.mxu0 %v829
    %v2637 = vpop.f32.mrf.mxu0
    %v2638 = vadd.f32 %v2624, %v2637
    %v2639 = vpop.f32.mrf.mxu0
    %v2640 = vadd.f32 %v2626, %v2639
    %2641 = vdwg.mxu0
    %2642 = vmatpush.bf16.msra.mxu0 %v2066
    %2643 = vmatpush.bf16.msra.mxu0 %v2058
    %2644 = vmatpush.bf16.msra.mxu0 %v2050
    %2645 = vmatpush.bf16.msra.mxu0 %v2042
    %2646 = vmatpush.bf16.msra.mxu0 %v2034
    %2647 = vmatpush.bf16.msra.mxu0 %v2026
    %2648 = vmatpush.bf16.msra.mxu0 %v2018
    %2649 = vmatpush.bf16.msra.mxu0 %v2010
    %2650 = vmatmul.bf16.gmra.mxu0 %v830
    %v2651 = vpop.f32.mrf.mxu0
    %v2652 = vadd.f32 %v2638, %v2651
    %v2653 = vpop.f32.mrf.mxu0
    %v2654 = vadd.f32 %v2640, %v2653
    %2655 = vdwg.mxu0
    %2656 = vmatpush.bf16.msra.mxu0 %v2130
    %2657 = vmatpush.bf16.msra.mxu0 %v2122
    %2658 = vmatpush.bf16.msra.mxu0 %v2114
    %2659 = vmatpush.bf16.msra.mxu0 %v2106
    %2660 = vmatpush.bf16.msra.mxu0 %v2098
    %2661 = vmatpush.bf16.msra.mxu0 %v2090
    %2662 = vmatpush.bf16.msra.mxu0 %v2082
    %2663 = vmatpush.bf16.msra.mxu0 %v2074
    %2664 = vmatmul.bf16.gmra.mxu0 %v831
    %v2665 = vpop.f32.mrf.mxu0
    %v2666 = vadd.f32 %v2652, %v2665
    %v2667 = vpop.f32.mrf.mxu0
    %v2668 = vadd.f32 %v2654, %v2667
    %2669 = vdwg.mxu0
    %2670 = vmatpush.bf16.msra.mxu0 %v1939
    %2671 = vmatpush.bf16.msra.mxu0 %v1931
    %2672 = vmatpush.bf16.msra.mxu0 %v1923
    %2673 = vmatpush.bf16.msra.mxu0 %v1915
    %2674 = vmatpush.bf16.msra.mxu0 %v1907
    %2675 = vmatpush.bf16.msra.mxu0 %v1899
    %2676 = vmatpush.bf16.msra.mxu0 %v1891
    %2677 = vmatpush.bf16.msra.mxu0 %v1883
    %2678 = vmatmul.bf16.gmra.mxu0 %v828
    %v2679 = vpop.f32.mrf.mxu0
    %v2680 = vadd.f32 %v1099, %v2679
    %v2681 = vpop.f32.mrf.mxu0
    %v2682 = vadd.f32 %v1099, %v2681
    %2683 = vdwg.mxu0
    %2684 = vmatpush.bf16.msra.mxu0 %v2003
    %2685 = vmatpush.bf16.msra.mxu0 %v1995
    %2686 = vmatpush.bf16.msra.mxu0 %v1987
    %2687 = vmatpush.bf16.msra.mxu0 %v1979
    %2688 = vmatpush.bf16.msra.mxu0 %v1971
    %2689 = vmatpush.bf16.msra.mxu0 %v1963
    %2690 = vmatpush.bf16.msra.mxu0 %v1955
    %2691 = vmatpush.bf16.msra.mxu0 %v1947
    %2692 = vmatmul.bf16.gmra.mxu0 %v829
    %v2693 = vpop.f32.mrf.mxu0
    %v2694 = vadd.f32 %v2680, %v2693
    %v2695 = vpop.f32.mrf.mxu0
    %v2696 = vadd.f32 %v2682, %v2695
    %2697 = vdwg.mxu0
    %2698 = vmatpush.bf16.msra.mxu0 %v2067
    %2699 = vmatpush.bf16.msra.mxu0 %v2059
    %2700 = vmatpush.bf16.msra.mxu0 %v2051
    %2701 = vmatpush.bf16.msra.mxu0 %v2043
    %2702 = vmatpush.bf16.msra.mxu0 %v2035
    %2703 = vmatpush.bf16.msra.mxu0 %v2027
    %2704 = vmatpush.bf16.msra.mxu0 %v2019
    %2705 = vmatpush.bf16.msra.mxu0 %v2011
    %2706 = vmatmul.bf16.gmra.mxu0 %v830
    %v2707 = vpop.f32.mrf.mxu0
    %v2708 = vadd.f32 %v2694, %v2707
    %v2709 = vpop.f32.mrf.mxu0
    %v2710 = vadd.f32 %v2696, %v2709
    %2711 = vdwg.mxu0
    %2712 = vmatpush.bf16.msra.mxu0 %v2131
    %2713 = vmatpush.bf16.msra.mxu0 %v2123
    %2714 = vmatpush.bf16.msra.mxu0 %v2115
    %2715 = vmatpush.bf16.msra.mxu0 %v2107
    %2716 = vmatpush.bf16.msra.mxu0 %v2099
    %2717 = vmatpush.bf16.msra.mxu0 %v2091
    %2718 = vmatpush.bf16.msra.mxu0 %v2083
    %2719 = vmatpush.bf16.msra.mxu0 %v2075
    %2720 = vmatmul.bf16.gmra.mxu0 %v831
    %v2721 = vpop.f32.mrf.mxu0
    %v2722 = vadd.f32 %v2708, %v2721
    %v2723 = vpop.f32.mrf.mxu0
    %v2724 = vadd.f32 %v2710, %v2723
    %2725 = vdwg.mxu0
    %2726 = vmatpush.bf16.msra.mxu0 %v1940
    %2727 = vmatpush.bf16.msra.mxu0 %v1932
    %2728 = vmatpush.bf16.msra.mxu0 %v1924
    %2729 = vmatpush.bf16.msra.mxu0 %v1916
    %2730 = vmatpush.bf16.msra.mxu0 %v1908
    %2731 = vmatpush.bf16.msra.mxu0 %v1900
    %2732 = vmatpush.bf16.msra.mxu0 %v1892
    %2733 = vmatpush.bf16.msra.mxu0 %v1884
    %2734 = vmatmul.bf16.gmra.mxu0 %v828
    %v2735 = vpop.f32.mrf.mxu0
    %v2736 = vadd.f32 %v1100, %v2735
    %v2737 = vpop.f32.mrf.mxu0
    %v2738 = vadd.f32 %v1100, %v2737
    %2739 = vdwg.mxu0
    %2740 = vmatpush.bf16.msra.mxu0 %v2004
    %2741 = vmatpush.bf16.msra.mxu0 %v1996
    %2742 = vmatpush.bf16.msra.mxu0 %v1988
    %2743 = vmatpush.bf16.msra.mxu0 %v1980
    %2744 = vmatpush.bf16.msra.mxu0 %v1972
    %2745 = vmatpush.bf16.msra.mxu0 %v1964
    %2746 = vmatpush.bf16.msra.mxu0 %v1956
    %2747 = vmatpush.bf16.msra.mxu0 %v1948
    %2748 = vmatmul.bf16.gmra.mxu0 %v829
    %v2749 = vpop.f32.mrf.mxu0
    %v2750 = vadd.f32 %v2736, %v2749
    %v2751 = vpop.f32.mrf.mxu0
    %v2752 = vadd.f32 %v2738, %v2751
    %2753 = vdwg.mxu0
    %2754 = vmatpush.bf16.msra.mxu0 %v2068
    %2755 = vmatpush.bf16.msra.mxu0 %v2060
    %2756 = vmatpush.bf16.msra.mxu0 %v2052
    %2757 = vmatpush.bf16.msra.mxu0 %v2044
    %2758 = vmatpush.bf16.msra.mxu0 %v2036
    %2759 = vmatpush.bf16.msra.mxu0 %v2028
    %2760 = vmatpush.bf16.msra.mxu0 %v2020
    %2761 = vmatpush.bf16.msra.mxu0 %v2012
    %2762 = vmatmul.bf16.gmra.mxu0 %v830
    %v2763 = vpop.f32.mrf.mxu0
    %v2764 = vadd.f32 %v2750, %v2763
    %v2765 = vpop.f32.mrf.mxu0
    %v2766 = vadd.f32 %v2752, %v2765
    %2767 = vdwg.mxu0
    %2768 = vmatpush.bf16.msra.mxu0 %v2132
    %2769 = vmatpush.bf16.msra.mxu0 %v2124
    %2770 = vmatpush.bf16.msra.mxu0 %v2116
    %2771 = vmatpush.bf16.msra.mxu0 %v2108
    %2772 = vmatpush.bf16.msra.mxu0 %v2100
    %2773 = vmatpush.bf16.msra.mxu0 %v2092
    %2774 = vmatpush.bf16.msra.mxu0 %v2084
    %2775 = vmatpush.bf16.msra.mxu0 %v2076
    %2776 = vmatmul.bf16.gmra.mxu0 %v831
    %v2777 = vpop.f32.mrf.mxu0
    %v2778 = vadd.f32 %v2764, %v2777
    %v2779 = vpop.f32.mrf.mxu0
    %v2780 = vadd.f32 %v2766, %v2779
    %2781 = vdwg.mxu0
    %2782 = vmatpush.bf16.msra.mxu0 %v1941
    %2783 = vmatpush.bf16.msra.mxu0 %v1933
    %2784 = vmatpush.bf16.msra.mxu0 %v1925
    %2785 = vmatpush.bf16.msra.mxu0 %v1917
    %2786 = vmatpush.bf16.msra.mxu0 %v1909
    %2787 = vmatpush.bf16.msra.mxu0 %v1901
    %2788 = vmatpush.bf16.msra.mxu0 %v1893
    %2789 = vmatpush.bf16.msra.mxu0 %v1885
    %2790 = vmatmul.bf16.gmra.mxu0 %v828
    %v2791 = vpop.f32.mrf.mxu0
    %v2792 = vadd.f32 %v1101, %v2791
    %v2793 = vpop.f32.mrf.mxu0
    %v2794 = vadd.f32 %v1101, %v2793
    %2795 = vdwg.mxu0
    %2796 = vmatpush.bf16.msra.mxu0 %v2005
    %2797 = vmatpush.bf16.msra.mxu0 %v1997
    %2798 = vmatpush.bf16.msra.mxu0 %v1989
    %2799 = vmatpush.bf16.msra.mxu0 %v1981
    %2800 = vmatpush.bf16.msra.mxu0 %v1973
    %2801 = vmatpush.bf16.msra.mxu0 %v1965
    %2802 = vmatpush.bf16.msra.mxu0 %v1957
    %2803 = vmatpush.bf16.msra.mxu0 %v1949
    %2804 = vmatmul.bf16.gmra.mxu0 %v829
    %v2805 = vpop.f32.mrf.mxu0
    %v2806 = vadd.f32 %v2792, %v2805
    %v2807 = vpop.f32.mrf.mxu0
    %v2808 = vadd.f32 %v2794, %v2807
    %2809 = vdwg.mxu0
    %2810 = vmatpush.bf16.msra.mxu0 %v2069
    %2811 = vmatpush.bf16.msra.mxu0 %v2061
    %2812 = vmatpush.bf16.msra.mxu0 %v2053
    %2813 = vmatpush.bf16.msra.mxu0 %v2045
    %2814 = vmatpush.bf16.msra.mxu0 %v2037
    %2815 = vmatpush.bf16.msra.mxu0 %v2029
    %2816 = vmatpush.bf16.msra.mxu0 %v2021
    %2817 = vmatpush.bf16.msra.mxu0 %v2013
    %2818 = vmatmul.bf16.gmra.mxu0 %v830
    %v2819 = vpop.f32.mrf.mxu0
    %v2820 = vadd.f32 %v2806, %v2819
    %v2821 = vpop.f32.mrf.mxu0
    %v2822 = vadd.f32 %v2808, %v2821
    %2823 = vdwg.mxu0
    %2824 = vmatpush.bf16.msra.mxu0 %v2133
    %2825 = vmatpush.bf16.msra.mxu0 %v2125
    %2826 = vmatpush.bf16.msra.mxu0 %v2117
    %2827 = vmatpush.bf16.msra.mxu0 %v2109
    %2828 = vmatpush.bf16.msra.mxu0 %v2101
    %2829 = vmatpush.bf16.msra.mxu0 %v2093
    %2830 = vmatpush.bf16.msra.mxu0 %v2085
    %2831 = vmatpush.bf16.msra.mxu0 %v2077
    %2832 = vmatmul.bf16.gmra.mxu0 %v831
    %v2833 = vpop.f32.mrf.mxu0
    %v2834 = vadd.f32 %v2820, %v2833
    %v2835 = vpop.f32.mrf.mxu0
    %v2836 = vadd.f32 %v2822, %v2835
    %2837 = vdwg.mxu0
    %v2838 = vmul.f32 %v2442, 0.2
    %v2839 = vmul.f32 %v2498, 0.2
    %v2840 = vmul.f32 %v2554, 0.2
    %v2841 = vmul.f32 %v2610, 0.2
    %v2842 = vmul.f32 %v2666, 0.2
    %v2843 = vmul.f32 %v2722, 0.2
    %v2844 = vmul.f32 %v2778, 0.2
    %v2845 = vmul.f32 %v2834, 0.2
    %v2846 = vmul.f32 %v2444, 0.2
    %v2847 = vmul.f32 %v2500, 0.2
    %v2848 = vmul.f32 %v2556, 0.2
    %v2849 = vmul.f32 %v2612, 0.2
    %v2850 = vmul.f32 %v2668, 0.2
    %v2851 = vmul.f32 %v2724, 0.2
    %v2852 = vmul.f32 %v2780, 0.2
    %v2853 = vmul.f32 %v2836, 0.2
    %v2854 = vmax.f32 %v2442, %v2838
    %v2855 = vmax.f32 %v2498, %v2839
    %v2856 = vmax.f32 %v2554, %v2840
    %v2857 = vmax.f32 %v2610, %v2841
    %v2858 = vmax.f32 %v2666, %v2842
    %v2859 = vmax.f32 %v2722, %v2843
    %v2860 = vmax.f32 %v2778, %v2844
    %v2861 = vmax.f32 %v2834, %v2845
    %v2862 = vmax.f32 %v2444, %v2846
    %v2863 = vmax.f32 %v2500, %v2847
    %v2864 = vmax.f32 %v2556, %v2848
    %v2865 = vmax.f32 %v2612, %v2849
    %v2866 = vmax.f32 %v2668, %v2850
    %v2867 = vmax.f32 %v2724, %v2851
    %v2868 = vmax.f32 %v2780, %v2852
    %v2869 = vmax.f32 %v2836, %v2853
    %v2870 = vpack.c.bf16 %v2862, %v2854
    %v2871 = vpack.c.bf16 %v2863, %v2855
    %v2872 = vpack.c.bf16 %v2864, %v2856
    %v2873 = vpack.c.bf16 %v2865, %v2857
    %v2874 = vpack.c.bf16 %v2866, %v2858
    %v2875 = vpack.c.bf16 %v2867, %v2859
    %v2876 = vpack.c.bf16 %v2868, %v2860
    %v2877 = vpack.c.bf16 %v2869, %v2861
    %s2878 = smul.u32 4, 128
    %s2879 = smul.u32 %s2878, 7
    %s2880 = sshll.u32 %s2879, 4
    %2881 = dma.done %s140, %s2880
    %v2882 = vld [vmem:[#allocation4] sm:$0xff]
    %v2883 = vld [vmem:[#allocation4 + $0x8] sm:$0xff]
    %v2884 = vld [vmem:[#allocation4 + $0x10] sm:$0xff]
    %v2885 = vld [vmem:[#allocation4 + $0x18] sm:$0xf]
    %v2886 = vld [vmem:[#allocation4 + $0x1c] sm:$0xff]
    %v2887 = vld [vmem:[#allocation4 + $0x24] sm:$0xff]
    %v2888 = vld [vmem:[#allocation4 + $0x2c] sm:$0xff]
    %v2889 = vld [vmem:[#allocation4 + $0x34] sm:$0xf]
    %v2890 = vld [vmem:[#allocation4 + $0x38] sm:$0xff]
    %v2891 = vld [vmem:[#allocation4 + $0x40] sm:$0xff]
    %v2892 = vld [vmem:[#allocation4 + $0x48] sm:$0xff]
    %v2893 = vld [vmem:[#allocation4 + $0x50] sm:$0xf]
    %v2894 = vld [vmem:[#allocation4 + $0x54] sm:$0xff]
    %v2895 = vld [vmem:[#allocation4 + $0x5c] sm:$0xff]
    %v2896 = vld [vmem:[#allocation4 + $0x64] sm:$0xff]
    %v2897 = vld [vmem:[#allocation4 + $0x6c] sm:$0xf]
    %v2898 = vld [vmem:[#allocation4 + $0x70] sm:$0xff]
    %v2899 = vld [vmem:[#allocation4 + $0x78] sm:$0xff]
    %v2900 = vld [vmem:[#allocation4 + $0x80] sm:$0xff]
    %v2901 = vld [vmem:[#allocation4 + $0x88] sm:$0xf]
    %v2902 = vld [vmem:[#allocation4 + $0x8c] sm:$0xff]
    %v2903 = vld [vmem:[#allocation4 + $0x94] sm:$0xff]
    %v2904 = vld [vmem:[#allocation4 + $0x9c] sm:$0xff]
    %v2905 = vld [vmem:[#allocation4 + $0xa4] sm:$0xf]
    %v2906 = vld [vmem:[#allocation4 + $0xa8] sm:$0xff]
    %v2907 = vld [vmem:[#allocation4 + $0xb0] sm:$0xff]
    %v2908 = vld [vmem:[#allocation4 + $0xb8] sm:$0xff]
    %v2909 = vld [vmem:[#allocation4 + $0xc0] sm:$0xf]
    %v2910 = vld [vmem:[#allocation4 + $0xc4] sm:$0xff]
    %v2911 = vld [vmem:[#allocation4 + $0xcc] sm:$0xff]
    %v2912 = vld [vmem:[#allocation4 + $0xd4] sm:$0xff]
    %v2913 = vld [vmem:[#allocation4 + $0xdc] sm:$0xf]
    %v2914 = vld [vmem:[#allocation4 + $0xe0] sm:$0xff]
    %v2915 = vld [vmem:[#allocation4 + $0xe8] sm:$0xff]
    %v2916 = vld [vmem:[#allocation4 + $0xf0] sm:$0xff]
    %v2917 = vld [vmem:[#allocation4 + $0xf8] sm:$0xf]
    %v2918 = vld [vmem:[#allocation4 + $0xfc] sm:$0xff]
    %v2919 = vld [vmem:[#allocation4 + $0x104] sm:$0xff]
    %v2920 = vld [vmem:[#allocation4 + $0x10c] sm:$0xff]
    %v2921 = vld [vmem:[#allocation4 + $0x114] sm:$0xf]
    %v2922 = vld [vmem:[#allocation4 + $0x118] sm:$0xff]
    %v2923 = vld [vmem:[#allocation4 + $0x120] sm:$0xff]
    %v2924 = vld [vmem:[#allocation4 + $0x128] sm:$0xff]
    %v2925 = vld [vmem:[#allocation4 + $0x130] sm:$0xf]
    %v2926 = vld [vmem:[#allocation4 + $0x134] sm:$0xff]
    %v2927 = vld [vmem:[#allocation4 + $0x13c] sm:$0xff]
    %v2928 = vld [vmem:[#allocation4 + $0x144] sm:$0xff]
    %v2929 = vld [vmem:[#allocation4 + $0x14c] sm:$0xf]
    %v2930 = vld [vmem:[#allocation4 + $0x150] sm:$0xff]
    %v2931 = vld [vmem:[#allocation4 + $0x158] sm:$0xff]
    %v2932 = vld [vmem:[#allocation4 + $0x160] sm:$0xff]
    %v2933 = vld [vmem:[#allocation4 + $0x168] sm:$0xf]
    %v2934 = vld [vmem:[#allocation4 + $0x16c] sm:$0xff]
    %v2935 = vld [vmem:[#allocation4 + $0x174] sm:$0xff]
    %v2936 = vld [vmem:[#allocation4 + $0x17c] sm:$0xff]
    %v2937 = vld [vmem:[#allocation4 + $0x184] sm:$0xf]
    %v2938 = vld [vmem:[#allocation4 + $0x188] sm:$0xff]
    %v2939 = vld [vmem:[#allocation4 + $0x190] sm:$0xff]
    %v2940 = vld [vmem:[#allocation4 + $0x198] sm:$0xff]
    %v2941 = vld [vmem:[#allocation4 + $0x1a0] sm:$0xf]
    %v2942 = vld [vmem:[#allocation4 + $0x1a4] sm:$0xff]
    %v2943 = vld [vmem:[#allocation4 + $0x1ac] sm:$0xff]
    %v2944 = vld [vmem:[#allocation4 + $0x1b4] sm:$0xff]
    %v2945 = vld [vmem:[#allocation4 + $0x1bc] sm:$0xf]
    %v2946 = vld [vmem:[#allocation4 + $0x1c0] sm:$0xff]
    %v2947 = vld [vmem:[#allocation4 + $0x1c8] sm:$0xff]
    %v2948 = vld [vmem:[#allocation4 + $0x1d0] sm:$0xff]
    %v2949 = vld [vmem:[#allocation4 + $0x1d8] sm:$0xf]
    %v2950 = vld [vmem:[#allocation4 + $0x1dc] sm:$0xff]
    %v2951 = vld [vmem:[#allocation4 + $0x1e4] sm:$0xff]
    %v2952 = vld [vmem:[#allocation4 + $0x1ec] sm:$0xff]
    %v2953 = vld [vmem:[#allocation4 + $0x1f4] sm:$0xf]
    %v2954 = vld [vmem:[#allocation4 + $0x1f8] sm:$0xff]
    %v2955 = vld [vmem:[#allocation4 + $0x200] sm:$0xff]
    %v2956 = vld [vmem:[#allocation4 + $0x208] sm:$0xff]
    %v2957 = vld [vmem:[#allocation4 + $0x210] sm:$0xf]
    %v2958 = vld [vmem:[#allocation4 + $0x214] sm:$0xff]
    %v2959 = vld [vmem:[#allocation4 + $0x21c] sm:$0xff]
    %v2960 = vld [vmem:[#allocation4 + $0x224] sm:$0xff]
    %v2961 = vld [vmem:[#allocation4 + $0x22c] sm:$0xf]
    %v2962 = vld [vmem:[#allocation4 + $0x230] sm:$0xff]
    %v2963 = vld [vmem:[#allocation4 + $0x238] sm:$0xff]
    %v2964 = vld [vmem:[#allocation4 + $0x240] sm:$0xff]
    %v2965 = vld [vmem:[#allocation4 + $0x248] sm:$0xf]
    %v2966 = vld [vmem:[#allocation4 + $0x24c] sm:$0xff]
    %v2967 = vld [vmem:[#allocation4 + $0x254] sm:$0xff]
    %v2968 = vld [vmem:[#allocation4 + $0x25c] sm:$0xff]
    %v2969 = vld [vmem:[#allocation4 + $0x264] sm:$0xf]
    %v2970 = vld [vmem:[#allocation4 + $0x268] sm:$0xff]
    %v2971 = vld [vmem:[#allocation4 + $0x270] sm:$0xff]
    %v2972 = vld [vmem:[#allocation4 + $0x278] sm:$0xff]
    %v2973 = vld [vmem:[#allocation4 + $0x280] sm:$0xf]
    %v2974 = vld [vmem:[#allocation4 + $0x284] sm:$0xff]
    %v2975 = vld [vmem:[#allocation4 + $0x28c] sm:$0xff]
    %v2976 = vld [vmem:[#allocation4 + $0x294] sm:$0xff]
    %v2977 = vld [vmem:[#allocation4 + $0x29c] sm:$0xf]
    %v2978 = vld [vmem:[#allocation4 + $0x2a0] sm:$0xff]
    %v2979 = vld [vmem:[#allocation4 + $0x2a8] sm:$0xff]
    %v2980 = vld [vmem:[#allocation4 + $0x2b0] sm:$0xff]
    %v2981 = vld [vmem:[#allocation4 + $0x2b8] sm:$0xf]
    %v2982 = vld [vmem:[#allocation4 + $0x2bc] sm:$0xff]
    %v2983 = vld [vmem:[#allocation4 + $0x2c4] sm:$0xff]
    %v2984 = vld [vmem:[#allocation4 + $0x2cc] sm:$0xff]
    %v2985 = vld [vmem:[#allocation4 + $0x2d4] sm:$0xf]
    %v2986 = vld [vmem:[#allocation4 + $0x2d8] sm:$0xff]
    %v2987 = vld [vmem:[#allocation4 + $0x2e0] sm:$0xff]
    %v2988 = vld [vmem:[#allocation4 + $0x2e8] sm:$0xff]
    %v2989 = vld [vmem:[#allocation4 + $0x2f0] sm:$0xf]
    %v2990 = vld [vmem:[#allocation4 + $0x2f4] sm:$0xff]
    %v2991 = vld [vmem:[#allocation4 + $0x2fc] sm:$0xff]
    %v2992 = vld [vmem:[#allocation4 + $0x304] sm:$0xff]
    %v2993 = vld [vmem:[#allocation4 + $0x30c] sm:$0xf]
    %v2994 = vld [vmem:[#allocation4 + $0x310] sm:$0xff]
    %v2995 = vld [vmem:[#allocation4 + $0x318] sm:$0xff]
    %v2996 = vld [vmem:[#allocation4 + $0x320] sm:$0xff]
    %v2997 = vld [vmem:[#allocation4 + $0x328] sm:$0xf]
    %v2998 = vld [vmem:[#allocation4 + $0x32c] sm:$0xff]
    %v2999 = vld [vmem:[#allocation4 + $0x334] sm:$0xff]
    %v3000 = vld [vmem:[#allocation4 + $0x33c] sm:$0xff]
    %v3001 = vld [vmem:[#allocation4 + $0x344] sm:$0xf]
    %v3002 = vld [vmem:[#allocation4 + $0x348] sm:$0xff]
    %v3003 = vld [vmem:[#allocation4 + $0x350] sm:$0xff]
    %v3004 = vld [vmem:[#allocation4 + $0x358] sm:$0xff]
    %v3005 = vld [vmem:[#allocation4 + $0x360] sm:$0xf]
    %v3006 = vld [vmem:[#allocation4 + $0x364] sm:$0xff]
    %v3007 = vld [vmem:[#allocation4 + $0x36c] sm:$0xff]
    %v3008 = vld [vmem:[#allocation4 + $0x374] sm:$0xff]
    %v3009 = vld [vmem:[#allocation4 + $0x37c] sm:$0xf]
    %v3010 = vld [vmem:[#allocation4 + $0x380] sm:$0xff]
    %v3011 = vld [vmem:[#allocation4 + $0x388] sm:$0xff]
    %v3012 = vld [vmem:[#allocation4 + $0x390] sm:$0xff]
    %v3013 = vld [vmem:[#allocation4 + $0x398] sm:$0xf]
    %v3014 = vld [vmem:[#allocation4 + $0x39c] sm:$0xff]
    %v3015 = vld [vmem:[#allocation4 + $0x3a4] sm:$0xff]
    %v3016 = vld [vmem:[#allocation4 + $0x3ac] sm:$0xff]
    %v3017 = vld [vmem:[#allocation4 + $0x3b4] sm:$0xf]
    %v3018 = vld [vmem:[#allocation4 + $0x3b8] sm:$0xff]
    %v3019 = vld [vmem:[#allocation4 + $0x3c0] sm:$0xff]
    %v3020 = vld [vmem:[#allocation4 + $0x3c8] sm:$0xff]
    %v3021 = vld [vmem:[#allocation4 + $0x3d0] sm:$0xf]
    %v3022 = vld [vmem:[#allocation4 + $0x3d4] sm:$0xff]
    %v3023 = vld [vmem:[#allocation4 + $0x3dc] sm:$0xff]
    %v3024 = vld [vmem:[#allocation4 + $0x3e4] sm:$0xff]
    %v3025 = vld [vmem:[#allocation4 + $0x3ec] sm:$0xf]
    %v3026 = vld [vmem:[#allocation4 + $0x3f0] sm:$0xff]
    %v3027 = vld [vmem:[#allocation4 + $0x3f8] sm:$0xff]
    %v3028 = vld [vmem:[#allocation4 + $0x400] sm:$0xff]
    %v3029 = vld [vmem:[#allocation4 + $0x408] sm:$0xf]
    %v3030 = vld [vmem:[#allocation4 + $0x40c] sm:$0xff]
    %v3031 = vld [vmem:[#allocation4 + $0x414] sm:$0xff]
    %v3032 = vld [vmem:[#allocation4 + $0x41c] sm:$0xff]
    %v3033 = vld [vmem:[#allocation4 + $0x424] sm:$0xf]
    %v3034 = vld [vmem:[#allocation4 + $0x428] sm:$0xff]
    %v3035 = vld [vmem:[#allocation4 + $0x430] sm:$0xff]
    %v3036 = vld [vmem:[#allocation4 + $0x438] sm:$0xff]
    %v3037 = vld [vmem:[#allocation4 + $0x440] sm:$0xf]
    %v3038 = vld [vmem:[#allocation4 + $0x444] sm:$0xff]
    %v3039 = vld [vmem:[#allocation4 + $0x44c] sm:$0xff]
    %v3040 = vld [vmem:[#allocation4 + $0x454] sm:$0xff]
    %v3041 = vld [vmem:[#allocation4 + $0x45c] sm:$0xf]
    %v3042 = vld [vmem:[#allocation4 + $0x460] sm:$0xff]
    %v3043 = vld [vmem:[#allocation4 + $0x468] sm:$0xff]
    %v3044 = vld [vmem:[#allocation4 + $0x470] sm:$0xff]
    %v3045 = vld [vmem:[#allocation4 + $0x478] sm:$0xf]
    %v3046 = vld [vmem:[#allocation4 + $0x47c] sm:$0xff]
    %v3047 = vld [vmem:[#allocation4 + $0x484] sm:$0xff]
    %v3048 = vld [vmem:[#allocation4 + $0x48c] sm:$0xff]
    %v3049 = vld [vmem:[#allocation4 + $0x494] sm:$0xf]
    %v3050 = vld [vmem:[#allocation4 + $0x498] sm:$0xff]
    %v3051 = vld [vmem:[#allocation4 + $0x4a0] sm:$0xff]
    %v3052 = vld [vmem:[#allocation4 + $0x4a8] sm:$0xff]
    %v3053 = vld [vmem:[#allocation4 + $0x4b0] sm:$0xf]
    %v3054 = vld [vmem:[#allocation4 + $0x4b4] sm:$0xff]
    %v3055 = vld [vmem:[#allocation4 + $0x4bc] sm:$0xff]
    %v3056 = vld [vmem:[#allocation4 + $0x4c4] sm:$0xff]
    %v3057 = vld [vmem:[#allocation4 + $0x4cc] sm:$0xf]
    %v3058 = vld [vmem:[#allocation4 + $0x4d0] sm:$0xff]
    %v3059 = vld [vmem:[#allocation4 + $0x4d8] sm:$0xff]
    %v3060 = vld [vmem:[#allocation4 + $0x4e0] sm:$0xff]
    %v3061 = vld [vmem:[#allocation4 + $0x4e8] sm:$0xf]
    %v3062 = vld [vmem:[#allocation4 + $0x4ec] sm:$0xff]
    %v3063 = vld [vmem:[#allocation4 + $0x4f4] sm:$0xff]
    %v3064 = vld [vmem:[#allocation4 + $0x4fc] sm:$0xff]
    %v3065 = vld [vmem:[#allocation4 + $0x504] sm:$0xf]
    %v3066 = vld [vmem:[#allocation4 + $0x508] sm:$0xff]
    %v3067 = vld [vmem:[#allocation4 + $0x510] sm:$0xff]
    %v3068 = vld [vmem:[#allocation4 + $0x518] sm:$0xff]
    %v3069 = vld [vmem:[#allocation4 + $0x520] sm:$0xf]
    %v3070 = vld [vmem:[#allocation4 + $0x524] sm:$0xff]
    %v3071 = vld [vmem:[#allocation4 + $0x52c] sm:$0xff]
    %v3072 = vld [vmem:[#allocation4 + $0x534] sm:$0xff]
    %v3073 = vld [vmem:[#allocation4 + $0x53c] sm:$0xf]
    %v3074 = vld [vmem:[#allocation4 + $0x540] sm:$0xff]
    %v3075 = vld [vmem:[#allocation4 + $0x548] sm:$0xff]
    %v3076 = vld [vmem:[#allocation4 + $0x550] sm:$0xff]
    %v3077 = vld [vmem:[#allocation4 + $0x558] sm:$0xf]
    %v3078 = vld [vmem:[#allocation4 + $0x55c] sm:$0xff]
    %v3079 = vld [vmem:[#allocation4 + $0x564] sm:$0xff]
    %v3080 = vld [vmem:[#allocation4 + $0x56c] sm:$0xff]
    %v3081 = vld [vmem:[#allocation4 + $0x574] sm:$0xf]
    %v3082 = vld [vmem:[#allocation4 + $0x578] sm:$0xff]
    %v3083 = vld [vmem:[#allocation4 + $0x580] sm:$0xff]
    %v3084 = vld [vmem:[#allocation4 + $0x588] sm:$0xff]
    %v3085 = vld [vmem:[#allocation4 + $0x590] sm:$0xf]
    %v3086 = vld [vmem:[#allocation4 + $0x594] sm:$0xff]
    %v3087 = vld [vmem:[#allocation4 + $0x59c] sm:$0xff]
    %v3088 = vld [vmem:[#allocation4 + $0x5a4] sm:$0xff]
    %v3089 = vld [vmem:[#allocation4 + $0x5ac] sm:$0xf]
    %v3090 = vld [vmem:[#allocation4 + $0x5b0] sm:$0xff]
    %v3091 = vld [vmem:[#allocation4 + $0x5b8] sm:$0xff]
    %v3092 = vld [vmem:[#allocation4 + $0x5c0] sm:$0xff]
    %v3093 = vld [vmem:[#allocation4 + $0x5c8] sm:$0xf]
    %v3094 = vld [vmem:[#allocation4 + $0x5cc] sm:$0xff]
    %v3095 = vld [vmem:[#allocation4 + $0x5d4] sm:$0xff]
    %v3096 = vld [vmem:[#allocation4 + $0x5dc] sm:$0xff]
    %v3097 = vld [vmem:[#allocation4 + $0x5e4] sm:$0xf]
    %v3098 = vld [vmem:[#allocation4 + $0x5e8] sm:$0xff]
    %v3099 = vld [vmem:[#allocation4 + $0x5f0] sm:$0xff]
    %v3100 = vld [vmem:[#allocation4 + $0x5f8] sm:$0xff]
    %v3101 = vld [vmem:[#allocation4 + $0x600] sm:$0xf]
    %v3102 = vld [vmem:[#allocation4 + $0x604] sm:$0xff]
    %v3103 = vld [vmem:[#allocation4 + $0x60c] sm:$0xff]
    %v3104 = vld [vmem:[#allocation4 + $0x614] sm:$0xff]
    %v3105 = vld [vmem:[#allocation4 + $0x61c] sm:$0xf]
    %v3106 = vld [vmem:[#allocation4 + $0x620] sm:$0xff]
    %v3107 = vld [vmem:[#allocation4 + $0x628] sm:$0xff]
    %v3108 = vld [vmem:[#allocation4 + $0x630] sm:$0xff]
    %v3109 = vld [vmem:[#allocation4 + $0x638] sm:$0xf]
    %v3110 = vld [vmem:[#allocation4 + $0x63c] sm:$0xff]
    %v3111 = vld [vmem:[#allocation4 + $0x644] sm:$0xff]
    %v3112 = vld [vmem:[#allocation4 + $0x64c] sm:$0xff]
    %v3113 = vld [vmem:[#allocation4 + $0x654] sm:$0xf]
    %v3114 = vld [vmem:[#allocation4 + $0x658] sm:$0xff]
    %v3115 = vld [vmem:[#allocation4 + $0x660] sm:$0xff]
    %v3116 = vld [vmem:[#allocation4 + $0x668] sm:$0xff]
    %v3117 = vld [vmem:[#allocation4 + $0x670] sm:$0xf]
    %v3118 = vld [vmem:[#allocation4 + $0x674] sm:$0xff]
    %v3119 = vld [vmem:[#allocation4 + $0x67c] sm:$0xff]
    %v3120 = vld [vmem:[#allocation4 + $0x684] sm:$0xff]
    %v3121 = vld [vmem:[#allocation4 + $0x68c] sm:$0xf]
    %v3122 = vld [vmem:[#allocation4 + $0x690] sm:$0xff]
    %v3123 = vld [vmem:[#allocation4 + $0x698] sm:$0xff]
    %v3124 = vld [vmem:[#allocation4 + $0x6a0] sm:$0xff]
    %v3125 = vld [vmem:[#allocation4 + $0x6a8] sm:$0xf]
    %v3126 = vld [vmem:[#allocation4 + $0x6ac] sm:$0xff]
    %v3127 = vld [vmem:[#allocation4 + $0x6b4] sm:$0xff]
    %v3128 = vld [vmem:[#allocation4 + $0x6bc] sm:$0xff]
    %v3129 = vld [vmem:[#allocation4 + $0x6c4] sm:$0xf]
    %v3130 = vld [vmem:[#allocation4 + $0x6c8] sm:$0xff]
    %v3131 = vld [vmem:[#allocation4 + $0x6d0] sm:$0xff]
    %v3132 = vld [vmem:[#allocation4 + $0x6d8] sm:$0xff]
    %v3133 = vld [vmem:[#allocation4 + $0x6e0] sm:$0xf]
    %v3134 = vld [vmem:[#allocation4 + $0x6e4] sm:$0xff]
    %v3135 = vld [vmem:[#allocation4 + $0x6ec] sm:$0xff]
    %v3136 = vld [vmem:[#allocation4 + $0x6f4] sm:$0xff]
    %v3137 = vld [vmem:[#allocation4 + $0x6fc] sm:$0xf]
    %v3138 = vld [vmem:[#allocation4 + $0x700] sm:$0xff]
    %v3139 = vld [vmem:[#allocation4 + $0x708] sm:$0xff]
    %v3140 = vld [vmem:[#allocation4 + $0x710] sm:$0xff]
    %v3141 = vld [vmem:[#allocation4 + $0x718] sm:$0xf]
    %v3142 = vld [vmem:[#allocation4 + $0x71c] sm:$0xff]
    %v3143 = vld [vmem:[#allocation4 + $0x724] sm:$0xff]
    %v3144 = vld [vmem:[#allocation4 + $0x72c] sm:$0xff]
    %v3145 = vld [vmem:[#allocation4 + $0x734] sm:$0xf]
    %v3146 = vld [vmem:[#allocation4 + $0x738] sm:$0xff]
    %v3147 = vld [vmem:[#allocation4 + $0x740] sm:$0xff]
    %v3148 = vld [vmem:[#allocation4 + $0x748] sm:$0xff]
    %v3149 = vld [vmem:[#allocation4 + $0x750] sm:$0xf]
    %v3150 = vld [vmem:[#allocation4 + $0x754] sm:$0xff]
    %v3151 = vld [vmem:[#allocation4 + $0x75c] sm:$0xff]
    %v3152 = vld [vmem:[#allocation4 + $0x764] sm:$0xff]
    %v3153 = vld [vmem:[#allocation4 + $0x76c] sm:$0xf]
    %v3154 = vld [vmem:[#allocation4 + $0x770] sm:$0xff]
    %v3155 = vld [vmem:[#allocation4 + $0x778] sm:$0xff]
    %v3156 = vld [vmem:[#allocation4 + $0x780] sm:$0xff]
    %v3157 = vld [vmem:[#allocation4 + $0x788] sm:$0xf]
    %v3158 = vld [vmem:[#allocation4 + $0x78c] sm:$0xff]
    %v3159 = vld [vmem:[#allocation4 + $0x794] sm:$0xff]
    %v3160 = vld [vmem:[#allocation4 + $0x79c] sm:$0xff]
    %v3161 = vld [vmem:[#allocation4 + $0x7a4] sm:$0xf]
    %v3162 = vld [vmem:[#allocation4 + $0x7a8] sm:$0xff]
    %v3163 = vld [vmem:[#allocation4 + $0x7b0] sm:$0xff]
    %v3164 = vld [vmem:[#allocation4 + $0x7b8] sm:$0xff]
    %v3165 = vld [vmem:[#allocation4 + $0x7c0] sm:$0xf]
    %v3166 = vld [vmem:[#allocation4 + $0x7c4] sm:$0xff]
    %v3167 = vld [vmem:[#allocation4 + $0x7cc] sm:$0xff]
    %v3168 = vld [vmem:[#allocation4 + $0x7d4] sm:$0xff]
    %v3169 = vld [vmem:[#allocation4 + $0x7dc] sm:$0xf]
    %v3170 = vld [vmem:[#allocation4 + $0x7e0] sm:$0xff]
    %v3171 = vld [vmem:[#allocation4 + $0x7e8] sm:$0xff]
    %v3172 = vld [vmem:[#allocation4 + $0x7f0] sm:$0xff]
    %v3173 = vld [vmem:[#allocation4 + $0x7f8] sm:$0xf]
    %v3174 = vld [vmem:[#allocation4 + $0x7fc] sm:$0xff]
    %v3175 = vld [vmem:[#allocation4 + $0x804] sm:$0xff]
    %v3176 = vld [vmem:[#allocation4 + $0x80c] sm:$0xff]
    %v3177 = vld [vmem:[#allocation4 + $0x814] sm:$0xf]
    %v3178 = vld [vmem:[#allocation4 + $0x818] sm:$0xff]
    %v3179 = vld [vmem:[#allocation4 + $0x820] sm:$0xff]
    %v3180 = vld [vmem:[#allocation4 + $0x828] sm:$0xff]
    %v3181 = vld [vmem:[#allocation4 + $0x830] sm:$0xf]
    %v3182 = vld [vmem:[#allocation4 + $0x834] sm:$0xff]
    %v3183 = vld [vmem:[#allocation4 + $0x83c] sm:$0xff]
    %v3184 = vld [vmem:[#allocation4 + $0x844] sm:$0xff]
    %v3185 = vld [vmem:[#allocation4 + $0x84c] sm:$0xf]
    %v3186 = vld [vmem:[#allocation4 + $0x850] sm:$0xff]
    %v3187 = vld [vmem:[#allocation4 + $0x858] sm:$0xff]
    %v3188 = vld [vmem:[#allocation4 + $0x860] sm:$0xff]
    %v3189 = vld [vmem:[#allocation4 + $0x868] sm:$0xf]
    %v3190 = vld [vmem:[#allocation4 + $0x86c] sm:$0xff]
    %v3191 = vld [vmem:[#allocation4 + $0x874] sm:$0xff]
    %v3192 = vld [vmem:[#allocation4 + $0x87c] sm:$0xff]
    %v3193 = vld [vmem:[#allocation4 + $0x884] sm:$0xf]
    %v3194 = vld [vmem:[#allocation4 + $0x888] sm:$0xff]
    %v3195 = vld [vmem:[#allocation4 + $0x890] sm:$0xff]
    %v3196 = vld [vmem:[#allocation4 + $0x898] sm:$0xff]
    %v3197 = vld [vmem:[#allocation4 + $0x8a0] sm:$0xf]
    %v3198 = vld [vmem:[#allocation4 + $0x8a4] sm:$0xff]
    %v3199 = vld [vmem:[#allocation4 + $0x8ac] sm:$0xff]
    %v3200 = vld [vmem:[#allocation4 + $0x8b4] sm:$0xff]
    %v3201 = vld [vmem:[#allocation4 + $0x8bc] sm:$0xf]
    %v3202 = vld [vmem:[#allocation4 + $0x8c0] sm:$0xff]
    %v3203 = vld [vmem:[#allocation4 + $0x8c8] sm:$0xff]
    %v3204 = vld [vmem:[#allocation4 + $0x8d0] sm:$0xff]
    %v3205 = vld [vmem:[#allocation4 + $0x8d8] sm:$0xf]
    %v3206 = vld [vmem:[#allocation4 + $0x8dc] sm:$0xff]
    %v3207 = vld [vmem:[#allocation4 + $0x8e4] sm:$0xff]
    %v3208 = vld [vmem:[#allocation4 + $0x8ec] sm:$0xff]
    %v3209 = vld [vmem:[#allocation4 + $0x8f4] sm:$0xf]
    %v3210 = vld [vmem:[#allocation4 + $0x8f8] sm:$0xff]
    %v3211 = vld [vmem:[#allocation4 + $0x900] sm:$0xff]
    %v3212 = vld [vmem:[#allocation4 + $0x908] sm:$0xff]
    %v3213 = vld [vmem:[#allocation4 + $0x910] sm:$0xf]
    %v3214 = vld [vmem:[#allocation4 + $0x914] sm:$0xff]
    %v3215 = vld [vmem:[#allocation4 + $0x91c] sm:$0xff]
    %v3216 = vld [vmem:[#allocation4 + $0x924] sm:$0xff]
    %v3217 = vld [vmem:[#allocation4 + $0x92c] sm:$0xf]
    %v3218 = vld [vmem:[#allocation4 + $0x930] sm:$0xff]
    %v3219 = vld [vmem:[#allocation4 + $0x938] sm:$0xff]
    %v3220 = vld [vmem:[#allocation4 + $0x940] sm:$0xff]
    %v3221 = vld [vmem:[#allocation4 + $0x948] sm:$0xf]
    %v3222 = vld [vmem:[#allocation4 + $0x94c] sm:$0xff]
    %v3223 = vld [vmem:[#allocation4 + $0x954] sm:$0xff]
    %v3224 = vld [vmem:[#allocation4 + $0x95c] sm:$0xff]
    %v3225 = vld [vmem:[#allocation4 + $0x964] sm:$0xf]
    %v3226 = vld [vmem:[#allocation4 + $0x968] sm:$0xff]
    %v3227 = vld [vmem:[#allocation4 + $0x970] sm:$0xff]
    %v3228 = vld [vmem:[#allocation4 + $0x978] sm:$0xff]
    %v3229 = vld [vmem:[#allocation4 + $0x980] sm:$0xf]
    %v3230 = vld [vmem:[#allocation4 + $0x984] sm:$0xff]
    %v3231 = vld [vmem:[#allocation4 + $0x98c] sm:$0xff]
    %v3232 = vld [vmem:[#allocation4 + $0x994] sm:$0xff]
    %v3233 = vld [vmem:[#allocation4 + $0x99c] sm:$0xf]
    %v3234 = vld [vmem:[#allocation4 + $0x9a0] sm:$0xff]
    %v3235 = vld [vmem:[#allocation4 + $0x9a8] sm:$0xff]
    %v3236 = vld [vmem:[#allocation4 + $0x9b0] sm:$0xff]
    %v3237 = vld [vmem:[#allocation4 + $0x9b8] sm:$0xf]
    %v3238 = vld [vmem:[#allocation4 + $0x9bc] sm:$0xff]
    %v3239 = vld [vmem:[#allocation4 + $0x9c4] sm:$0xff]
    %v3240 = vld [vmem:[#allocation4 + $0x9cc] sm:$0xff]
    %v3241 = vld [vmem:[#allocation4 + $0x9d4] sm:$0xf]
    %v3242 = vld [vmem:[#allocation4 + $0x9d8] sm:$0xff]
    %v3243 = vld [vmem:[#allocation4 + $0x9e0] sm:$0xff]
    %v3244 = vld [vmem:[#allocation4 + $0x9e8] sm:$0xff]
    %v3245 = vld [vmem:[#allocation4 + $0x9f0] sm:$0xf]
    %v3246 = vld [vmem:[#allocation4 + $0x9f4] sm:$0xff]
    %v3247 = vld [vmem:[#allocation4 + $0x9fc] sm:$0xff]
    %v3248 = vld [vmem:[#allocation4 + $0xa04] sm:$0xff]
    %v3249 = vld [vmem:[#allocation4 + $0xa0c] sm:$0xf]
    %v3250 = vld [vmem:[#allocation4 + $0xa10] sm:$0xff]
    %v3251 = vld [vmem:[#allocation4 + $0xa18] sm:$0xff]
    %v3252 = vld [vmem:[#allocation4 + $0xa20] sm:$0xff]
    %v3253 = vld [vmem:[#allocation4 + $0xa28] sm:$0xf]
    %v3254 = vld [vmem:[#allocation4 + $0xa2c] sm:$0xff]
    %v3255 = vld [vmem:[#allocation4 + $0xa34] sm:$0xff]
    %v3256 = vld [vmem:[#allocation4 + $0xa3c] sm:$0xff]
    %v3257 = vld [vmem:[#allocation4 + $0xa44] sm:$0xf]
    %v3258 = vld [vmem:[#allocation4 + $0xa48] sm:$0xff]
    %v3259 = vld [vmem:[#allocation4 + $0xa50] sm:$0xff]
    %v3260 = vld [vmem:[#allocation4 + $0xa58] sm:$0xff]
    %v3261 = vld [vmem:[#allocation4 + $0xa60] sm:$0xf]
    %v3262 = vld [vmem:[#allocation4 + $0xa64] sm:$0xff]
    %v3263 = vld [vmem:[#allocation4 + $0xa6c] sm:$0xff]
    %v3264 = vld [vmem:[#allocation4 + $0xa74] sm:$0xff]
    %v3265 = vld [vmem:[#allocation4 + $0xa7c] sm:$0xf]
    %v3266 = vld [vmem:[#allocation4 + $0xa80] sm:$0xff]
    %v3267 = vld [vmem:[#allocation4 + $0xa88] sm:$0xff]
    %v3268 = vld [vmem:[#allocation4 + $0xa90] sm:$0xff]
    %v3269 = vld [vmem:[#allocation4 + $0xa98] sm:$0xf]
    %v3270 = vld [vmem:[#allocation4 + $0xa9c] sm:$0xff]
    %v3271 = vld [vmem:[#allocation4 + $0xaa4] sm:$0xff]
    %v3272 = vld [vmem:[#allocation4 + $0xaac] sm:$0xff]
    %v3273 = vld [vmem:[#allocation4 + $0xab4] sm:$0xf]
    %v3274 = vld [vmem:[#allocation4 + $0xab8] sm:$0xff]
    %v3275 = vld [vmem:[#allocation4 + $0xac0] sm:$0xff]
    %v3276 = vld [vmem:[#allocation4 + $0xac8] sm:$0xff]
    %v3277 = vld [vmem:[#allocation4 + $0xad0] sm:$0xf]
    %v3278 = vld [vmem:[#allocation4 + $0xad4] sm:$0xff]
    %v3279 = vld [vmem:[#allocation4 + $0xadc] sm:$0xff]
    %v3280 = vld [vmem:[#allocation4 + $0xae4] sm:$0xff]
    %v3281 = vld [vmem:[#allocation4 + $0xaec] sm:$0xf]
    %v3282 = vld [vmem:[#allocation4 + $0xaf0] sm:$0xff]
    %v3283 = vld [vmem:[#allocation4 + $0xaf8] sm:$0xff]
    %v3284 = vld [vmem:[#allocation4 + $0xb00] sm:$0xff]
    %v3285 = vld [vmem:[#allocation4 + $0xb08] sm:$0xf]
    %v3286 = vld [vmem:[#allocation4 + $0xb0c] sm:$0xff]
    %v3287 = vld [vmem:[#allocation4 + $0xb14] sm:$0xff]
    %v3288 = vld [vmem:[#allocation4 + $0xb1c] sm:$0xff]
    %v3289 = vld [vmem:[#allocation4 + $0xb24] sm:$0xf]
    %v3290 = vld [vmem:[#allocation4 + $0xb28] sm:$0xff]
    %v3291 = vld [vmem:[#allocation4 + $0xb30] sm:$0xff]
    %v3292 = vld [vmem:[#allocation4 + $0xb38] sm:$0xff]
    %v3293 = vld [vmem:[#allocation4 + $0xb40] sm:$0xf]
    %v3294 = vld [vmem:[#allocation4 + $0xb44] sm:$0xff]
    %v3295 = vld [vmem:[#allocation4 + $0xb4c] sm:$0xff]
    %v3296 = vld [vmem:[#allocation4 + $0xb54] sm:$0xff]
    %v3297 = vld [vmem:[#allocation4 + $0xb5c] sm:$0xf]
    %v3298 = vld [vmem:[#allocation4 + $0xb60] sm:$0xff]
    %v3299 = vld [vmem:[#allocation4 + $0xb68] sm:$0xff]
    %v3300 = vld [vmem:[#allocation4 + $0xb70] sm:$0xff]
    %v3301 = vld [vmem:[#allocation4 + $0xb78] sm:$0xf]
    %v3302 = vld [vmem:[#allocation4 + $0xb7c] sm:$0xff]
    %v3303 = vld [vmem:[#allocation4 + $0xb84] sm:$0xff]
    %v3304 = vld [vmem:[#allocation4 + $0xb8c] sm:$0xff]
    %v3305 = vld [vmem:[#allocation4 + $0xb94] sm:$0xf]
    %v3306 = vld [vmem:[#allocation4 + $0xb98] sm:$0xff]
    %v3307 = vld [vmem:[#allocation4 + $0xba0] sm:$0xff]
    %v3308 = vld [vmem:[#allocation4 + $0xba8] sm:$0xff]
    %v3309 = vld [vmem:[#allocation4 + $0xbb0] sm:$0xf]
    %v3310 = vld [vmem:[#allocation4 + $0xbb4] sm:$0xff]
    %v3311 = vld [vmem:[#allocation4 + $0xbbc] sm:$0xff]
    %v3312 = vld [vmem:[#allocation4 + $0xbc4] sm:$0xff]
    %v3313 = vld [vmem:[#allocation4 + $0xbcc] sm:$0xf]
    %v3314 = vld [vmem:[#allocation4 + $0xbd0] sm:$0xff]
    %v3315 = vld [vmem:[#allocation4 + $0xbd8] sm:$0xff]
    %v3316 = vld [vmem:[#allocation4 + $0xbe0] sm:$0xff]
    %v3317 = vld [vmem:[#allocation4 + $0xbe8] sm:$0xf]
    %v3318 = vld [vmem:[#allocation4 + $0xbec] sm:$0xff]
    %v3319 = vld [vmem:[#allocation4 + $0xbf4] sm:$0xff]
    %v3320 = vld [vmem:[#allocation4 + $0xbfc] sm:$0xff]
    %v3321 = vld [vmem:[#allocation4 + $0xc04] sm:$0xf]
    %v3322 = vld [vmem:[#allocation4 + $0xc08] sm:$0xff]
    %v3323 = vld [vmem:[#allocation4 + $0xc10] sm:$0xff]
    %v3324 = vld [vmem:[#allocation4 + $0xc18] sm:$0xff]
    %v3325 = vld [vmem:[#allocation4 + $0xc20] sm:$0xf]
    %v3326 = vld [vmem:[#allocation4 + $0xc24] sm:$0xff]
    %v3327 = vld [vmem:[#allocation4 + $0xc2c] sm:$0xff]
    %v3328 = vld [vmem:[#allocation4 + $0xc34] sm:$0xff]
    %v3329 = vld [vmem:[#allocation4 + $0xc3c] sm:$0xf]
    %v3330 = vld [vmem:[#allocation4 + $0xc40] sm:$0xff]
    %v3331 = vld [vmem:[#allocation4 + $0xc48] sm:$0xff]
    %v3332 = vld [vmem:[#allocation4 + $0xc50] sm:$0xff]
    %v3333 = vld [vmem:[#allocation4 + $0xc58] sm:$0xf]
    %v3334 = vld [vmem:[#allocation4 + $0xc5c] sm:$0xff]
    %v3335 = vld [vmem:[#allocation4 + $0xc64] sm:$0xff]
    %v3336 = vld [vmem:[#allocation4 + $0xc6c] sm:$0xff]
    %v3337 = vld [vmem:[#allocation4 + $0xc74] sm:$0xf]
    %v3338 = vld [vmem:[#allocation4 + $0xc78] sm:$0xff]
    %v3339 = vld [vmem:[#allocation4 + $0xc80] sm:$0xff]
    %v3340 = vld [vmem:[#allocation4 + $0xc88] sm:$0xff]
    %v3341 = vld [vmem:[#allocation4 + $0xc90] sm:$0xf]
    %v3342 = vld [vmem:[#allocation4 + $0xc94] sm:$0xff]
    %v3343 = vld [vmem:[#allocation4 + $0xc9c] sm:$0xff]
    %v3344 = vld [vmem:[#allocation4 + $0xca4] sm:$0xff]
    %v3345 = vld [vmem:[#allocation4 + $0xcac] sm:$0xf]
    %v3346 = vld [vmem:[#allocation4 + $0xcb0] sm:$0xff]
    %v3347 = vld [vmem:[#allocation4 + $0xcb8] sm:$0xff]
    %v3348 = vld [vmem:[#allocation4 + $0xcc0] sm:$0xff]
    %v3349 = vld [vmem:[#allocation4 + $0xcc8] sm:$0xf]
    %v3350 = vld [vmem:[#allocation4 + $0xccc] sm:$0xff]
    %v3351 = vld [vmem:[#allocation4 + $0xcd4] sm:$0xff]
    %v3352 = vld [vmem:[#allocation4 + $0xcdc] sm:$0xff]
    %v3353 = vld [vmem:[#allocation4 + $0xce4] sm:$0xf]
    %v3354 = vld [vmem:[#allocation4 + $0xce8] sm:$0xff]
    %v3355 = vld [vmem:[#allocation4 + $0xcf0] sm:$0xff]
    %v3356 = vld [vmem:[#allocation4 + $0xcf8] sm:$0xff]
    %v3357 = vld [vmem:[#allocation4 + $0xd00] sm:$0xf]
    %v3358 = vld [vmem:[#allocation4 + $0xd04] sm:$0xff]
    %v3359 = vld [vmem:[#allocation4 + $0xd0c] sm:$0xff]
    %v3360 = vld [vmem:[#allocation4 + $0xd14] sm:$0xff]
    %v3361 = vld [vmem:[#allocation4 + $0xd1c] sm:$0xf]
    %v3362 = vld [vmem:[#allocation4 + $0xd20] sm:$0xff]
    %v3363 = vld [vmem:[#allocation4 + $0xd28] sm:$0xff]
    %v3364 = vld [vmem:[#allocation4 + $0xd30] sm:$0xff]
    %v3365 = vld [vmem:[#allocation4 + $0xd38] sm:$0xf]
    %v3366 = vld [vmem:[#allocation4 + $0xd3c] sm:$0xff]
    %v3367 = vld [vmem:[#allocation4 + $0xd44] sm:$0xff]
    %v3368 = vld [vmem:[#allocation4 + $0xd4c] sm:$0xff]
    %v3369 = vld [vmem:[#allocation4 + $0xd54] sm:$0xf]
    %v3370 = vld [vmem:[#allocation4 + $0xd58] sm:$0xff]
    %v3371 = vld [vmem:[#allocation4 + $0xd60] sm:$0xff]
    %v3372 = vld [vmem:[#allocation4 + $0xd68] sm:$0xff]
    %v3373 = vld [vmem:[#allocation4 + $0xd70] sm:$0xf]
    %v3374 = vld [vmem:[#allocation4 + $0xd74] sm:$0xff]
    %v3375 = vld [vmem:[#allocation4 + $0xd7c] sm:$0xff]
    %v3376 = vld [vmem:[#allocation4 + $0xd84] sm:$0xff]
    %v3377 = vld [vmem:[#allocation4 + $0xd8c] sm:$0xf]
    %v3378 = vld [vmem:[#allocation4 + $0xd90] sm:$0xff]
    %v3379 = vld [vmem:[#allocation4 + $0xd98] sm:$0xff]
    %v3380 = vld [vmem:[#allocation4 + $0xda0] sm:$0xff]
    %v3381 = vld [vmem:[#allocation4 + $0xda8] sm:$0xf]
    %v3382 = vld [vmem:[#allocation4 + $0xdac] sm:$0xff]
    %v3383 = vld [vmem:[#allocation4 + $0xdb4] sm:$0xff]
    %v3384 = vld [vmem:[#allocation4 + $0xdbc] sm:$0xff]
    %v3385 = vld [vmem:[#allocation4 + $0xdc4] sm:$0xf]
    %v3386 = vld [vmem:[#allocation4 + $0xdc8] sm:$0xff]
    %v3387 = vld [vmem:[#allocation4 + $0xdd0] sm:$0xff]
    %v3388 = vld [vmem:[#allocation4 + $0xdd8] sm:$0xff]
    %v3389 = vld [vmem:[#allocation4 + $0xde0] sm:$0xf]
    %v3390 = vld [vmem:[#allocation4 + $0xde4] sm:$0xff]
    %v3391 = vld [vmem:[#allocation4 + $0xdec] sm:$0xff]
    %v3392 = vld [vmem:[#allocation4 + $0xdf4] sm:$0xff]
    %v3393 = vld [vmem:[#allocation4 + $0xdfc] sm:$0xf]
    %v3394 = vld [vmem:[#allocation15] sm:$0xff]
    %v3396 = vperm.slane %v3394, 0
    %v3397 = vperm.slane %v3394, 1
    %v3398 = vperm.slane %v3394, 2
    %v3399 = vperm.slane %v3394, 3
    %v3400 = vperm.slane %v3394, 4
    %v3401 = vperm.slane %v3394, 5
    %v3402 = vperm.slane %v3394, 6
    %v3922 = vunpack.c.l.b16 %v2882
    %v3923 = vunpack.c.h.b16 %v2882
    %v3924 = vunpack.c.l.b16 %v2883
    %v3925 = vunpack.c.h.b16 %v2883
    %v3926 = vunpack.c.l.b16 %v2884
    %v3927 = vunpack.c.h.b16 %v2884
    %v3928 = vunpack.c.l.b16 %v2885
    %v3929 = vunpack.c.l.b16 %v2886
    %v3930 = vunpack.c.h.b16 %v2886
    %v3931 = vunpack.c.l.b16 %v2887
    %v3932 = vunpack.c.h.b16 %v2887
    %v3933 = vunpack.c.l.b16 %v2888
    %v3934 = vunpack.c.h.b16 %v2888
    %v3935 = vunpack.c.l.b16 %v2889
    %v3936 = vunpack.c.l.b16 %v2890
    %v3937 = vunpack.c.h.b16 %v2890
    %v3938 = vunpack.c.l.b16 %v2891
    %v3939 = vunpack.c.h.b16 %v2891
    %v3940 = vunpack.c.l.b16 %v2892
    %v3941 = vunpack.c.h.b16 %v2892
    %v3942 = vunpack.c.l.b16 %v2893
    %v3943 = vunpack.c.l.b16 %v2894
    %v3944 = vunpack.c.h.b16 %v2894
    %v3945 = vunpack.c.l.b16 %v2895
    %v3946 = vunpack.c.h.b16 %v2895
    %v3947 = vunpack.c.l.b16 %v2896
    %v3948 = vunpack.c.h.b16 %v2896
    %v3949 = vunpack.c.l.b16 %v2897
    %v3950 = vunpack.c.l.b16 %v2898
    %v3951 = vunpack.c.h.b16 %v2898
    %v3952 = vunpack.c.l.b16 %v2899
    %v3953 = vunpack.c.h.b16 %v2899
    %v3954 = vunpack.c.l.b16 %v2900
    %v3955 = vunpack.c.h.b16 %v2900
    %v3956 = vunpack.c.l.b16 %v2901
    %v3957 = vunpack.c.l.b16 %v2902
    %v3958 = vunpack.c.h.b16 %v2902
    %v3959 = vunpack.c.l.b16 %v2903
    %v3960 = vunpack.c.h.b16 %v2903
    %v3961 = vunpack.c.l.b16 %v2904
    %v3962 = vunpack.c.h.b16 %v2904
    %v3963 = vunpack.c.l.b16 %v2905
    %v3964 = vunpack.c.l.b16 %v2906
    %v3965 = vunpack.c.h.b16 %v2906
    %v3966 = vunpack.c.l.b16 %v2907
    %v3967 = vunpack.c.h.b16 %v2907
    %v3968 = vunpack.c.l.b16 %v2908
    %v3969 = vunpack.c.h.b16 %v2908
    %v3970 = vunpack.c.l.b16 %v2909
    %v3971 = vunpack.c.l.b16 %v2910
    %v3972 = vunpack.c.h.b16 %v2910
    %v3973 = vunpack.c.l.b16 %v2911
    %v3974 = vunpack.c.h.b16 %v2911
    %v3975 = vunpack.c.l.b16 %v2912
    %v3976 = vunpack.c.h.b16 %v2912
    %v3977 = vunpack.c.l.b16 %v2913
    %v3978 = vunpack.c.l.b16 %v2914
    %v3979 = vunpack.c.h.b16 %v2914
    %v3980 = vunpack.c.l.b16 %v2915
    %v3981 = vunpack.c.h.b16 %v2915
    %v3982 = vunpack.c.l.b16 %v2916
    %v3983 = vunpack.c.h.b16 %v2916
    %v3984 = vunpack.c.l.b16 %v2917
    %v3985 = vunpack.c.l.b16 %v2918
    %v3986 = vunpack.c.h.b16 %v2918
    %v3987 = vunpack.c.l.b16 %v2919
    %v3988 = vunpack.c.h.b16 %v2919
    %v3989 = vunpack.c.l.b16 %v2920
    %v3990 = vunpack.c.h.b16 %v2920
    %v3991 = vunpack.c.l.b16 %v2921
    %v3992 = vunpack.c.l.b16 %v2922
    %v3993 = vunpack.c.h.b16 %v2922
    %v3994 = vunpack.c.l.b16 %v2923
    %v3995 = vunpack.c.h.b16 %v2923
    %v3996 = vunpack.c.l.b16 %v2924
    %v3997 = vunpack.c.h.b16 %v2924
    %v3998 = vunpack.c.l.b16 %v2925
    %v3999 = vunpack.c.l.b16 %v2926
    %v4000 = vunpack.c.h.b16 %v2926
    %v4001 = vunpack.c.l.b16 %v2927
    %v4002 = vunpack.c.h.b16 %v2927
    %v4003 = vunpack.c.l.b16 %v2928
    %v4004 = vunpack.c.h.b16 %v2928
    %v4005 = vunpack.c.l.b16 %v2929
    %v4006 = vunpack.c.l.b16 %v2930
    %v4007 = vunpack.c.h.b16 %v2930
    %v4008 = vunpack.c.l.b16 %v2931
    %v4009 = vunpack.c.h.b16 %v2931
    %v4010 = vunpack.c.l.b16 %v2932
    %v4011 = vunpack.c.h.b16 %v2932
    %v4012 = vunpack.c.l.b16 %v2933
    %v4013 = vunpack.c.l.b16 %v2934
    %v4014 = vunpack.c.h.b16 %v2934
    %v4015 = vunpack.c.l.b16 %v2935
    %v4016 = vunpack.c.h.b16 %v2935
    %v4017 = vunpack.c.l.b16 %v2936
    %v4018 = vunpack.c.h.b16 %v2936
    %v4019 = vunpack.c.l.b16 %v2937
    %v4020 = vunpack.c.l.b16 %v2938
    %v4021 = vunpack.c.h.b16 %v2938
    %v4022 = vunpack.c.l.b16 %v2939
    %v4023 = vunpack.c.h.b16 %v2939
    %v4024 = vunpack.c.l.b16 %v2940
    %v4025 = vunpack.c.h.b16 %v2940
    %v4026 = vunpack.c.l.b16 %v2941
    %v4027 = vunpack.c.l.b16 %v2942
    %v4028 = vunpack.c.h.b16 %v2942
    %v4029 = vunpack.c.l.b16 %v2943
    %v4030 = vunpack.c.h.b16 %v2943
    %v4031 = vunpack.c.l.b16 %v2944
    %v4032 = vunpack.c.h.b16 %v2944
    %v4033 = vunpack.c.l.b16 %v2945
    %v4034 = vunpack.c.l.b16 %v2946
    %v4035 = vunpack.c.h.b16 %v2946
    %v4036 = vunpack.c.l.b16 %v2947
    %v4037 = vunpack.c.h.b16 %v2947
    %v4038 = vunpack.c.l.b16 %v2948
    %v4039 = vunpack.c.h.b16 %v2948
    %v4040 = vunpack.c.l.b16 %v2949
    %v4041 = vunpack.c.l.b16 %v2950
    %v4042 = vunpack.c.h.b16 %v2950
    %v4043 = vunpack.c.l.b16 %v2951
    %v4044 = vunpack.c.h.b16 %v2951
    %v4045 = vunpack.c.l.b16 %v2952
    %v4046 = vunpack.c.h.b16 %v2952
    %v4047 = vunpack.c.l.b16 %v2953
    %v4048 = vunpack.c.l.b16 %v2954
    %v4049 = vunpack.c.h.b16 %v2954
    %v4050 = vunpack.c.l.b16 %v2955
    %v4051 = vunpack.c.h.b16 %v2955
    %v4052 = vunpack.c.l.b16 %v2956
    %v4053 = vunpack.c.h.b16 %v2956
    %v4054 = vunpack.c.l.b16 %v2957
    %v4055 = vunpack.c.l.b16 %v2958
    %v4056 = vunpack.c.h.b16 %v2958
    %v4057 = vunpack.c.l.b16 %v2959
    %v4058 = vunpack.c.h.b16 %v2959
    %v4059 = vunpack.c.l.b16 %v2960
    %v4060 = vunpack.c.h.b16 %v2960
    %v4061 = vunpack.c.l.b16 %v2961
    %v4062 = vunpack.c.l.b16 %v2962
    %v4063 = vunpack.c.h.b16 %v2962
    %v4064 = vunpack.c.l.b16 %v2963
    %v4065 = vunpack.c.h.b16 %v2963
    %v4066 = vunpack.c.l.b16 %v2964
    %v4067 = vunpack.c.h.b16 %v2964
    %v4068 = vunpack.c.l.b16 %v2965
    %v4069 = vunpack.c.l.b16 %v2966
    %v4070 = vunpack.c.h.b16 %v2966
    %v4071 = vunpack.c.l.b16 %v2967
    %v4072 = vunpack.c.h.b16 %v2967
    %v4073 = vunpack.c.l.b16 %v2968
    %v4074 = vunpack.c.h.b16 %v2968
    %v4075 = vunpack.c.l.b16 %v2969
    %v4076 = vunpack.c.l.b16 %v2970
    %v4077 = vunpack.c.h.b16 %v2970
    %v4078 = vunpack.c.l.b16 %v2971
    %v4079 = vunpack.c.h.b16 %v2971
    %v4080 = vunpack.c.l.b16 %v2972
    %v4081 = vunpack.c.h.b16 %v2972
    %v4082 = vunpack.c.l.b16 %v2973
    %v4083 = vunpack.c.l.b16 %v2974
    %v4084 = vunpack.c.h.b16 %v2974
    %v4085 = vunpack.c.l.b16 %v2975
    %v4086 = vunpack.c.h.b16 %v2975
    %v4087 = vunpack.c.l.b16 %v2976
    %v4088 = vunpack.c.h.b16 %v2976
    %v4089 = vunpack.c.l.b16 %v2977
    %v4090 = vunpack.c.l.b16 %v2978
    %v4091 = vunpack.c.h.b16 %v2978
    %v4092 = vunpack.c.l.b16 %v2979
    %v4093 = vunpack.c.h.b16 %v2979
    %v4094 = vunpack.c.l.b16 %v2980
    %v4095 = vunpack.c.h.b16 %v2980
    %v4096 = vunpack.c.l.b16 %v2981
    %v4097 = vunpack.c.l.b16 %v2982
    %v4098 = vunpack.c.h.b16 %v2982
    %v4099 = vunpack.c.l.b16 %v2983
    %v4100 = vunpack.c.h.b16 %v2983
    %v4101 = vunpack.c.l.b16 %v2984
    %v4102 = vunpack.c.h.b16 %v2984
    %v4103 = vunpack.c.l.b16 %v2985
    %v4104 = vunpack.c.l.b16 %v2986
    %v4105 = vunpack.c.h.b16 %v2986
    %v4106 = vunpack.c.l.b16 %v2987
    %v4107 = vunpack.c.h.b16 %v2987
    %v4108 = vunpack.c.l.b16 %v2988
    %v4109 = vunpack.c.h.b16 %v2988
    %v4110 = vunpack.c.l.b16 %v2989
    %v4111 = vunpack.c.l.b16 %v2990
    %v4112 = vunpack.c.h.b16 %v2990
    %v4113 = vunpack.c.l.b16 %v2991
    %v4114 = vunpack.c.h.b16 %v2991
    %v4115 = vunpack.c.l.b16 %v2992
    %v4116 = vunpack.c.h.b16 %v2992
    %v4117 = vunpack.c.l.b16 %v2993
    %v4118 = vunpack.c.l.b16 %v2994
    %v4119 = vunpack.c.h.b16 %v2994
    %v4120 = vunpack.c.l.b16 %v2995
    %v4121 = vunpack.c.h.b16 %v2995
    %v4122 = vunpack.c.l.b16 %v2996
    %v4123 = vunpack.c.h.b16 %v2996
    %v4124 = vunpack.c.l.b16 %v2997
    %v4125 = vunpack.c.l.b16 %v2998
    %v4126 = vunpack.c.h.b16 %v2998
    %v4127 = vunpack.c.l.b16 %v2999
    %v4128 = vunpack.c.h.b16 %v2999
    %v4129 = vunpack.c.l.b16 %v3000
    %v4130 = vunpack.c.h.b16 %v3000
    %v4131 = vunpack.c.l.b16 %v3001
    %v4132 = vunpack.c.l.b16 %v3002
    %v4133 = vunpack.c.h.b16 %v3002
    %v4134 = vunpack.c.l.b16 %v3003
    %v4135 = vunpack.c.h.b16 %v3003
    %v4136 = vunpack.c.l.b16 %v3004
    %v4137 = vunpack.c.h.b16 %v3004
    %v4138 = vunpack.c.l.b16 %v3005
    %v4139 = vunpack.c.l.b16 %v3006
    %v4140 = vunpack.c.h.b16 %v3006
    %v4141 = vunpack.c.l.b16 %v3007
    %v4142 = vunpack.c.h.b16 %v3007
    %v4143 = vunpack.c.l.b16 %v3008
    %v4144 = vunpack.c.h.b16 %v3008
    %v4145 = vunpack.c.l.b16 %v3009
    %v4146 = vunpack.c.l.b16 %v3010
    %v4147 = vunpack.c.h.b16 %v3010
    %v4148 = vunpack.c.l.b16 %v3011
    %v4149 = vunpack.c.h.b16 %v3011
    %v4150 = vunpack.c.l.b16 %v3012
    %v4151 = vunpack.c.h.b16 %v3012
    %v4152 = vunpack.c.l.b16 %v3013
    %v4153 = vunpack.c.l.b16 %v3014
    %v4154 = vunpack.c.h.b16 %v3014
    %v4155 = vunpack.c.l.b16 %v3015
    %v4156 = vunpack.c.h.b16 %v3015
    %v4157 = vunpack.c.l.b16 %v3016
    %v4158 = vunpack.c.h.b16 %v3016
    %v4159 = vunpack.c.l.b16 %v3017
    %v4160 = vunpack.c.l.b16 %v3018
    %v4161 = vunpack.c.h.b16 %v3018
    %v4162 = vunpack.c.l.b16 %v3019
    %v4163 = vunpack.c.h.b16 %v3019
    %v4164 = vunpack.c.l.b16 %v3020
    %v4165 = vunpack.c.h.b16 %v3020
    %v4166 = vunpack.c.l.b16 %v3021
    %v4167 = vunpack.c.l.b16 %v3022
    %v4168 = vunpack.c.h.b16 %v3022
    %v4169 = vunpack.c.l.b16 %v3023
    %v4170 = vunpack.c.h.b16 %v3023
    %v4171 = vunpack.c.l.b16 %v3024
    %v4172 = vunpack.c.h.b16 %v3024
    %v4173 = vunpack.c.l.b16 %v3025
    %v4174 = vunpack.c.l.b16 %v3026
    %v4175 = vunpack.c.h.b16 %v3026
    %v4176 = vunpack.c.l.b16 %v3027
    %v4177 = vunpack.c.h.b16 %v3027
    %v4178 = vunpack.c.l.b16 %v3028
    %v4179 = vunpack.c.h.b16 %v3028
    %v4180 = vunpack.c.l.b16 %v3029
    %v4181 = vunpack.c.l.b16 %v3030
    %v4182 = vunpack.c.h.b16 %v3030
    %v4183 = vunpack.c.l.b16 %v3031
    %v4184 = vunpack.c.h.b16 %v3031
    %v4185 = vunpack.c.l.b16 %v3032
    %v4186 = vunpack.c.h.b16 %v3032
    %v4187 = vunpack.c.l.b16 %v3033
    %v4188 = vunpack.c.l.b16 %v3034
    %v4189 = vunpack.c.h.b16 %v3034
    %v4190 = vunpack.c.l.b16 %v3035
    %v4191 = vunpack.c.h.b16 %v3035
    %v4192 = vunpack.c.l.b16 %v3036
    %v4193 = vunpack.c.h.b16 %v3036
    %v4194 = vunpack.c.l.b16 %v3037
    %v4195 = vunpack.c.l.b16 %v3038
    %v4196 = vunpack.c.h.b16 %v3038
    %v4197 = vunpack.c.l.b16 %v3039
    %v4198 = vunpack.c.h.b16 %v3039
    %v4199 = vunpack.c.l.b16 %v3040
    %v4200 = vunpack.c.h.b16 %v3040
    %v4201 = vunpack.c.l.b16 %v3041
    %v4202 = vunpack.c.l.b16 %v3042
    %v4203 = vunpack.c.h.b16 %v3042
    %v4204 = vunpack.c.l.b16 %v3043
    %v4205 = vunpack.c.h.b16 %v3043
    %v4206 = vunpack.c.l.b16 %v3044
    %v4207 = vunpack.c.h.b16 %v3044
    %v4208 = vunpack.c.l.b16 %v3045
    %v4209 = vunpack.c.l.b16 %v3046
    %v4210 = vunpack.c.h.b16 %v3046
    %v4211 = vunpack.c.l.b16 %v3047
    %v4212 = vunpack.c.h.b16 %v3047
    %v4213 = vunpack.c.l.b16 %v3048
    %v4214 = vunpack.c.h.b16 %v3048
    %v4215 = vunpack.c.l.b16 %v3049
    %v4216 = vunpack.c.l.b16 %v3050
    %v4217 = vunpack.c.h.b16 %v3050
    %v4218 = vunpack.c.l.b16 %v3051
    %v4219 = vunpack.c.h.b16 %v3051
    %v4220 = vunpack.c.l.b16 %v3052
    %v4221 = vunpack.c.h.b16 %v3052
    %v4222 = vunpack.c.l.b16 %v3053
    %v4223 = vunpack.c.l.b16 %v3054
    %v4224 = vunpack.c.h.b16 %v3054
    %v4225 = vunpack.c.l.b16 %v3055
    %v4226 = vunpack.c.h.b16 %v3055
    %v4227 = vunpack.c.l.b16 %v3056
    %v4228 = vunpack.c.h.b16 %v3056
    %v4229 = vunpack.c.l.b16 %v3057
    %v4230 = vunpack.c.l.b16 %v3058
    %v4231 = vunpack.c.h.b16 %v3058
    %v4232 = vunpack.c.l.b16 %v3059
    %v4233 = vunpack.c.h.b16 %v3059
    %v4234 = vunpack.c.l.b16 %v3060
    %v4235 = vunpack.c.h.b16 %v3060
    %v4236 = vunpack.c.l.b16 %v3061
    %v4237 = vunpack.c.l.b16 %v3062
    %v4238 = vunpack.c.h.b16 %v3062
    %v4239 = vunpack.c.l.b16 %v3063
    %v4240 = vunpack.c.h.b16 %v3063
    %v4241 = vunpack.c.l.b16 %v3064
    %v4242 = vunpack.c.h.b16 %v3064
    %v4243 = vunpack.c.l.b16 %v3065
    %v4244 = vunpack.c.l.b16 %v3066
    %v4245 = vunpack.c.h.b16 %v3066
    %v4246 = vunpack.c.l.b16 %v3067
    %v4247 = vunpack.c.h.b16 %v3067
    %v4248 = vunpack.c.l.b16 %v3068
    %v4249 = vunpack.c.h.b16 %v3068
    %v4250 = vunpack.c.l.b16 %v3069
    %v4251 = vunpack.c.l.b16 %v3070
    %v4252 = vunpack.c.h.b16 %v3070
    %v4253 = vunpack.c.l.b16 %v3071
    %v4254 = vunpack.c.h.b16 %v3071
    %v4255 = vunpack.c.l.b16 %v3072
    %v4256 = vunpack.c.h.b16 %v3072
    %v4257 = vunpack.c.l.b16 %v3073
    %v4258 = vunpack.c.l.b16 %v3074
    %v4259 = vunpack.c.h.b16 %v3074
    %v4260 = vunpack.c.l.b16 %v3075
    %v4261 = vunpack.c.h.b16 %v3075
    %v4262 = vunpack.c.l.b16 %v3076
    %v4263 = vunpack.c.h.b16 %v3076
    %v4264 = vunpack.c.l.b16 %v3077
    %v4265 = vunpack.c.l.b16 %v3078
    %v4266 = vunpack.c.h.b16 %v3078
    %v4267 = vunpack.c.l.b16 %v3079
    %v4268 = vunpack.c.h.b16 %v3079
    %v4269 = vunpack.c.l.b16 %v3080
    %v4270 = vunpack.c.h.b16 %v3080
    %v4271 = vunpack.c.l.b16 %v3081
    %v4272 = vunpack.c.l.b16 %v3082
    %v4273 = vunpack.c.h.b16 %v3082
    %v4274 = vunpack.c.l.b16 %v3083
    %v4275 = vunpack.c.h.b16 %v3083
    %v4276 = vunpack.c.l.b16 %v3084
    %v4277 = vunpack.c.h.b16 %v3084
    %v4278 = vunpack.c.l.b16 %v3085
    %v4279 = vunpack.c.l.b16 %v3086
    %v4280 = vunpack.c.h.b16 %v3086
    %v4281 = vunpack.c.l.b16 %v3087
    %v4282 = vunpack.c.h.b16 %v3087
    %v4283 = vunpack.c.l.b16 %v3088
    %v4284 = vunpack.c.h.b16 %v3088
    %v4285 = vunpack.c.l.b16 %v3089
    %v4286 = vunpack.c.l.b16 %v3090
    %v4287 = vunpack.c.h.b16 %v3090
    %v4288 = vunpack.c.l.b16 %v3091
    %v4289 = vunpack.c.h.b16 %v3091
    %v4290 = vunpack.c.l.b16 %v3092
    %v4291 = vunpack.c.h.b16 %v3092
    %v4292 = vunpack.c.l.b16 %v3093
    %v4293 = vunpack.c.l.b16 %v3094
    %v4294 = vunpack.c.h.b16 %v3094
    %v4295 = vunpack.c.l.b16 %v3095
    %v4296 = vunpack.c.h.b16 %v3095
    %v4297 = vunpack.c.l.b16 %v3096
    %v4298 = vunpack.c.h.b16 %v3096
    %v4299 = vunpack.c.l.b16 %v3097
    %v4300 = vunpack.c.l.b16 %v3098
    %v4301 = vunpack.c.h.b16 %v3098
    %v4302 = vunpack.c.l.b16 %v3099
    %v4303 = vunpack.c.h.b16 %v3099
    %v4304 = vunpack.c.l.b16 %v3100
    %v4305 = vunpack.c.h.b16 %v3100
    %v4306 = vunpack.c.l.b16 %v3101
    %v4307 = vunpack.c.l.b16 %v3102
    %v4308 = vunpack.c.h.b16 %v3102
    %v4309 = vunpack.c.l.b16 %v3103
    %v4310 = vunpack.c.h.b16 %v3103
    %v4311 = vunpack.c.l.b16 %v3104
    %v4312 = vunpack.c.h.b16 %v3104
    %v4313 = vunpack.c.l.b16 %v3105
    %v4314 = vunpack.c.l.b16 %v3106
    %v4315 = vunpack.c.h.b16 %v3106
    %v4316 = vunpack.c.l.b16 %v3107
    %v4317 = vunpack.c.h.b16 %v3107
    %v4318 = vunpack.c.l.b16 %v3108
    %v4319 = vunpack.c.h.b16 %v3108
    %v4320 = vunpack.c.l.b16 %v3109
    %v4321 = vunpack.c.l.b16 %v3110
    %v4322 = vunpack.c.h.b16 %v3110
    %v4323 = vunpack.c.l.b16 %v3111
    %v4324 = vunpack.c.h.b16 %v3111
    %v4325 = vunpack.c.l.b16 %v3112
    %v4326 = vunpack.c.h.b16 %v3112
    %v4327 = vunpack.c.l.b16 %v3113
    %v4328 = vunpack.c.l.b16 %v3114
    %v4329 = vunpack.c.h.b16 %v3114
    %v4330 = vunpack.c.l.b16 %v3115
    %v4331 = vunpack.c.h.b16 %v3115
    %v4332 = vunpack.c.l.b16 %v3116
    %v4333 = vunpack.c.h.b16 %v3116
    %v4334 = vunpack.c.l.b16 %v3117
    %v4335 = vunpack.c.l.b16 %v3118
    %v4336 = vunpack.c.h.b16 %v3118
    %v4337 = vunpack.c.l.b16 %v3119
    %v4338 = vunpack.c.h.b16 %v3119
    %v4339 = vunpack.c.l.b16 %v3120
    %v4340 = vunpack.c.h.b16 %v3120
    %v4341 = vunpack.c.l.b16 %v3121
    %v4342 = vunpack.c.l.b16 %v3122
    %v4343 = vunpack.c.h.b16 %v3122
    %v4344 = vunpack.c.l.b16 %v3123
    %v4345 = vunpack.c.h.b16 %v3123
    %v4346 = vunpack.c.l.b16 %v3124
    %v4347 = vunpack.c.h.b16 %v3124
    %v4348 = vunpack.c.l.b16 %v3125
    %v4349 = vunpack.c.l.b16 %v3126
    %v4350 = vunpack.c.h.b16 %v3126
    %v4351 = vunpack.c.l.b16 %v3127
    %v4352 = vunpack.c.h.b16 %v3127
    %v4353 = vunpack.c.l.b16 %v3128
    %v4354 = vunpack.c.h.b16 %v3128
    %v4355 = vunpack.c.l.b16 %v3129
    %v4356 = vunpack.c.l.b16 %v3130
    %v4357 = vunpack.c.h.b16 %v3130
    %v4358 = vunpack.c.l.b16 %v3131
    %v4359 = vunpack.c.h.b16 %v3131
    %v4360 = vunpack.c.l.b16 %v3132
    %v4361 = vunpack.c.h.b16 %v3132
    %v4362 = vunpack.c.l.b16 %v3133
    %v4363 = vunpack.c.l.b16 %v3134
    %v4364 = vunpack.c.h.b16 %v3134
    %v4365 = vunpack.c.l.b16 %v3135
    %v4366 = vunpack.c.h.b16 %v3135
    %v4367 = vunpack.c.l.b16 %v3136
    %v4368 = vunpack.c.h.b16 %v3136
    %v4369 = vunpack.c.l.b16 %v3137
    %v4370 = vunpack.c.l.b16 %v3138
    %v4371 = vunpack.c.h.b16 %v3138
    %v4372 = vunpack.c.l.b16 %v3139
    %v4373 = vunpack.c.h.b16 %v3139
    %v4374 = vunpack.c.l.b16 %v3140
    %v4375 = vunpack.c.h.b16 %v3140
    %v4376 = vunpack.c.l.b16 %v3141
    %v4377 = vunpack.c.l.b16 %v3142
    %v4378 = vunpack.c.h.b16 %v3142
    %v4379 = vunpack.c.l.b16 %v3143
    %v4380 = vunpack.c.h.b16 %v3143
    %v4381 = vunpack.c.l.b16 %v3144
    %v4382 = vunpack.c.h.b16 %v3144
    %v4383 = vunpack.c.l.b16 %v3145
    %v4384 = vunpack.c.l.b16 %v3146
    %v4385 = vunpack.c.h.b16 %v3146
    %v4386 = vunpack.c.l.b16 %v3147
    %v4387 = vunpack.c.h.b16 %v3147
    %v4388 = vunpack.c.l.b16 %v3148
    %v4389 = vunpack.c.h.b16 %v3148
    %v4390 = vunpack.c.l.b16 %v3149
    %v4391 = vunpack.c.l.b16 %v3150
    %v4392 = vunpack.c.h.b16 %v3150
    %v4393 = vunpack.c.l.b16 %v3151
    %v4394 = vunpack.c.h.b16 %v3151
    %v4395 = vunpack.c.l.b16 %v3152
    %v4396 = vunpack.c.h.b16 %v3152
    %v4397 = vunpack.c.l.b16 %v3153
    %v4398 = vunpack.c.l.b16 %v3154
    %v4399 = vunpack.c.h.b16 %v3154
    %v4400 = vunpack.c.l.b16 %v3155
    %v4401 = vunpack.c.h.b16 %v3155
    %v4402 = vunpack.c.l.b16 %v3156
    %v4403 = vunpack.c.h.b16 %v3156
    %v4404 = vunpack.c.l.b16 %v3157
    %v4405 = vunpack.c.l.b16 %v3158
    %v4406 = vunpack.c.h.b16 %v3158
    %v4407 = vunpack.c.l.b16 %v3159
    %v4408 = vunpack.c.h.b16 %v3159
    %v4409 = vunpack.c.l.b16 %v3160
    %v4410 = vunpack.c.h.b16 %v3160
    %v4411 = vunpack.c.l.b16 %v3161
    %v4412 = vunpack.c.l.b16 %v3162
    %v4413 = vunpack.c.h.b16 %v3162
    %v4414 = vunpack.c.l.b16 %v3163
    %v4415 = vunpack.c.h.b16 %v3163
    %v4416 = vunpack.c.l.b16 %v3164
    %v4417 = vunpack.c.h.b16 %v3164
    %v4418 = vunpack.c.l.b16 %v3165
    %v4419 = vunpack.c.l.b16 %v3166
    %v4420 = vunpack.c.h.b16 %v3166
    %v4421 = vunpack.c.l.b16 %v3167
    %v4422 = vunpack.c.h.b16 %v3167
    %v4423 = vunpack.c.l.b16 %v3168
    %v4424 = vunpack.c.h.b16 %v3168
    %v4425 = vunpack.c.l.b16 %v3169
    %v4426 = vunpack.c.l.b16 %v3170
    %v4427 = vunpack.c.h.b16 %v3170
    %v4428 = vunpack.c.l.b16 %v3171
    %v4429 = vunpack.c.h.b16 %v3171
    %v4430 = vunpack.c.l.b16 %v3172
    %v4431 = vunpack.c.h.b16 %v3172
    %v4432 = vunpack.c.l.b16 %v3173
    %v4433 = vunpack.c.l.b16 %v3174
    %v4434 = vunpack.c.h.b16 %v3174
    %v4435 = vunpack.c.l.b16 %v3175
    %v4436 = vunpack.c.h.b16 %v3175
    %v4437 = vunpack.c.l.b16 %v3176
    %v4438 = vunpack.c.h.b16 %v3176
    %v4439 = vunpack.c.l.b16 %v3177
    %v4440 = vunpack.c.l.b16 %v3178
    %v4441 = vunpack.c.h.b16 %v3178
    %v4442 = vunpack.c.l.b16 %v3179
    %v4443 = vunpack.c.h.b16 %v3179
    %v4444 = vunpack.c.l.b16 %v3180
    %v4445 = vunpack.c.h.b16 %v3180
    %v4446 = vunpack.c.l.b16 %v3181
    %v4447 = vunpack.c.l.b16 %v3182
    %v4448 = vunpack.c.h.b16 %v3182
    %v4449 = vunpack.c.l.b16 %v3183
    %v4450 = vunpack.c.h.b16 %v3183
    %v4451 = vunpack.c.l.b16 %v3184
    %v4452 = vunpack.c.h.b16 %v3184
    %v4453 = vunpack.c.l.b16 %v3185
    %v4454 = vunpack.c.l.b16 %v3186
    %v4455 = vunpack.c.h.b16 %v3186
    %v4456 = vunpack.c.l.b16 %v3187
    %v4457 = vunpack.c.h.b16 %v3187
    %v4458 = vunpack.c.l.b16 %v3188
    %v4459 = vunpack.c.h.b16 %v3188
    %v4460 = vunpack.c.l.b16 %v3189
    %v4461 = vunpack.c.l.b16 %v3190
    %v4462 = vunpack.c.h.b16 %v3190
    %v4463 = vunpack.c.l.b16 %v3191
    %v4464 = vunpack.c.h.b16 %v3191
    %v4465 = vunpack.c.l.b16 %v3192
    %v4466 = vunpack.c.h.b16 %v3192
    %v4467 = vunpack.c.l.b16 %v3193
    %v4468 = vunpack.c.l.b16 %v3194
    %v4469 = vunpack.c.h.b16 %v3194
    %v4470 = vunpack.c.l.b16 %v3195
    %v4471 = vunpack.c.h.b16 %v3195
    %v4472 = vunpack.c.l.b16 %v3196
    %v4473 = vunpack.c.h.b16 %v3196
    %v4474 = vunpack.c.l.b16 %v3197
    %v4475 = vunpack.c.l.b16 %v3198
    %v4476 = vunpack.c.h.b16 %v3198
    %v4477 = vunpack.c.l.b16 %v3199
    %v4478 = vunpack.c.h.b16 %v3199
    %v4479 = vunpack.c.l.b16 %v3200
    %v4480 = vunpack.c.h.b16 %v3200
    %v4481 = vunpack.c.l.b16 %v3201
    %v4482 = vunpack.c.l.b16 %v3202
    %v4483 = vunpack.c.h.b16 %v3202
    %v4484 = vunpack.c.l.b16 %v3203
    %v4485 = vunpack.c.h.b16 %v3203
    %v4486 = vunpack.c.l.b16 %v3204
    %v4487 = vunpack.c.h.b16 %v3204
    %v4488 = vunpack.c.l.b16 %v3205
    %v4489 = vunpack.c.l.b16 %v3206
    %v4490 = vunpack.c.h.b16 %v3206
    %v4491 = vunpack.c.l.b16 %v3207
    %v4492 = vunpack.c.h.b16 %v3207
    %v4493 = vunpack.c.l.b16 %v3208
    %v4494 = vunpack.c.h.b16 %v3208
    %v4495 = vunpack.c.l.b16 %v3209
    %v4496 = vunpack.c.l.b16 %v3210
    %v4497 = vunpack.c.h.b16 %v3210
    %v4498 = vunpack.c.l.b16 %v3211
    %v4499 = vunpack.c.h.b16 %v3211
    %v4500 = vunpack.c.l.b16 %v3212
    %v4501 = vunpack.c.h.b16 %v3212
    %v4502 = vunpack.c.l.b16 %v3213
    %v4503 = vunpack.c.l.b16 %v3214
    %v4504 = vunpack.c.h.b16 %v3214
    %v4505 = vunpack.c.l.b16 %v3215
    %v4506 = vunpack.c.h.b16 %v3215
    %v4507 = vunpack.c.l.b16 %v3216
    %v4508 = vunpack.c.h.b16 %v3216
    %v4509 = vunpack.c.l.b16 %v3217
    %v4510 = vunpack.c.l.b16 %v3218
    %v4511 = vunpack.c.h.b16 %v3218
    %v4512 = vunpack.c.l.b16 %v3219
    %v4513 = vunpack.c.h.b16 %v3219
    %v4514 = vunpack.c.l.b16 %v3220
    %v4515 = vunpack.c.h.b16 %v3220
    %v4516 = vunpack.c.l.b16 %v3221
    %v4517 = vunpack.c.l.b16 %v3222
    %v4518 = vunpack.c.h.b16 %v3222
    %v4519 = vunpack.c.l.b16 %v3223
    %v4520 = vunpack.c.h.b16 %v3223
    %v4521 = vunpack.c.l.b16 %v3224
    %v4522 = vunpack.c.h.b16 %v3224
    %v4523 = vunpack.c.l.b16 %v3225
    %v4524 = vunpack.c.l.b16 %v3226
    %v4525 = vunpack.c.h.b16 %v3226
    %v4526 = vunpack.c.l.b16 %v3227
    %v4527 = vunpack.c.h.b16 %v3227
    %v4528 = vunpack.c.l.b16 %v3228
    %v4529 = vunpack.c.h.b16 %v3228
    %v4530 = vunpack.c.l.b16 %v3229
    %v4531 = vunpack.c.l.b16 %v3230
    %v4532 = vunpack.c.h.b16 %v3230
    %v4533 = vunpack.c.l.b16 %v3231
    %v4534 = vunpack.c.h.b16 %v3231
    %v4535 = vunpack.c.l.b16 %v3232
    %v4536 = vunpack.c.h.b16 %v3232
    %v4537 = vunpack.c.l.b16 %v3233
    %v4538 = vunpack.c.l.b16 %v3234
    %v4539 = vunpack.c.h.b16 %v3234
    %v4540 = vunpack.c.l.b16 %v3235
    %v4541 = vunpack.c.h.b16 %v3235
    %v4542 = vunpack.c.l.b16 %v3236
    %v4543 = vunpack.c.h.b16 %v3236
    %v4544 = vunpack.c.l.b16 %v3237
    %v4545 = vunpack.c.l.b16 %v3238
    %v4546 = vunpack.c.h.b16 %v3238
    %v4547 = vunpack.c.l.b16 %v3239
    %v4548 = vunpack.c.h.b16 %v3239
    %v4549 = vunpack.c.l.b16 %v3240
    %v4550 = vunpack.c.h.b16 %v3240
    %v4551 = vunpack.c.l.b16 %v3241
    %v4552 = vunpack.c.l.b16 %v3242
    %v4553 = vunpack.c.h.b16 %v3242
    %v4554 = vunpack.c.l.b16 %v3243
    %v4555 = vunpack.c.h.b16 %v3243
    %v4556 = vunpack.c.l.b16 %v3244
    %v4557 = vunpack.c.h.b16 %v3244
    %v4558 = vunpack.c.l.b16 %v3245
    %v4559 = vunpack.c.l.b16 %v3246
    %v4560 = vunpack.c.h.b16 %v3246
    %v4561 = vunpack.c.l.b16 %v3247
    %v4562 = vunpack.c.h.b16 %v3247
    %v4563 = vunpack.c.l.b16 %v3248
    %v4564 = vunpack.c.h.b16 %v3248
    %v4565 = vunpack.c.l.b16 %v3249
    %v4566 = vunpack.c.l.b16 %v3250
    %v4567 = vunpack.c.h.b16 %v3250
    %v4568 = vunpack.c.l.b16 %v3251
    %v4569 = vunpack.c.h.b16 %v3251
    %v4570 = vunpack.c.l.b16 %v3252
    %v4571 = vunpack.c.h.b16 %v3252
    %v4572 = vunpack.c.l.b16 %v3253
    %v4573 = vunpack.c.l.b16 %v3254
    %v4574 = vunpack.c.h.b16 %v3254
    %v4575 = vunpack.c.l.b16 %v3255
    %v4576 = vunpack.c.h.b16 %v3255
    %v4577 = vunpack.c.l.b16 %v3256
    %v4578 = vunpack.c.h.b16 %v3256
    %v4579 = vunpack.c.l.b16 %v3257
    %v4580 = vunpack.c.l.b16 %v3258
    %v4581 = vunpack.c.h.b16 %v3258
    %v4582 = vunpack.c.l.b16 %v3259
    %v4583 = vunpack.c.h.b16 %v3259
    %v4584 = vunpack.c.l.b16 %v3260
    %v4585 = vunpack.c.h.b16 %v3260
    %v4586 = vunpack.c.l.b16 %v3261
    %v4587 = vunpack.c.l.b16 %v3262
    %v4588 = vunpack.c.h.b16 %v3262
    %v4589 = vunpack.c.l.b16 %v3263
    %v4590 = vunpack.c.h.b16 %v3263
    %v4591 = vunpack.c.l.b16 %v3264
    %v4592 = vunpack.c.h.b16 %v3264
    %v4593 = vunpack.c.l.b16 %v3265
    %v4594 = vunpack.c.l.b16 %v3266
    %v4595 = vunpack.c.h.b16 %v3266
    %v4596 = vunpack.c.l.b16 %v3267
    %v4597 = vunpack.c.h.b16 %v3267
    %v4598 = vunpack.c.l.b16 %v3268
    %v4599 = vunpack.c.h.b16 %v3268
    %v4600 = vunpack.c.l.b16 %v3269
    %v4601 = vunpack.c.l.b16 %v3270
    %v4602 = vunpack.c.h.b16 %v3270
    %v4603 = vunpack.c.l.b16 %v3271
    %v4604 = vunpack.c.h.b16 %v3271
    %v4605 = vunpack.c.l.b16 %v3272
    %v4606 = vunpack.c.h.b16 %v3272
    %v4607 = vunpack.c.l.b16 %v3273
    %v4608 = vunpack.c.l.b16 %v3274
    %v4609 = vunpack.c.h.b16 %v3274
    %v4610 = vunpack.c.l.b16 %v3275
    %v4611 = vunpack.c.h.b16 %v3275
    %v4612 = vunpack.c.l.b16 %v3276
    %v4613 = vunpack.c.h.b16 %v3276
    %v4614 = vunpack.c.l.b16 %v3277
    %v4615 = vunpack.c.l.b16 %v3278
    %v4616 = vunpack.c.h.b16 %v3278
    %v4617 = vunpack.c.l.b16 %v3279
    %v4618 = vunpack.c.h.b16 %v3279
    %v4619 = vunpack.c.l.b16 %v3280
    %v4620 = vunpack.c.h.b16 %v3280
    %v4621 = vunpack.c.l.b16 %v3281
    %v4622 = vunpack.c.l.b16 %v3282
    %v4623 = vunpack.c.h.b16 %v3282
    %v4624 = vunpack.c.l.b16 %v3283
    %v4625 = vunpack.c.h.b16 %v3283
    %v4626 = vunpack.c.l.b16 %v3284
    %v4627 = vunpack.c.h.b16 %v3284
    %v4628 = vunpack.c.l.b16 %v3285
    %v4629 = vunpack.c.l.b16 %v3286
    %v4630 = vunpack.c.h.b16 %v3286
    %v4631 = vunpack.c.l.b16 %v3287
    %v4632 = vunpack.c.h.b16 %v3287
    %v4633 = vunpack.c.l.b16 %v3288
    %v4634 = vunpack.c.h.b16 %v3288
    %v4635 = vunpack.c.l.b16 %v3289
    %v4636 = vunpack.c.l.b16 %v3290
    %v4637 = vunpack.c.h.b16 %v3290
    %v4638 = vunpack.c.l.b16 %v3291
    %v4639 = vunpack.c.h.b16 %v3291
    %v4640 = vunpack.c.l.b16 %v3292
    %v4641 = vunpack.c.h.b16 %v3292
    %v4642 = vunpack.c.l.b16 %v3293
    %v4643 = vunpack.c.l.b16 %v3294
    %v4644 = vunpack.c.h.b16 %v3294
    %v4645 = vunpack.c.l.b16 %v3295
    %v4646 = vunpack.c.h.b16 %v3295
    %v4647 = vunpack.c.l.b16 %v3296
    %v4648 = vunpack.c.h.b16 %v3296
    %v4649 = vunpack.c.l.b16 %v3297
    %v4650 = vunpack.c.l.b16 %v3298
    %v4651 = vunpack.c.h.b16 %v3298
    %v4652 = vunpack.c.l.b16 %v3299
    %v4653 = vunpack.c.h.b16 %v3299
    %v4654 = vunpack.c.l.b16 %v3300
    %v4655 = vunpack.c.h.b16 %v3300
    %v4656 = vunpack.c.l.b16 %v3301
    %v4657 = vunpack.c.l.b16 %v3302
    %v4658 = vunpack.c.h.b16 %v3302
    %v4659 = vunpack.c.l.b16 %v3303
    %v4660 = vunpack.c.h.b16 %v3303
    %v4661 = vunpack.c.l.b16 %v3304
    %v4662 = vunpack.c.h.b16 %v3304
    %v4663 = vunpack.c.l.b16 %v3305
    %v4664 = vunpack.c.l.b16 %v3306
    %v4665 = vunpack.c.h.b16 %v3306
    %v4666 = vunpack.c.l.b16 %v3307
    %v4667 = vunpack.c.h.b16 %v3307
    %v4668 = vunpack.c.l.b16 %v3308
    %v4669 = vunpack.c.h.b16 %v3308
    %v4670 = vunpack.c.l.b16 %v3309
    %v4671 = vunpack.c.l.b16 %v3310
    %v4672 = vunpack.c.h.b16 %v3310
    %v4673 = vunpack.c.l.b16 %v3311
    %v4674 = vunpack.c.h.b16 %v3311
    %v4675 = vunpack.c.l.b16 %v3312
    %v4676 = vunpack.c.h.b16 %v3312
    %v4677 = vunpack.c.l.b16 %v3313
    %v4678 = vunpack.c.l.b16 %v3314
    %v4679 = vunpack.c.h.b16 %v3314
    %v4680 = vunpack.c.l.b16 %v3315
    %v4681 = vunpack.c.h.b16 %v3315
    %v4682 = vunpack.c.l.b16 %v3316
    %v4683 = vunpack.c.h.b16 %v3316
    %v4684 = vunpack.c.l.b16 %v3317
    %v4685 = vunpack.c.l.b16 %v3318
    %v4686 = vunpack.c.h.b16 %v3318
    %v4687 = vunpack.c.l.b16 %v3319
    %v4688 = vunpack.c.h.b16 %v3319
    %v4689 = vunpack.c.l.b16 %v3320
    %v4690 = vunpack.c.h.b16 %v3320
    %v4691 = vunpack.c.l.b16 %v3321
    %v4692 = vunpack.c.l.b16 %v3322
    %v4693 = vunpack.c.h.b16 %v3322
    %v4694 = vunpack.c.l.b16 %v3323
    %v4695 = vunpack.c.h.b16 %v3323
    %v4696 = vunpack.c.l.b16 %v3324
    %v4697 = vunpack.c.h.b16 %v3324
    %v4698 = vunpack.c.l.b16 %v3325
    %v4699 = vunpack.c.l.b16 %v3326
    %v4700 = vunpack.c.h.b16 %v3326
    %v4701 = vunpack.c.l.b16 %v3327
    %v4702 = vunpack.c.h.b16 %v3327
    %v4703 = vunpack.c.l.b16 %v3328
    %v4704 = vunpack.c.h.b16 %v3328
    %v4705 = vunpack.c.l.b16 %v3329
    %v4706 = vunpack.c.l.b16 %v3330
    %v4707 = vunpack.c.h.b16 %v3330
    %v4708 = vunpack.c.l.b16 %v3331
    %v4709 = vunpack.c.h.b16 %v3331
    %v4710 = vunpack.c.l.b16 %v3332
    %v4711 = vunpack.c.h.b16 %v3332
    %v4712 = vunpack.c.l.b16 %v3333
    %v4713 = vunpack.c.l.b16 %v3334
    %v4714 = vunpack.c.h.b16 %v3334
    %v4715 = vunpack.c.l.b16 %v3335
    %v4716 = vunpack.c.h.b16 %v3335
    %v4717 = vunpack.c.l.b16 %v3336
    %v4718 = vunpack.c.h.b16 %v3336
    %v4719 = vunpack.c.l.b16 %v3337
    %v4720 = vunpack.c.l.b16 %v3338
    %v4721 = vunpack.c.h.b16 %v3338
    %v4722 = vunpack.c.l.b16 %v3339
    %v4723 = vunpack.c.h.b16 %v3339
    %v4724 = vunpack.c.l.b16 %v3340
    %v4725 = vunpack.c.h.b16 %v3340
    %v4726 = vunpack.c.l.b16 %v3341
    %v4727 = vunpack.c.l.b16 %v3342
    %v4728 = vunpack.c.h.b16 %v3342
    %v4729 = vunpack.c.l.b16 %v3343
    %v4730 = vunpack.c.h.b16 %v3343
    %v4731 = vunpack.c.l.b16 %v3344
    %v4732 = vunpack.c.h.b16 %v3344
    %v4733 = vunpack.c.l.b16 %v3345
    %v4734 = vunpack.c.l.b16 %v3346
    %v4735 = vunpack.c.h.b16 %v3346
    %v4736 = vunpack.c.l.b16 %v3347
    %v4737 = vunpack.c.h.b16 %v3347
    %v4738 = vunpack.c.l.b16 %v3348
    %v4739 = vunpack.c.h.b16 %v3348
    %v4740 = vunpack.c.l.b16 %v3349
    %v4741 = vunpack.c.l.b16 %v3350
    %v4742 = vunpack.c.h.b16 %v3350
    %v4743 = vunpack.c.l.b16 %v3351
    %v4744 = vunpack.c.h.b16 %v3351
    %v4745 = vunpack.c.l.b16 %v3352
    %v4746 = vunpack.c.h.b16 %v3352
    %v4747 = vunpack.c.l.b16 %v3353
    %v4748 = vunpack.c.l.b16 %v3354
    %v4749 = vunpack.c.h.b16 %v3354
    %v4750 = vunpack.c.l.b16 %v3355
    %v4751 = vunpack.c.h.b16 %v3355
    %v4752 = vunpack.c.l.b16 %v3356
    %v4753 = vunpack.c.h.b16 %v3356
    %v4754 = vunpack.c.l.b16 %v3357
    %v4755 = vunpack.c.l.b16 %v3358
    %v4756 = vunpack.c.h.b16 %v3358
    %v4757 = vunpack.c.l.b16 %v3359
    %v4758 = vunpack.c.h.b16 %v3359
    %v4759 = vunpack.c.l.b16 %v3360
    %v4760 = vunpack.c.h.b16 %v3360
    %v4761 = vunpack.c.l.b16 %v3361
    %v4762 = vunpack.c.l.b16 %v3362
    %v4763 = vunpack.c.h.b16 %v3362
    %v4764 = vunpack.c.l.b16 %v3363
    %v4765 = vunpack.c.h.b16 %v3363
    %v4766 = vunpack.c.l.b16 %v3364
    %v4767 = vunpack.c.h.b16 %v3364
    %v4768 = vunpack.c.l.b16 %v3365
    %v4769 = vunpack.c.l.b16 %v3366
    %v4770 = vunpack.c.h.b16 %v3366
    %v4771 = vunpack.c.l.b16 %v3367
    %v4772 = vunpack.c.h.b16 %v3367
    %v4773 = vunpack.c.l.b16 %v3368
    %v4774 = vunpack.c.h.b16 %v3368
    %v4775 = vunpack.c.l.b16 %v3369
    %v4776 = vunpack.c.l.b16 %v3370
    %v4777 = vunpack.c.h.b16 %v3370
    %v4778 = vunpack.c.l.b16 %v3371
    %v4779 = vunpack.c.h.b16 %v3371
    %v4780 = vunpack.c.l.b16 %v3372
    %v4781 = vunpack.c.h.b16 %v3372
    %v4782 = vunpack.c.l.b16 %v3373
    %v4783 = vunpack.c.l.b16 %v3374
    %v4784 = vunpack.c.h.b16 %v3374
    %v4785 = vunpack.c.l.b16 %v3375
    %v4786 = vunpack.c.h.b16 %v3375
    %v4787 = vunpack.c.l.b16 %v3376
    %v4788 = vunpack.c.h.b16 %v3376
    %v4789 = vunpack.c.l.b16 %v3377
    %v4790 = vunpack.c.l.b16 %v3378
    %v4791 = vunpack.c.h.b16 %v3378
    %v4792 = vunpack.c.l.b16 %v3379
    %v4793 = vunpack.c.h.b16 %v3379
    %v4794 = vunpack.c.l.b16 %v3380
    %v4795 = vunpack.c.h.b16 %v3380
    %v4796 = vunpack.c.l.b16 %v3381
    %v4797 = vunpack.c.l.b16 %v3382
    %v4798 = vunpack.c.h.b16 %v3382
    %v4799 = vunpack.c.l.b16 %v3383
    %v4800 = vunpack.c.h.b16 %v3383
    %v4801 = vunpack.c.l.b16 %v3384
    %v4802 = vunpack.c.h.b16 %v3384
    %v4803 = vunpack.c.l.b16 %v3385
    %v4804 = vunpack.c.l.b16 %v3386
    %v4805 = vunpack.c.h.b16 %v3386
    %v4806 = vunpack.c.l.b16 %v3387
    %v4807 = vunpack.c.h.b16 %v3387
    %v4808 = vunpack.c.l.b16 %v3388
    %v4809 = vunpack.c.h.b16 %v3388
    %v4810 = vunpack.c.l.b16 %v3389
    %v4811 = vunpack.c.l.b16 %v3390
    %v4812 = vunpack.c.h.b16 %v3390
    %v4813 = vunpack.c.l.b16 %v3391
    %v4814 = vunpack.c.h.b16 %v3391
    %v4815 = vunpack.c.l.b16 %v3392
    %v4816 = vunpack.c.h.b16 %v3392
    %v4817 = vunpack.c.l.b16 %v3393
    %v4818 = vpack.c.b16 %v3929, %v3922
    %v4819 = vpack.c.b16 %v3930, %v3923
    %v4820 = vpack.c.b16 %v3931, %v3924
    %v4821 = vpack.c.b16 %v3932, %v3925
    %v4822 = vpack.c.b16 %v3933, %v3926
    %v4823 = vpack.c.b16 %v3934, %v3927
    %v4824 = vpack.c.b16 %v3935, %v3928
    %v4825 = vpack.c.b16 %v3943, %v3936
    %v4826 = vpack.c.b16 %v3944, %v3937
    %v4827 = vpack.c.b16 %v3945, %v3938
    %v4828 = vpack.c.b16 %v3946, %v3939
    %v4829 = vpack.c.b16 %v3947, %v3940
    %v4830 = vpack.c.b16 %v3948, %v3941
    %v4831 = vpack.c.b16 %v3949, %v3942
    %v4832 = vpack.c.b16 %v3957, %v3950
    %v4833 = vpack.c.b16 %v3958, %v3951
    %v4834 = vpack.c.b16 %v3959, %v3952
    %v4835 = vpack.c.b16 %v3960, %v3953
    %v4836 = vpack.c.b16 %v3961, %v3954
    %v4837 = vpack.c.b16 %v3962, %v3955
    %v4838 = vpack.c.b16 %v3963, %v3956
    %v4839 = vpack.c.b16 %v3971, %v3964
    %v4840 = vpack.c.b16 %v3972, %v3965
    %v4841 = vpack.c.b16 %v3973, %v3966
    %v4842 = vpack.c.b16 %v3974, %v3967
    %v4843 = vpack.c.b16 %v3975, %v3968
    %v4844 = vpack.c.b16 %v3976, %v3969
    %v4845 = vpack.c.b16 %v3977, %v3970
    %v4846 = vpack.c.b16 %v3985, %v3978
    %v4847 = vpack.c.b16 %v3986, %v3979
    %v4848 = vpack.c.b16 %v3987, %v3980
    %v4849 = vpack.c.b16 %v3988, %v3981
    %v4850 = vpack.c.b16 %v3989, %v3982
    %v4851 = vpack.c.b16 %v3990, %v3983
    %v4852 = vpack.c.b16 %v3991, %v3984
    %v4853 = vpack.c.b16 %v3999, %v3992
    %v4854 = vpack.c.b16 %v4000, %v3993
    %v4855 = vpack.c.b16 %v4001, %v3994
    %v4856 = vpack.c.b16 %v4002, %v3995
    %v4857 = vpack.c.b16 %v4003, %v3996
    %v4858 = vpack.c.b16 %v4004, %v3997
    %v4859 = vpack.c.b16 %v4005, %v3998
    %v4860 = vpack.c.b16 %v4013, %v4006
    %v4861 = vpack.c.b16 %v4014, %v4007
    %v4862 = vpack.c.b16 %v4015, %v4008
    %v4863 = vpack.c.b16 %v4016, %v4009
    %v4864 = vpack.c.b16 %v4017, %v4010
    %v4865 = vpack.c.b16 %v4018, %v4011
    %v4866 = vpack.c.b16 %v4019, %v4012
    %v4867 = vpack.c.b16 %v4027, %v4020
    %v4868 = vpack.c.b16 %v4028, %v4021
    %v4869 = vpack.c.b16 %v4029, %v4022
    %v4870 = vpack.c.b16 %v4030, %v4023
    %v4871 = vpack.c.b16 %v4031, %v4024
    %v4872 = vpack.c.b16 %v4032, %v4025
    %v4873 = vpack.c.b16 %v4033, %v4026
    %v4874 = vpack.c.b16 %v4041, %v4034
    %v4875 = vpack.c.b16 %v4042, %v4035
    %v4876 = vpack.c.b16 %v4043, %v4036
    %v4877 = vpack.c.b16 %v4044, %v4037
    %v4878 = vpack.c.b16 %v4045, %v4038
    %v4879 = vpack.c.b16 %v4046, %v4039
    %v4880 = vpack.c.b16 %v4047, %v4040
    %v4881 = vpack.c.b16 %v4055, %v4048
    %v4882 = vpack.c.b16 %v4056, %v4049
    %v4883 = vpack.c.b16 %v4057, %v4050
    %v4884 = vpack.c.b16 %v4058, %v4051
    %v4885 = vpack.c.b16 %v4059, %v4052
    %v4886 = vpack.c.b16 %v4060, %v4053
    %v4887 = vpack.c.b16 %v4061, %v4054
    %v4888 = vpack.c.b16 %v4069, %v4062
    %v4889 = vpack.c.b16 %v4070, %v4063
    %v4890 = vpack.c.b16 %v4071, %v4064
    %v4891 = vpack.c.b16 %v4072, %v4065
    %v4892 = vpack.c.b16 %v4073, %v4066
    %v4893 = vpack.c.b16 %v4074, %v4067
    %v4894 = vpack.c.b16 %v4075, %v4068
    %v4895 = vpack.c.b16 %v4083, %v4076
    %v4896 = vpack.c.b16 %v4084, %v4077
    %v4897 = vpack.c.b16 %v4085, %v4078
    %v4898 = vpack.c.b16 %v4086, %v4079
    %v4899 = vpack.c.b16 %v4087, %v4080
    %v4900 = vpack.c.b16 %v4088, %v4081
    %v4901 = vpack.c.b16 %v4089, %v4082
    %v4902 = vpack.c.b16 %v4097, %v4090
    %v4903 = vpack.c.b16 %v4098, %v4091
    %v4904 = vpack.c.b16 %v4099, %v4092
    %v4905 = vpack.c.b16 %v4100, %v4093
    %v4906 = vpack.c.b16 %v4101, %v4094
    %v4907 = vpack.c.b16 %v4102, %v4095
    %v4908 = vpack.c.b16 %v4103, %v4096
    %v4909 = vpack.c.b16 %v4111, %v4104
    %v4910 = vpack.c.b16 %v4112, %v4105
    %v4911 = vpack.c.b16 %v4113, %v4106
    %v4912 = vpack.c.b16 %v4114, %v4107
    %v4913 = vpack.c.b16 %v4115, %v4108
    %v4914 = vpack.c.b16 %v4116, %v4109
    %v4915 = vpack.c.b16 %v4117, %v4110
    %v4916 = vpack.c.b16 %v4125, %v4118
    %v4917 = vpack.c.b16 %v4126, %v4119
    %v4918 = vpack.c.b16 %v4127, %v4120
    %v4919 = vpack.c.b16 %v4128, %v4121
    %v4920 = vpack.c.b16 %v4129, %v4122
    %v4921 = vpack.c.b16 %v4130, %v4123
    %v4922 = vpack.c.b16 %v4131, %v4124
    %v4923 = vpack.c.b16 %v4139, %v4132
    %v4924 = vpack.c.b16 %v4140, %v4133
    %v4925 = vpack.c.b16 %v4141, %v4134
    %v4926 = vpack.c.b16 %v4142, %v4135
    %v4927 = vpack.c.b16 %v4143, %v4136
    %v4928 = vpack.c.b16 %v4144, %v4137
    %v4929 = vpack.c.b16 %v4145, %v4138
    %v4930 = vpack.c.b16 %v4153, %v4146
    %v4931 = vpack.c.b16 %v4154, %v4147
    %v4932 = vpack.c.b16 %v4155, %v4148
    %v4933 = vpack.c.b16 %v4156, %v4149
    %v4934 = vpack.c.b16 %v4157, %v4150
    %v4935 = vpack.c.b16 %v4158, %v4151
    %v4936 = vpack.c.b16 %v4159, %v4152
    %v4937 = vpack.c.b16 %v4167, %v4160
    %v4938 = vpack.c.b16 %v4168, %v4161
    %v4939 = vpack.c.b16 %v4169, %v4162
    %v4940 = vpack.c.b16 %v4170, %v4163
    %v4941 = vpack.c.b16 %v4171, %v4164
    %v4942 = vpack.c.b16 %v4172, %v4165
    %v4943 = vpack.c.b16 %v4173, %v4166
    %v4944 = vpack.c.b16 %v4181, %v4174
    %v4945 = vpack.c.b16 %v4182, %v4175
    %v4946 = vpack.c.b16 %v4183, %v4176
    %v4947 = vpack.c.b16 %v4184, %v4177
    %v4948 = vpack.c.b16 %v4185, %v4178
    %v4949 = vpack.c.b16 %v4186, %v4179
    %v4950 = vpack.c.b16 %v4187, %v4180
    %v4951 = vpack.c.b16 %v4195, %v4188
    %v4952 = vpack.c.b16 %v4196, %v4189
    %v4953 = vpack.c.b16 %v4197, %v4190
    %v4954 = vpack.c.b16 %v4198, %v4191
    %v4955 = vpack.c.b16 %v4199, %v4192
    %v4956 = vpack.c.b16 %v4200, %v4193
    %v4957 = vpack.c.b16 %v4201, %v4194
    %v4958 = vpack.c.b16 %v4209, %v4202
    %v4959 = vpack.c.b16 %v4210, %v4203
    %v4960 = vpack.c.b16 %v4211, %v4204
    %v4961 = vpack.c.b16 %v4212, %v4205
    %v4962 = vpack.c.b16 %v4213, %v4206
    %v4963 = vpack.c.b16 %v4214, %v4207
    %v4964 = vpack.c.b16 %v4215, %v4208
    %v4965 = vpack.c.b16 %v4223, %v4216
    %v4966 = vpack.c.b16 %v4224, %v4217
    %v4967 = vpack.c.b16 %v4225, %v4218
    %v4968 = vpack.c.b16 %v4226, %v4219
    %v4969 = vpack.c.b16 %v4227, %v4220
    %v4970 = vpack.c.b16 %v4228, %v4221
    %v4971 = vpack.c.b16 %v4229, %v4222
    %v4972 = vpack.c.b16 %v4237, %v4230
    %v4973 = vpack.c.b16 %v4238, %v4231
    %v4974 = vpack.c.b16 %v4239, %v4232
    %v4975 = vpack.c.b16 %v4240, %v4233
    %v4976 = vpack.c.b16 %v4241, %v4234
    %v4977 = vpack.c.b16 %v4242, %v4235
    %v4978 = vpack.c.b16 %v4243, %v4236
    %v4979 = vpack.c.b16 %v4251, %v4244
    %v4980 = vpack.c.b16 %v4252, %v4245
    %v4981 = vpack.c.b16 %v4253, %v4246
    %v4982 = vpack.c.b16 %v4254, %v4247
    %v4983 = vpack.c.b16 %v4255, %v4248
    %v4984 = vpack.c.b16 %v4256, %v4249
    %v4985 = vpack.c.b16 %v4257, %v4250
    %v4986 = vpack.c.b16 %v4265, %v4258
    %v4987 = vpack.c.b16 %v4266, %v4259
    %v4988 = vpack.c.b16 %v4267, %v4260
    %v4989 = vpack.c.b16 %v4268, %v4261
    %v4990 = vpack.c.b16 %v4269, %v4262
    %v4991 = vpack.c.b16 %v4270, %v4263
    %v4992 = vpack.c.b16 %v4271, %v4264
    %v4993 = vpack.c.b16 %v4279, %v4272
    %v4994 = vpack.c.b16 %v4280, %v4273
    %v4995 = vpack.c.b16 %v4281, %v4274
    %v4996 = vpack.c.b16 %v4282, %v4275
    %v4997 = vpack.c.b16 %v4283, %v4276
    %v4998 = vpack.c.b16 %v4284, %v4277
    %v4999 = vpack.c.b16 %v4285, %v4278
    %v5000 = vpack.c.b16 %v4293, %v4286
    %v5001 = vpack.c.b16 %v4294, %v4287
    %v5002 = vpack.c.b16 %v4295, %v4288
    %v5003 = vpack.c.b16 %v4296, %v4289
    %v5004 = vpack.c.b16 %v4297, %v4290
    %v5005 = vpack.c.b16 %v4298, %v4291
    %v5006 = vpack.c.b16 %v4299, %v4292
    %v5007 = vpack.c.b16 %v4307, %v4300
    %v5008 = vpack.c.b16 %v4308, %v4301
    %v5009 = vpack.c.b16 %v4309, %v4302
    %v5010 = vpack.c.b16 %v4310, %v4303
    %v5011 = vpack.c.b16 %v4311, %v4304
    %v5012 = vpack.c.b16 %v4312, %v4305
    %v5013 = vpack.c.b16 %v4313, %v4306
    %v5014 = vpack.c.b16 %v4321, %v4314
    %v5015 = vpack.c.b16 %v4322, %v4315
    %v5016 = vpack.c.b16 %v4323, %v4316
    %v5017 = vpack.c.b16 %v4324, %v4317
    %v5018 = vpack.c.b16 %v4325, %v4318
    %v5019 = vpack.c.b16 %v4326, %v4319
    %v5020 = vpack.c.b16 %v4327, %v4320
    %v5021 = vpack.c.b16 %v4335, %v4328
    %v5022 = vpack.c.b16 %v4336, %v4329
    %v5023 = vpack.c.b16 %v4337, %v4330
    %v5024 = vpack.c.b16 %v4338, %v4331
    %v5025 = vpack.c.b16 %v4339, %v4332
    %v5026 = vpack.c.b16 %v4340, %v4333
    %v5027 = vpack.c.b16 %v4341, %v4334
    %v5028 = vpack.c.b16 %v4349, %v4342
    %v5029 = vpack.c.b16 %v4350, %v4343
    %v5030 = vpack.c.b16 %v4351, %v4344
    %v5031 = vpack.c.b16 %v4352, %v4345
    %v5032 = vpack.c.b16 %v4353, %v4346
    %v5033 = vpack.c.b16 %v4354, %v4347
    %v5034 = vpack.c.b16 %v4355, %v4348
    %v5035 = vpack.c.b16 %v4363, %v4356
    %v5036 = vpack.c.b16 %v4364, %v4357
    %v5037 = vpack.c.b16 %v4365, %v4358
    %v5038 = vpack.c.b16 %v4366, %v4359
    %v5039 = vpack.c.b16 %v4367, %v4360
    %v5040 = vpack.c.b16 %v4368, %v4361
    %v5041 = vpack.c.b16 %v4369, %v4362
    %v5042 = vpack.c.b16 %v4377, %v4370
    %v5043 = vpack.c.b16 %v4378, %v4371
    %v5044 = vpack.c.b16 %v4379, %v4372
    %v5045 = vpack.c.b16 %v4380, %v4373
    %v5046 = vpack.c.b16 %v4381, %v4374
    %v5047 = vpack.c.b16 %v4382, %v4375
    %v5048 = vpack.c.b16 %v4383, %v4376
    %v5049 = vpack.c.b16 %v4391, %v4384
    %v5050 = vpack.c.b16 %v4392, %v4385
    %v5051 = vpack.c.b16 %v4393, %v4386
    %v5052 = vpack.c.b16 %v4394, %v4387
    %v5053 = vpack.c.b16 %v4395, %v4388
    %v5054 = vpack.c.b16 %v4396, %v4389
    %v5055 = vpack.c.b16 %v4397, %v4390
    %v5056 = vpack.c.b16 %v4405, %v4398
    %v5057 = vpack.c.b16 %v4406, %v4399
    %v5058 = vpack.c.b16 %v4407, %v4400
    %v5059 = vpack.c.b16 %v4408, %v4401
    %v5060 = vpack.c.b16 %v4409, %v4402
    %v5061 = vpack.c.b16 %v4410, %v4403
    %v5062 = vpack.c.b16 %v4411, %v4404
    %v5063 = vpack.c.b16 %v4419, %v4412
    %v5064 = vpack.c.b16 %v4420, %v4413
    %v5065 = vpack.c.b16 %v4421, %v4414
    %v5066 = vpack.c.b16 %v4422, %v4415
    %v5067 = vpack.c.b16 %v4423, %v4416
    %v5068 = vpack.c.b16 %v4424, %v4417
    %v5069 = vpack.c.b16 %v4425, %v4418
    %v5070 = vpack.c.b16 %v4433, %v4426
    %v5071 = vpack.c.b16 %v4434, %v4427
    %v5072 = vpack.c.b16 %v4435, %v4428
    %v5073 = vpack.c.b16 %v4436, %v4429
    %v5074 = vpack.c.b16 %v4437, %v4430
    %v5075 = vpack.c.b16 %v4438, %v4431
    %v5076 = vpack.c.b16 %v4439, %v4432
    %v5077 = vpack.c.b16 %v4447, %v4440
    %v5078 = vpack.c.b16 %v4448, %v4441
    %v5079 = vpack.c.b16 %v4449, %v4442
    %v5080 = vpack.c.b16 %v4450, %v4443
    %v5081 = vpack.c.b16 %v4451, %v4444
    %v5082 = vpack.c.b16 %v4452, %v4445
    %v5083 = vpack.c.b16 %v4453, %v4446
    %v5084 = vpack.c.b16 %v4461, %v4454
    %v5085 = vpack.c.b16 %v4462, %v4455
    %v5086 = vpack.c.b16 %v4463, %v4456
    %v5087 = vpack.c.b16 %v4464, %v4457
    %v5088 = vpack.c.b16 %v4465, %v4458
    %v5089 = vpack.c.b16 %v4466, %v4459
    %v5090 = vpack.c.b16 %v4467, %v4460
    %v5091 = vpack.c.b16 %v4475, %v4468
    %v5092 = vpack.c.b16 %v4476, %v4469
    %v5093 = vpack.c.b16 %v4477, %v4470
    %v5094 = vpack.c.b16 %v4478, %v4471
    %v5095 = vpack.c.b16 %v4479, %v4472
    %v5096 = vpack.c.b16 %v4480, %v4473
    %v5097 = vpack.c.b16 %v4481, %v4474
    %v5098 = vpack.c.b16 %v4489, %v4482
    %v5099 = vpack.c.b16 %v4490, %v4483
    %v5100 = vpack.c.b16 %v4491, %v4484
    %v5101 = vpack.c.b16 %v4492, %v4485
    %v5102 = vpack.c.b16 %v4493, %v4486
    %v5103 = vpack.c.b16 %v4494, %v4487
    %v5104 = vpack.c.b16 %v4495, %v4488
    %v5105 = vpack.c.b16 %v4503, %v4496
    %v5106 = vpack.c.b16 %v4504, %v4497
    %v5107 = vpack.c.b16 %v4505, %v4498
    %v5108 = vpack.c.b16 %v4506, %v4499
    %v5109 = vpack.c.b16 %v4507, %v4500
    %v5110 = vpack.c.b16 %v4508, %v4501
    %v5111 = vpack.c.b16 %v4509, %v4502
    %v5112 = vpack.c.b16 %v4517, %v4510
    %v5113 = vpack.c.b16 %v4518, %v4511
    %v5114 = vpack.c.b16 %v4519, %v4512
    %v5115 = vpack.c.b16 %v4520, %v4513
    %v5116 = vpack.c.b16 %v4521, %v4514
    %v5117 = vpack.c.b16 %v4522, %v4515
    %v5118 = vpack.c.b16 %v4523, %v4516
    %v5119 = vpack.c.b16 %v4531, %v4524
    %v5120 = vpack.c.b16 %v4532, %v4525
    %v5121 = vpack.c.b16 %v4533, %v4526
    %v5122 = vpack.c.b16 %v4534, %v4527
    %v5123 = vpack.c.b16 %v4535, %v4528
    %v5124 = vpack.c.b16 %v4536, %v4529
    %v5125 = vpack.c.b16 %v4537, %v4530
    %v5126 = vpack.c.b16 %v4545, %v4538
    %v5127 = vpack.c.b16 %v4546, %v4539
    %v5128 = vpack.c.b16 %v4547, %v4540
    %v5129 = vpack.c.b16 %v4548, %v4541
    %v5130 = vpack.c.b16 %v4549, %v4542
    %v5131 = vpack.c.b16 %v4550, %v4543
    %v5132 = vpack.c.b16 %v4551, %v4544
    %v5133 = vpack.c.b16 %v4559, %v4552
    %v5134 = vpack.c.b16 %v4560, %v4553
    %v5135 = vpack.c.b16 %v4561, %v4554
    %v5136 = vpack.c.b16 %v4562, %v4555
    %v5137 = vpack.c.b16 %v4563, %v4556
    %v5138 = vpack.c.b16 %v4564, %v4557
    %v5139 = vpack.c.b16 %v4565, %v4558
    %v5140 = vpack.c.b16 %v4573, %v4566
    %v5141 = vpack.c.b16 %v4574, %v4567
    %v5142 = vpack.c.b16 %v4575, %v4568
    %v5143 = vpack.c.b16 %v4576, %v4569
    %v5144 = vpack.c.b16 %v4577, %v4570
    %v5145 = vpack.c.b16 %v4578, %v4571
    %v5146 = vpack.c.b16 %v4579, %v4572
    %v5147 = vpack.c.b16 %v4587, %v4580
    %v5148 = vpack.c.b16 %v4588, %v4581
    %v5149 = vpack.c.b16 %v4589, %v4582
    %v5150 = vpack.c.b16 %v4590, %v4583
    %v5151 = vpack.c.b16 %v4591, %v4584
    %v5152 = vpack.c.b16 %v4592, %v4585
    %v5153 = vpack.c.b16 %v4593, %v4586
    %v5154 = vpack.c.b16 %v4601, %v4594
    %v5155 = vpack.c.b16 %v4602, %v4595
    %v5156 = vpack.c.b16 %v4603, %v4596
    %v5157 = vpack.c.b16 %v4604, %v4597
    %v5158 = vpack.c.b16 %v4605, %v4598
    %v5159 = vpack.c.b16 %v4606, %v4599
    %v5160 = vpack.c.b16 %v4607, %v4600
    %v5161 = vpack.c.b16 %v4615, %v4608
    %v5162 = vpack.c.b16 %v4616, %v4609
    %v5163 = vpack.c.b16 %v4617, %v4610
    %v5164 = vpack.c.b16 %v4618, %v4611
    %v5165 = vpack.c.b16 %v4619, %v4612
    %v5166 = vpack.c.b16 %v4620, %v4613
    %v5167 = vpack.c.b16 %v4621, %v4614
    %v5168 = vpack.c.b16 %v4629, %v4622
    %v5169 = vpack.c.b16 %v4630, %v4623
    %v5170 = vpack.c.b16 %v4631, %v4624
    %v5171 = vpack.c.b16 %v4632, %v4625
    %v5172 = vpack.c.b16 %v4633, %v4626
    %v5173 = vpack.c.b16 %v4634, %v4627
    %v5174 = vpack.c.b16 %v4635, %v4628
    %v5175 = vpack.c.b16 %v4643, %v4636
    %v5176 = vpack.c.b16 %v4644, %v4637
    %v5177 = vpack.c.b16 %v4645, %v4638
    %v5178 = vpack.c.b16 %v4646, %v4639
    %v5179 = vpack.c.b16 %v4647, %v4640
    %v5180 = vpack.c.b16 %v4648, %v4641
    %v5181 = vpack.c.b16 %v4649, %v4642
    %v5182 = vpack.c.b16 %v4657, %v4650
    %v5183 = vpack.c.b16 %v4658, %v4651
    %v5184 = vpack.c.b16 %v4659, %v4652
    %v5185 = vpack.c.b16 %v4660, %v4653
    %v5186 = vpack.c.b16 %v4661, %v4654
    %v5187 = vpack.c.b16 %v4662, %v4655
    %v5188 = vpack.c.b16 %v4663, %v4656
    %v5189 = vpack.c.b16 %v4671, %v4664
    %v5190 = vpack.c.b16 %v4672, %v4665
    %v5191 = vpack.c.b16 %v4673, %v4666
    %v5192 = vpack.c.b16 %v4674, %v4667
    %v5193 = vpack.c.b16 %v4675, %v4668
    %v5194 = vpack.c.b16 %v4676, %v4669
    %v5195 = vpack.c.b16 %v4677, %v4670
    %v5196 = vpack.c.b16 %v4685, %v4678
    %v5197 = vpack.c.b16 %v4686, %v4679
    %v5198 = vpack.c.b16 %v4687, %v4680
    %v5199 = vpack.c.b16 %v4688, %v4681
    %v5200 = vpack.c.b16 %v4689, %v4682
    %v5201 = vpack.c.b16 %v4690, %v4683
    %v5202 = vpack.c.b16 %v4691, %v4684
    %v5203 = vpack.c.b16 %v4699, %v4692
    %v5204 = vpack.c.b16 %v4700, %v4693
    %v5205 = vpack.c.b16 %v4701, %v4694
    %v5206 = vpack.c.b16 %v4702, %v4695
    %v5207 = vpack.c.b16 %v4703, %v4696
    %v5208 = vpack.c.b16 %v4704, %v4697
    %v5209 = vpack.c.b16 %v4705, %v4698
    %v5210 = vpack.c.b16 %v4713, %v4706
    %v5211 = vpack.c.b16 %v4714, %v4707
    %v5212 = vpack.c.b16 %v4715, %v4708
    %v5213 = vpack.c.b16 %v4716, %v4709
    %v5214 = vpack.c.b16 %v4717, %v4710
    %v5215 = vpack.c.b16 %v4718, %v4711
    %v5216 = vpack.c.b16 %v4719, %v4712
    %v5217 = vpack.c.b16 %v4727, %v4720
    %v5218 = vpack.c.b16 %v4728, %v4721
    %v5219 = vpack.c.b16 %v4729, %v4722
    %v5220 = vpack.c.b16 %v4730, %v4723
    %v5221 = vpack.c.b16 %v4731, %v4724
    %v5222 = vpack.c.b16 %v4732, %v4725
    %v5223 = vpack.c.b16 %v4733, %v4726
    %v5224 = vpack.c.b16 %v4741, %v4734
    %v5225 = vpack.c.b16 %v4742, %v4735
    %v5226 = vpack.c.b16 %v4743, %v4736
    %v5227 = vpack.c.b16 %v4744, %v4737
    %v5228 = vpack.c.b16 %v4745, %v4738
    %v5229 = vpack.c.b16 %v4746, %v4739
    %v5230 = vpack.c.b16 %v4747, %v4740
    %v5231 = vpack.c.b16 %v4755, %v4748
    %v5232 = vpack.c.b16 %v4756, %v4749
    %v5233 = vpack.c.b16 %v4757, %v4750
    %v5234 = vpack.c.b16 %v4758, %v4751
    %v5235 = vpack.c.b16 %v4759, %v4752
    %v5236 = vpack.c.b16 %v4760, %v4753
    %v5237 = vpack.c.b16 %v4761, %v4754
    %v5238 = vpack.c.b16 %v4769, %v4762
    %v5239 = vpack.c.b16 %v4770, %v4763
    %v5240 = vpack.c.b16 %v4771, %v4764
    %v5241 = vpack.c.b16 %v4772, %v4765
    %v5242 = vpack.c.b16 %v4773, %v4766
    %v5243 = vpack.c.b16 %v4774, %v4767
    %v5244 = vpack.c.b16 %v4775, %v4768
    %v5245 = vpack.c.b16 %v4783, %v4776
    %v5246 = vpack.c.b16 %v4784, %v4777
    %v5247 = vpack.c.b16 %v4785, %v4778
    %v5248 = vpack.c.b16 %v4786, %v4779
    %v5249 = vpack.c.b16 %v4787, %v4780
    %v5250 = vpack.c.b16 %v4788, %v4781
    %v5251 = vpack.c.b16 %v4789, %v4782
    %v5252 = vpack.c.b16 %v4797, %v4790
    %v5253 = vpack.c.b16 %v4798, %v4791
    %v5254 = vpack.c.b16 %v4799, %v4792
    %v5255 = vpack.c.b16 %v4800, %v4793
    %v5256 = vpack.c.b16 %v4801, %v4794
    %v5257 = vpack.c.b16 %v4802, %v4795
    %v5258 = vpack.c.b16 %v4803, %v4796
    %v5259 = vpack.c.b16 %v4811, %v4804
    %v5260 = vpack.c.b16 %v4812, %v4805
    %v5261 = vpack.c.b16 %v4813, %v4806
    %v5262 = vpack.c.b16 %v4814, %v4807
    %v5263 = vpack.c.b16 %v4815, %v4808
    %v5264 = vpack.c.b16 %v4816, %v4809
    %v5265 = vpack.c.b16 %v4817, %v4810
    %5714 = vmatpush.bf16.msra.mxu0 %v4867
    %5715 = vmatpush.bf16.msra.mxu0 %v4860
    %5716 = vmatpush.bf16.msra.mxu0 %v4853
    %5717 = vmatpush.bf16.msra.mxu0 %v4846
    %5718 = vmatpush.bf16.msra.mxu0 %v4839
    %5719 = vmatpush.bf16.msra.mxu0 %v4832
    %5720 = vmatpush.bf16.msra.mxu0 %v4825
    %5721 = vmatpush.bf16.msra.mxu0 %v4818
    %5722 = vmatmul.bf16.gmra.mxu0 %v2870
    %v5723 = vpop.f32.mrf.mxu0
    %v5724 = vadd.f32 %v3396, %v5723
    %v5725 = vpop.f32.mrf.mxu0
    %v5726 = vadd.f32 %v3396, %v5725
    %5727 = vdwg.mxu0
    %5728 = vmatpush.bf16.msra.mxu0 %v4923
    %5729 = vmatpush.bf16.msra.mxu0 %v4916
    %5730 = vmatpush.bf16.msra.mxu0 %v4909
    %5731 = vmatpush.bf16.msra.mxu0 %v4902
    %5732 = vmatpush.bf16.msra.mxu0 %v4895
    %5733 = vmatpush.bf16.msra.mxu0 %v4888
    %5734 = vmatpush.bf16.msra.mxu0 %v4881
    %5735 = vmatpush.bf16.msra.mxu0 %v4874
    %5736 = vmatmul.bf16.gmra.mxu0 %v2871
    %v5737 = vpop.f32.mrf.mxu0
    %v5738 = vadd.f32 %v5724, %v5737
    %v5739 = vpop.f32.mrf.mxu0
    %v5740 = vadd.f32 %v5726, %v5739
    %5741 = vdwg.mxu0
    %5742 = vmatpush.bf16.msra.mxu0 %v4979
    %5743 = vmatpush.bf16.msra.mxu0 %v4972
    %5744 = vmatpush.bf16.msra.mxu0 %v4965
    %5745 = vmatpush.bf16.msra.mxu0 %v4958
    %5746 = vmatpush.bf16.msra.mxu0 %v4951
    %5747 = vmatpush.bf16.msra.mxu0 %v4944
    %5748 = vmatpush.bf16.msra.mxu0 %v4937
    %5749 = vmatpush.bf16.msra.mxu0 %v4930
    %5750 = vmatmul.bf16.gmra.mxu0 %v2872
    %v5751 = vpop.f32.mrf.mxu0
    %v5752 = vadd.f32 %v5738, %v5751
    %v5753 = vpop.f32.mrf.mxu0
    %v5754 = vadd.f32 %v5740, %v5753
    %5755 = vdwg.mxu0
    %5756 = vmatpush.bf16.msra.mxu0 %v5035
    %5757 = vmatpush.bf16.msra.mxu0 %v5028
    %5758 = vmatpush.bf16.msra.mxu0 %v5021
    %5759 = vmatpush.bf16.msra.mxu0 %v5014
    %5760 = vmatpush.bf16.msra.mxu0 %v5007
    %5761 = vmatpush.bf16.msra.mxu0 %v5000
    %5762 = vmatpush.bf16.msra.mxu0 %v4993
    %5763 = vmatpush.bf16.msra.mxu0 %v4986
    %5764 = vmatmul.bf16.gmra.mxu0 %v2873
    %v5765 = vpop.f32.mrf.mxu0
    %v5766 = vadd.f32 %v5752, %v5765
    %v5767 = vpop.f32.mrf.mxu0
    %v5768 = vadd.f32 %v5754, %v5767
    %5769 = vdwg.mxu0
    %5770 = vmatpush.bf16.msra.mxu0 %v5091
    %5771 = vmatpush.bf16.msra.mxu0 %v5084
    %5772 = vmatpush.bf16.msra.mxu0 %v5077
    %5773 = vmatpush.bf16.msra.mxu0 %v5070
    %5774 = vmatpush.bf16.msra.mxu0 %v5063
    %5775 = vmatpush.bf16.msra.mxu0 %v5056
    %5776 = vmatpush.bf16.msra.mxu0 %v5049
    %5777 = vmatpush.bf16.msra.mxu0 %v5042
    %5778 = vmatmul.bf16.gmra.mxu0 %v2874
    %v5779 = vpop.f32.mrf.mxu0
    %v5780 = vadd.f32 %v5766, %v5779
    %v5781 = vpop.f32.mrf.mxu0
    %v5782 = vadd.f32 %v5768, %v5781
    %5783 = vdwg.mxu0
    %5784 = vmatpush.bf16.msra.mxu0 %v5147
    %5785 = vmatpush.bf16.msra.mxu0 %v5140
    %5786 = vmatpush.bf16.msra.mxu0 %v5133
    %5787 = vmatpush.bf16.msra.mxu0 %v5126
    %5788 = vmatpush.bf16.msra.mxu0 %v5119
    %5789 = vmatpush.bf16.msra.mxu0 %v5112
    %5790 = vmatpush.bf16.msra.mxu0 %v5105
    %5791 = vmatpush.bf16.msra.mxu0 %v5098
    %5792 = vmatmul.bf16.gmra.mxu0 %v2875
    %v5793 = vpop.f32.mrf.mxu0
    %v5794 = vadd.f32 %v5780, %v5793
    %v5795 = vpop.f32.mrf.mxu0
    %v5796 = vadd.f32 %v5782, %v5795
    %5797 = vdwg.mxu0
    %5798 = vmatpush.bf16.msra.mxu0 %v5203
    %5799 = vmatpush.bf16.msra.mxu0 %v5196
    %5800 = vmatpush.bf16.msra.mxu0 %v5189
    %5801 = vmatpush.bf16.msra.mxu0 %v5182
    %5802 = vmatpush.bf16.msra.mxu0 %v5175
    %5803 = vmatpush.bf16.msra.mxu0 %v5168
    %5804 = vmatpush.bf16.msra.mxu0 %v5161
    %5805 = vmatpush.bf16.msra.mxu0 %v5154
    %5806 = vmatmul.bf16.gmra.mxu0 %v2876
    %v5807 = vpop.f32.mrf.mxu0
    %v5808 = vadd.f32 %v5794, %v5807
    %v5809 = vpop.f32.mrf.mxu0
    %v5810 = vadd.f32 %v5796, %v5809
    %5811 = vdwg.mxu0
    %5812 = vmatpush.bf16.msra.mxu0 %v5259
    %5813 = vmatpush.bf16.msra.mxu0 %v5252
    %5814 = vmatpush.bf16.msra.mxu0 %v5245
    %5815 = vmatpush.bf16.msra.mxu0 %v5238
    %5816 = vmatpush.bf16.msra.mxu0 %v5231
    %5817 = vmatpush.bf16.msra.mxu0 %v5224
    %5818 = vmatpush.bf16.msra.mxu0 %v5217
    %5819 = vmatpush.bf16.msra.mxu0 %v5210
    %5820 = vmatmul.bf16.gmra.mxu0 %v2877
    %v5821 = vpop.f32.mrf.mxu0
    %v5822 = vadd.f32 %v5808, %v5821
    %v5823 = vpop.f32.mrf.mxu0
    %v5824 = vadd.f32 %v5810, %v5823
    %5825 = vdwg.mxu0
    %5826 = vmatpush.bf16.msra.mxu0 %v4868
    %5827 = vmatpush.bf16.msra.mxu0 %v4861
    %5828 = vmatpush.bf16.msra.mxu0 %v4854
    %5829 = vmatpush.bf16.msra.mxu0 %v4847
    %5830 = vmatpush.bf16.msra.mxu0 %v4840
    %5831 = vmatpush.bf16.msra.mxu0 %v4833
    %5832 = vmatpush.bf16.msra.mxu0 %v4826
    %5833 = vmatpush.bf16.msra.mxu0 %v4819
    %5834 = vmatmul.bf16.gmra.mxu0 %v2870
    %v5835 = vpop.f32.mrf.mxu0
    %v5836 = vadd.f32 %v3397, %v5835
    %v5837 = vpop.f32.mrf.mxu0
    %v5838 = vadd.f32 %v3397, %v5837
    %5839 = vdwg.mxu0
    %5840 = vmatpush.bf16.msra.mxu0 %v4924
    %5841 = vmatpush.bf16.msra.mxu0 %v4917
    %5842 = vmatpush.bf16.msra.mxu0 %v4910
    %5843 = vmatpush.bf16.msra.mxu0 %v4903
    %5844 = vmatpush.bf16.msra.mxu0 %v4896
    %5845 = vmatpush.bf16.msra.mxu0 %v4889
    %5846 = vmatpush.bf16.msra.mxu0 %v4882
    %5847 = vmatpush.bf16.msra.mxu0 %v4875
    %5848 = vmatmul.bf16.gmra.mxu0 %v2871
    %v5849 = vpop.f32.mrf.mxu0
    %v5850 = vadd.f32 %v5836, %v5849
    %v5851 = vpop.f32.mrf.mxu0
    %v5852 = vadd.f32 %v5838, %v5851
    %5853 = vdwg.mxu0
    %5854 = vmatpush.bf16.msra.mxu0 %v4980
    %5855 = vmatpush.bf16.msra.mxu0 %v4973
    %5856 = vmatpush.bf16.msra.mxu0 %v4966
    %5857 = vmatpush.bf16.msra.mxu0 %v4959
    %5858 = vmatpush.bf16.msra.mxu0 %v4952
    %5859 = vmatpush.bf16.msra.mxu0 %v4945
    %5860 = vmatpush.bf16.msra.mxu0 %v4938
    %5861 = vmatpush.bf16.msra.mxu0 %v4931
    %5862 = vmatmul.bf16.gmra.mxu0 %v2872
    %v5863 = vpop.f32.mrf.mxu0
    %v5864 = vadd.f32 %v5850, %v5863
    %v5865 = vpop.f32.mrf.mxu0
    %v5866 = vadd.f32 %v5852, %v5865
    %5867 = vdwg.mxu0
    %5868 = vmatpush.bf16.msra.mxu0 %v5036
    %5869 = vmatpush.bf16.msra.mxu0 %v5029
    %5870 = vmatpush.bf16.msra.mxu0 %v5022
    %5871 = vmatpush.bf16.msra.mxu0 %v5015
    %5872 = vmatpush.bf16.msra.mxu0 %v5008
    %5873 = vmatpush.bf16.msra.mxu0 %v5001
    %5874 = vmatpush.bf16.msra.mxu0 %v4994
    %5875 = vmatpush.bf16.msra.mxu0 %v4987
    %5876 = vmatmul.bf16.gmra.mxu0 %v2873
    %v5877 = vpop.f32.mrf.mxu0
    %v5878 = vadd.f32 %v5864, %v5877
    %v5879 = vpop.f32.mrf.mxu0
    %v5880 = vadd.f32 %v5866, %v5879
    %5881 = vdwg.mxu0
    %5882 = vmatpush.bf16.msra.mxu0 %v5092
    %5883 = vmatpush.bf16.msra.mxu0 %v5085
    %5884 = vmatpush.bf16.msra.mxu0 %v5078
    %5885 = vmatpush.bf16.msra.mxu0 %v5071
    %5886 = vmatpush.bf16.msra.mxu0 %v5064
    %5887 = vmatpush.bf16.msra.mxu0 %v5057
    %5888 = vmatpush.bf16.msra.mxu0 %v5050
    %5889 = vmatpush.bf16.msra.mxu0 %v5043
    %5890 = vmatmul.bf16.gmra.mxu0 %v2874
    %v5891 = vpop.f32.mrf.mxu0
    %v5892 = vadd.f32 %v5878, %v5891
    %v5893 = vpop.f32.mrf.mxu0
    %v5894 = vadd.f32 %v5880, %v5893
    %5895 = vdwg.mxu0
    %5896 = vmatpush.bf16.msra.mxu0 %v5148
    %5897 = vmatpush.bf16.msra.mxu0 %v5141
    %5898 = vmatpush.bf16.msra.mxu0 %v5134
    %5899 = vmatpush.bf16.msra.mxu0 %v5127
    %5900 = vmatpush.bf16.msra.mxu0 %v5120
    %5901 = vmatpush.bf16.msra.mxu0 %v5113
    %5902 = vmatpush.bf16.msra.mxu0 %v5106
    %5903 = vmatpush.bf16.msra.mxu0 %v5099
    %5904 = vmatmul.bf16.gmra.mxu0 %v2875
    %v5905 = vpop.f32.mrf.mxu0
    %v5906 = vadd.f32 %v5892, %v5905
    %v5907 = vpop.f32.mrf.mxu0
    %v5908 = vadd.f32 %v5894, %v5907
    %5909 = vdwg.mxu0
    %5910 = vmatpush.bf16.msra.mxu0 %v5204
    %5911 = vmatpush.bf16.msra.mxu0 %v5197
    %5912 = vmatpush.bf16.msra.mxu0 %v5190
    %5913 = vmatpush.bf16.msra.mxu0 %v5183
    %5914 = vmatpush.bf16.msra.mxu0 %v5176
    %5915 = vmatpush.bf16.msra.mxu0 %v5169
    %5916 = vmatpush.bf16.msra.mxu0 %v5162
    %5917 = vmatpush.bf16.msra.mxu0 %v5155
    %5918 = vmatmul.bf16.gmra.mxu0 %v2876
    %v5919 = vpop.f32.mrf.mxu0
    %v5920 = vadd.f32 %v5906, %v5919
    %v5921 = vpop.f32.mrf.mxu0
    %v5922 = vadd.f32 %v5908, %v5921
    %5923 = vdwg.mxu0
    %5924 = vmatpush.bf16.msra.mxu0 %v5260
    %5925 = vmatpush.bf16.msra.mxu0 %v5253
    %5926 = vmatpush.bf16.msra.mxu0 %v5246
    %5927 = vmatpush.bf16.msra.mxu0 %v5239
    %5928 = vmatpush.bf16.msra.mxu0 %v5232
    %5929 = vmatpush.bf16.msra.mxu0 %v5225
    %5930 = vmatpush.bf16.msra.mxu0 %v5218
    %5931 = vmatpush.bf16.msra.mxu0 %v5211
    %5932 = vmatmul.bf16.gmra.mxu0 %v2877
    %v5933 = vpop.f32.mrf.mxu0
    %v5934 = vadd.f32 %v5920, %v5933
    %v5935 = vpop.f32.mrf.mxu0
    %v5936 = vadd.f32 %v5922, %v5935
    %5937 = vdwg.mxu0
    %5938 = vmatpush.bf16.msra.mxu0 %v4869
    %5939 = vmatpush.bf16.msra.mxu0 %v4862
    %5940 = vmatpush.bf16.msra.mxu0 %v4855
    %5941 = vmatpush.bf16.msra.mxu0 %v4848
    %5942 = vmatpush.bf16.msra.mxu0 %v4841
    %5943 = vmatpush.bf16.msra.mxu0 %v4834
    %5944 = vmatpush.bf16.msra.mxu0 %v4827
    %5945 = vmatpush.bf16.msra.mxu0 %v4820
    %5946 = vmatmul.bf16.gmra.mxu0 %v2870
    %v5947 = vpop.f32.mrf.mxu0
    %v5948 = vadd.f32 %v3398, %v5947
    %v5949 = vpop.f32.mrf.mxu0
    %v5950 = vadd.f32 %v3398, %v5949
    %5951 = vdwg.mxu0
    %5952 = vmatpush.bf16.msra.mxu0 %v4925
    %5953 = vmatpush.bf16.msra.mxu0 %v4918
    %5954 = vmatpush.bf16.msra.mxu0 %v4911
    %5955 = vmatpush.bf16.msra.mxu0 %v4904
    %5956 = vmatpush.bf16.msra.mxu0 %v4897
    %5957 = vmatpush.bf16.msra.mxu0 %v4890
    %5958 = vmatpush.bf16.msra.mxu0 %v4883
    %5959 = vmatpush.bf16.msra.mxu0 %v4876
    %5960 = vmatmul.bf16.gmra.mxu0 %v2871
    %v5961 = vpop.f32.mrf.mxu0
    %v5962 = vadd.f32 %v5948, %v5961
    %v5963 = vpop.f32.mrf.mxu0
    %v5964 = vadd.f32 %v5950, %v5963
    %5965 = vdwg.mxu0
    %5966 = vmatpush.bf16.msra.mxu0 %v4981
    %5967 = vmatpush.bf16.msra.mxu0 %v4974
    %5968 = vmatpush.bf16.msra.mxu0 %v4967
    %5969 = vmatpush.bf16.msra.mxu0 %v4960
    %5970 = vmatpush.bf16.msra.mxu0 %v4953
    %5971 = vmatpush.bf16.msra.mxu0 %v4946
    %5972 = vmatpush.bf16.msra.mxu0 %v4939
    %5973 = vmatpush.bf16.msra.mxu0 %v4932
    %5974 = vmatmul.bf16.gmra.mxu0 %v2872
    %v5975 = vpop.f32.mrf.mxu0
    %v5976 = vadd.f32 %v5962, %v5975
    %v5977 = vpop.f32.mrf.mxu0
    %v5978 = vadd.f32 %v5964, %v5977
    %5979 = vdwg.mxu0
    %5980 = vmatpush.bf16.msra.mxu0 %v5037
    %5981 = vmatpush.bf16.msra.mxu0 %v5030
    %5982 = vmatpush.bf16.msra.mxu0 %v5023
    %5983 = vmatpush.bf16.msra.mxu0 %v5016
    %5984 = vmatpush.bf16.msra.mxu0 %v5009
    %5985 = vmatpush.bf16.msra.mxu0 %v5002
    %5986 = vmatpush.bf16.msra.mxu0 %v4995
    %5987 = vmatpush.bf16.msra.mxu0 %v4988
    %5988 = vmatmul.bf16.gmra.mxu0 %v2873
    %v5989 = vpop.f32.mrf.mxu0
    %v5990 = vadd.f32 %v5976, %v5989
    %v5991 = vpop.f32.mrf.mxu0
    %v5992 = vadd.f32 %v5978, %v5991
    %5993 = vdwg.mxu0
    %5994 = vmatpush.bf16.msra.mxu0 %v5093
    %5995 = vmatpush.bf16.msra.mxu0 %v5086
    %5996 = vmatpush.bf16.msra.mxu0 %v5079
    %5997 = vmatpush.bf16.msra.mxu0 %v5072
    %5998 = vmatpush.bf16.msra.mxu0 %v5065
    %5999 = vmatpush.bf16.msra.mxu0 %v5058
    %6000 = vmatpush.bf16.msra.mxu0 %v5051
    %6001 = vmatpush.bf16.msra.mxu0 %v5044
    %6002 = vmatmul.bf16.gmra.mxu0 %v2874
    %v6003 = vpop.f32.mrf.mxu0
    %v6004 = vadd.f32 %v5990, %v6003
    %v6005 = vpop.f32.mrf.mxu0
    %v6006 = vadd.f32 %v5992, %v6005
    %6007 = vdwg.mxu0
    %6008 = vmatpush.bf16.msra.mxu0 %v5149
    %6009 = vmatpush.bf16.msra.mxu0 %v5142
    %6010 = vmatpush.bf16.msra.mxu0 %v5135
    %6011 = vmatpush.bf16.msra.mxu0 %v5128
    %6012 = vmatpush.bf16.msra.mxu0 %v5121
    %6013 = vmatpush.bf16.msra.mxu0 %v5114
    %6014 = vmatpush.bf16.msra.mxu0 %v5107
    %6015 = vmatpush.bf16.msra.mxu0 %v5100
    %6016 = vmatmul.bf16.gmra.mxu0 %v2875
    %v6017 = vpop.f32.mrf.mxu0
    %v6018 = vadd.f32 %v6004, %v6017
    %v6019 = vpop.f32.mrf.mxu0
    %v6020 = vadd.f32 %v6006, %v6019
    %6021 = vdwg.mxu0
    %6022 = vmatpush.bf16.msra.mxu0 %v5205
    %6023 = vmatpush.bf16.msra.mxu0 %v5198
    %6024 = vmatpush.bf16.msra.mxu0 %v5191
    %6025 = vmatpush.bf16.msra.mxu0 %v5184
    %6026 = vmatpush.bf16.msra.mxu0 %v5177
    %6027 = vmatpush.bf16.msra.mxu0 %v5170
    %6028 = vmatpush.bf16.msra.mxu0 %v5163
    %6029 = vmatpush.bf16.msra.mxu0 %v5156
    %6030 = vmatmul.bf16.gmra.mxu0 %v2876
    %v6031 = vpop.f32.mrf.mxu0
    %v6032 = vadd.f32 %v6018, %v6031
    %v6033 = vpop.f32.mrf.mxu0
    %v6034 = vadd.f32 %v6020, %v6033
    %6035 = vdwg.mxu0
    %6036 = vmatpush.bf16.msra.mxu0 %v5261
    %6037 = vmatpush.bf16.msra.mxu0 %v5254
    %6038 = vmatpush.bf16.msra.mxu0 %v5247
    %6039 = vmatpush.bf16.msra.mxu0 %v5240
    %6040 = vmatpush.bf16.msra.mxu0 %v5233
    %6041 = vmatpush.bf16.msra.mxu0 %v5226
    %6042 = vmatpush.bf16.msra.mxu0 %v5219
    %6043 = vmatpush.bf16.msra.mxu0 %v5212
    %6044 = vmatmul.bf16.gmra.mxu0 %v2877
    %v6045 = vpop.f32.mrf.mxu0
    %v6046 = vadd.f32 %v6032, %v6045
    %v6047 = vpop.f32.mrf.mxu0
    %v6048 = vadd.f32 %v6034, %v6047
    %6049 = vdwg.mxu0
    %6050 = vmatpush.bf16.msra.mxu0 %v4870
    %6051 = vmatpush.bf16.msra.mxu0 %v4863
    %6052 = vmatpush.bf16.msra.mxu0 %v4856
    %6053 = vmatpush.bf16.msra.mxu0 %v4849
    %6054 = vmatpush.bf16.msra.mxu0 %v4842
    %6055 = vmatpush.bf16.msra.mxu0 %v4835
    %6056 = vmatpush.bf16.msra.mxu0 %v4828
    %6057 = vmatpush.bf16.msra.mxu0 %v4821
    %6058 = vmatmul.bf16.gmra.mxu0 %v2870
    %v6059 = vpop.f32.mrf.mxu0
    %v6060 = vadd.f32 %v3399, %v6059
    %v6061 = vpop.f32.mrf.mxu0
    %v6062 = vadd.f32 %v3399, %v6061
    %6063 = vdwg.mxu0
    %6064 = vmatpush.bf16.msra.mxu0 %v4926
    %6065 = vmatpush.bf16.msra.mxu0 %v4919
    %6066 = vmatpush.bf16.msra.mxu0 %v4912
    %6067 = vmatpush.bf16.msra.mxu0 %v4905
    %6068 = vmatpush.bf16.msra.mxu0 %v4898
    %6069 = vmatpush.bf16.msra.mxu0 %v4891
    %6070 = vmatpush.bf16.msra.mxu0 %v4884
    %6071 = vmatpush.bf16.msra.mxu0 %v4877
    %6072 = vmatmul.bf16.gmra.mxu0 %v2871
    %v6073 = vpop.f32.mrf.mxu0
    %v6074 = vadd.f32 %v6060, %v6073
    %v6075 = vpop.f32.mrf.mxu0
    %v6076 = vadd.f32 %v6062, %v6075
    %6077 = vdwg.mxu0
    %6078 = vmatpush.bf16.msra.mxu0 %v4982
    %6079 = vmatpush.bf16.msra.mxu0 %v4975
    %6080 = vmatpush.bf16.msra.mxu0 %v4968
    %6081 = vmatpush.bf16.msra.mxu0 %v4961
    %6082 = vmatpush.bf16.msra.mxu0 %v4954
    %6083 = vmatpush.bf16.msra.mxu0 %v4947
    %6084 = vmatpush.bf16.msra.mxu0 %v4940
    %6085 = vmatpush.bf16.msra.mxu0 %v4933
    %6086 = vmatmul.bf16.gmra.mxu0 %v2872
    %v6087 = vpop.f32.mrf.mxu0
    %v6088 = vadd.f32 %v6074, %v6087
    %v6089 = vpop.f32.mrf.mxu0
    %v6090 = vadd.f32 %v6076, %v6089
    %6091 = vdwg.mxu0
    %6092 = vmatpush.bf16.msra.mxu0 %v5038
    %6093 = vmatpush.bf16.msra.mxu0 %v5031
    %6094 = vmatpush.bf16.msra.mxu0 %v5024
    %6095 = vmatpush.bf16.msra.mxu0 %v5017
    %6096 = vmatpush.bf16.msra.mxu0 %v5010
    %6097 = vmatpush.bf16.msra.mxu0 %v5003
    %6098 = vmatpush.bf16.msra.mxu0 %v4996
    %6099 = vmatpush.bf16.msra.mxu0 %v4989
    %6100 = vmatmul.bf16.gmra.mxu0 %v2873
    %v6101 = vpop.f32.mrf.mxu0
    %v6102 = vadd.f32 %v6088, %v6101
    %v6103 = vpop.f32.mrf.mxu0
    %v6104 = vadd.f32 %v6090, %v6103
    %6105 = vdwg.mxu0
    %6106 = vmatpush.bf16.msra.mxu0 %v5094
    %6107 = vmatpush.bf16.msra.mxu0 %v5087
    %6108 = vmatpush.bf16.msra.mxu0 %v5080
    %6109 = vmatpush.bf16.msra.mxu0 %v5073
    %6110 = vmatpush.bf16.msra.mxu0 %v5066
    %6111 = vmatpush.bf16.msra.mxu0 %v5059
    %6112 = vmatpush.bf16.msra.mxu0 %v5052
    %6113 = vmatpush.bf16.msra.mxu0 %v5045
    %6114 = vmatmul.bf16.gmra.mxu0 %v2874
    %v6115 = vpop.f32.mrf.mxu0
    %v6116 = vadd.f32 %v6102, %v6115
    %v6117 = vpop.f32.mrf.mxu0
    %v6118 = vadd.f32 %v6104, %v6117
    %6119 = vdwg.mxu0
    %6120 = vmatpush.bf16.msra.mxu0 %v5150
    %6121 = vmatpush.bf16.msra.mxu0 %v5143
    %6122 = vmatpush.bf16.msra.mxu0 %v5136
    %6123 = vmatpush.bf16.msra.mxu0 %v5129
    %6124 = vmatpush.bf16.msra.mxu0 %v5122
    %6125 = vmatpush.bf16.msra.mxu0 %v5115
    %6126 = vmatpush.bf16.msra.mxu0 %v5108
    %6127 = vmatpush.bf16.msra.mxu0 %v5101
    %6128 = vmatmul.bf16.gmra.mxu0 %v2875
    %v6129 = vpop.f32.mrf.mxu0
    %v6130 = vadd.f32 %v6116, %v6129
    %v6131 = vpop.f32.mrf.mxu0
    %v6132 = vadd.f32 %v6118, %v6131
    %6133 = vdwg.mxu0
    %6134 = vmatpush.bf16.msra.mxu0 %v5206
    %6135 = vmatpush.bf16.msra.mxu0 %v5199
    %6136 = vmatpush.bf16.msra.mxu0 %v5192
    %6137 = vmatpush.bf16.msra.mxu0 %v5185
    %6138 = vmatpush.bf16.msra.mxu0 %v5178
    %6139 = vmatpush.bf16.msra.mxu0 %v5171
    %6140 = vmatpush.bf16.msra.mxu0 %v5164
    %6141 = vmatpush.bf16.msra.mxu0 %v5157
    %6142 = vmatmul.bf16.gmra.mxu0 %v2876
    %v6143 = vpop.f32.mrf.mxu0
    %v6144 = vadd.f32 %v6130, %v6143
    %v6145 = vpop.f32.mrf.mxu0
    %v6146 = vadd.f32 %v6132, %v6145
    %6147 = vdwg.mxu0
    %6148 = vmatpush.bf16.msra.mxu0 %v5262
    %6149 = vmatpush.bf16.msra.mxu0 %v5255
    %6150 = vmatpush.bf16.msra.mxu0 %v5248
    %6151 = vmatpush.bf16.msra.mxu0 %v5241
    %6152 = vmatpush.bf16.msra.mxu0 %v5234
    %6153 = vmatpush.bf16.msra.mxu0 %v5227
    %6154 = vmatpush.bf16.msra.mxu0 %v5220
    %6155 = vmatpush.bf16.msra.mxu0 %v5213
    %6156 = vmatmul.bf16.gmra.mxu0 %v2877
    %v6157 = vpop.f32.mrf.mxu0
    %v6158 = vadd.f32 %v6144, %v6157
    %v6159 = vpop.f32.mrf.mxu0
    %v6160 = vadd.f32 %v6146, %v6159
    %6161 = vdwg.mxu0
    %6162 = vmatpush.bf16.msra.mxu0 %v4871
    %6163 = vmatpush.bf16.msra.mxu0 %v4864
    %6164 = vmatpush.bf16.msra.mxu0 %v4857
    %6165 = vmatpush.bf16.msra.mxu0 %v4850
    %6166 = vmatpush.bf16.msra.mxu0 %v4843
    %6167 = vmatpush.bf16.msra.mxu0 %v4836
    %6168 = vmatpush.bf16.msra.mxu0 %v4829
    %6169 = vmatpush.bf16.msra.mxu0 %v4822
    %6170 = vmatmul.bf16.gmra.mxu0 %v2870
    %v6171 = vpop.f32.mrf.mxu0
    %v6172 = vadd.f32 %v3400, %v6171
    %v6173 = vpop.f32.mrf.mxu0
    %v6174 = vadd.f32 %v3400, %v6173
    %6175 = vdwg.mxu0
    %6176 = vmatpush.bf16.msra.mxu0 %v4927
    %6177 = vmatpush.bf16.msra.mxu0 %v4920
    %6178 = vmatpush.bf16.msra.mxu0 %v4913
    %6179 = vmatpush.bf16.msra.mxu0 %v4906
    %6180 = vmatpush.bf16.msra.mxu0 %v4899
    %6181 = vmatpush.bf16.msra.mxu0 %v4892
    %6182 = vmatpush.bf16.msra.mxu0 %v4885
    %6183 = vmatpush.bf16.msra.mxu0 %v4878
    %6184 = vmatmul.bf16.gmra.mxu0 %v2871
    %v6185 = vpop.f32.mrf.mxu0
    %v6186 = vadd.f32 %v6172, %v6185
    %v6187 = vpop.f32.mrf.mxu0
    %v6188 = vadd.f32 %v6174, %v6187
    %6189 = vdwg.mxu0
    %6190 = vmatpush.bf16.msra.mxu0 %v4983
    %6191 = vmatpush.bf16.msra.mxu0 %v4976
    %6192 = vmatpush.bf16.msra.mxu0 %v4969
    %6193 = vmatpush.bf16.msra.mxu0 %v4962
    %6194 = vmatpush.bf16.msra.mxu0 %v4955
    %6195 = vmatpush.bf16.msra.mxu0 %v4948
    %6196 = vmatpush.bf16.msra.mxu0 %v4941
    %6197 = vmatpush.bf16.msra.mxu0 %v4934
    %6198 = vmatmul.bf16.gmra.mxu0 %v2872
    %v6199 = vpop.f32.mrf.mxu0
    %v6200 = vadd.f32 %v6186, %v6199
    %v6201 = vpop.f32.mrf.mxu0
    %v6202 = vadd.f32 %v6188, %v6201
    %6203 = vdwg.mxu0
    %6204 = vmatpush.bf16.msra.mxu0 %v5039
    %6205 = vmatpush.bf16.msra.mxu0 %v5032
    %6206 = vmatpush.bf16.msra.mxu0 %v5025
    %6207 = vmatpush.bf16.msra.mxu0 %v5018
    %6208 = vmatpush.bf16.msra.mxu0 %v5011
    %6209 = vmatpush.bf16.msra.mxu0 %v5004
    %6210 = vmatpush.bf16.msra.mxu0 %v4997
    %6211 = vmatpush.bf16.msra.mxu0 %v4990
    %6212 = vmatmul.bf16.gmra.mxu0 %v2873
    %v6213 = vpop.f32.mrf.mxu0
    %v6214 = vadd.f32 %v6200, %v6213
    %v6215 = vpop.f32.mrf.mxu0
    %v6216 = vadd.f32 %v6202, %v6215
    %6217 = vdwg.mxu0
    %6218 = vmatpush.bf16.msra.mxu0 %v5095
    %6219 = vmatpush.bf16.msra.mxu0 %v5088
    %6220 = vmatpush.bf16.msra.mxu0 %v5081
    %6221 = vmatpush.bf16.msra.mxu0 %v5074
    %6222 = vmatpush.bf16.msra.mxu0 %v5067
    %6223 = vmatpush.bf16.msra.mxu0 %v5060
    %6224 = vmatpush.bf16.msra.mxu0 %v5053
    %6225 = vmatpush.bf16.msra.mxu0 %v5046
    %6226 = vmatmul.bf16.gmra.mxu0 %v2874
    %v6227 = vpop.f32.mrf.mxu0
    %v6228 = vadd.f32 %v6214, %v6227
    %v6229 = vpop.f32.mrf.mxu0
    %v6230 = vadd.f32 %v6216, %v6229
    %6231 = vdwg.mxu0
    %6232 = vmatpush.bf16.msra.mxu0 %v5151
    %6233 = vmatpush.bf16.msra.mxu0 %v5144
    %6234 = vmatpush.bf16.msra.mxu0 %v5137
    %6235 = vmatpush.bf16.msra.mxu0 %v5130
    %6236 = vmatpush.bf16.msra.mxu0 %v5123
    %6237 = vmatpush.bf16.msra.mxu0 %v5116
    %6238 = vmatpush.bf16.msra.mxu0 %v5109
    %6239 = vmatpush.bf16.msra.mxu0 %v5102
    %6240 = vmatmul.bf16.gmra.mxu0 %v2875
    %v6241 = vpop.f32.mrf.mxu0
    %v6242 = vadd.f32 %v6228, %v6241
    %v6243 = vpop.f32.mrf.mxu0
    %v6244 = vadd.f32 %v6230, %v6243
    %6245 = vdwg.mxu0
    %6246 = vmatpush.bf16.msra.mxu0 %v5207
    %6247 = vmatpush.bf16.msra.mxu0 %v5200
    %6248 = vmatpush.bf16.msra.mxu0 %v5193
    %6249 = vmatpush.bf16.msra.mxu0 %v5186
    %6250 = vmatpush.bf16.msra.mxu0 %v5179
    %6251 = vmatpush.bf16.msra.mxu0 %v5172
    %6252 = vmatpush.bf16.msra.mxu0 %v5165
    %6253 = vmatpush.bf16.msra.mxu0 %v5158
    %6254 = vmatmul.bf16.gmra.mxu0 %v2876
    %v6255 = vpop.f32.mrf.mxu0
    %v6256 = vadd.f32 %v6242, %v6255
    %v6257 = vpop.f32.mrf.mxu0
    %v6258 = vadd.f32 %v6244, %v6257
    %6259 = vdwg.mxu0
    %6260 = vmatpush.bf16.msra.mxu0 %v5263
    %6261 = vmatpush.bf16.msra.mxu0 %v5256
    %6262 = vmatpush.bf16.msra.mxu0 %v5249
    %6263 = vmatpush.bf16.msra.mxu0 %v5242
    %6264 = vmatpush.bf16.msra.mxu0 %v5235
    %6265 = vmatpush.bf16.msra.mxu0 %v5228
    %6266 = vmatpush.bf16.msra.mxu0 %v5221
    %6267 = vmatpush.bf16.msra.mxu0 %v5214
    %6268 = vmatmul.bf16.gmra.mxu0 %v2877
    %v6269 = vpop.f32.mrf.mxu0
    %v6270 = vadd.f32 %v6256, %v6269
    %v6271 = vpop.f32.mrf.mxu0
    %v6272 = vadd.f32 %v6258, %v6271
    %6273 = vdwg.mxu0
    %6274 = vmatpush.bf16.msra.mxu0 %v4872
    %6275 = vmatpush.bf16.msra.mxu0 %v4865
    %6276 = vmatpush.bf16.msra.mxu0 %v4858
    %6277 = vmatpush.bf16.msra.mxu0 %v4851
    %6278 = vmatpush.bf16.msra.mxu0 %v4844
    %6279 = vmatpush.bf16.msra.mxu0 %v4837
    %6280 = vmatpush.bf16.msra.mxu0 %v4830
    %6281 = vmatpush.bf16.msra.mxu0 %v4823
    %6282 = vmatmul.bf16.gmra.mxu0 %v2870
    %v6283 = vpop.f32.mrf.mxu0
    %v6284 = vadd.f32 %v3401, %v6283
    %v6285 = vpop.f32.mrf.mxu0
    %v6286 = vadd.f32 %v3401, %v6285
    %6287 = vdwg.mxu0
    %6288 = vmatpush.bf16.msra.mxu0 %v4928
    %6289 = vmatpush.bf16.msra.mxu0 %v4921
    %6290 = vmatpush.bf16.msra.mxu0 %v4914
    %6291 = vmatpush.bf16.msra.mxu0 %v4907
    %6292 = vmatpush.bf16.msra.mxu0 %v4900
    %6293 = vmatpush.bf16.msra.mxu0 %v4893
    %6294 = vmatpush.bf16.msra.mxu0 %v4886
    %6295 = vmatpush.bf16.msra.mxu0 %v4879
    %6296 = vmatmul.bf16.gmra.mxu0 %v2871
    %v6297 = vpop.f32.mrf.mxu0
    %v6298 = vadd.f32 %v6284, %v6297
    %v6299 = vpop.f32.mrf.mxu0
    %v6300 = vadd.f32 %v6286, %v6299
    %6301 = vdwg.mxu0
    %6302 = vmatpush.bf16.msra.mxu0 %v4984
    %6303 = vmatpush.bf16.msra.mxu0 %v4977
    %6304 = vmatpush.bf16.msra.mxu0 %v4970
    %6305 = vmatpush.bf16.msra.mxu0 %v4963
    %6306 = vmatpush.bf16.msra.mxu0 %v4956
    %6307 = vmatpush.bf16.msra.mxu0 %v4949
    %6308 = vmatpush.bf16.msra.mxu0 %v4942
    %6309 = vmatpush.bf16.msra.mxu0 %v4935
    %6310 = vmatmul.bf16.gmra.mxu0 %v2872
    %v6311 = vpop.f32.mrf.mxu0
    %v6312 = vadd.f32 %v6298, %v6311
    %v6313 = vpop.f32.mrf.mxu0
    %v6314 = vadd.f32 %v6300, %v6313
    %6315 = vdwg.mxu0
    %6316 = vmatpush.bf16.msra.mxu0 %v5040
    %6317 = vmatpush.bf16.msra.mxu0 %v5033
    %6318 = vmatpush.bf16.msra.mxu0 %v5026
    %6319 = vmatpush.bf16.msra.mxu0 %v5019
    %6320 = vmatpush.bf16.msra.mxu0 %v5012
    %6321 = vmatpush.bf16.msra.mxu0 %v5005
    %6322 = vmatpush.bf16.msra.mxu0 %v4998
    %6323 = vmatpush.bf16.msra.mxu0 %v4991
    %6324 = vmatmul.bf16.gmra.mxu0 %v2873
    %v6325 = vpop.f32.mrf.mxu0
    %v6326 = vadd.f32 %v6312, %v6325
    %v6327 = vpop.f32.mrf.mxu0
    %v6328 = vadd.f32 %v6314, %v6327
    %6329 = vdwg.mxu0
    %6330 = vmatpush.bf16.msra.mxu0 %v5096
    %6331 = vmatpush.bf16.msra.mxu0 %v5089
    %6332 = vmatpush.bf16.msra.mxu0 %v5082
    %6333 = vmatpush.bf16.msra.mxu0 %v5075
    %6334 = vmatpush.bf16.msra.mxu0 %v5068
    %6335 = vmatpush.bf16.msra.mxu0 %v5061
    %6336 = vmatpush.bf16.msra.mxu0 %v5054
    %6337 = vmatpush.bf16.msra.mxu0 %v5047
    %6338 = vmatmul.bf16.gmra.mxu0 %v2874
    %v6339 = vpop.f32.mrf.mxu0
    %v6340 = vadd.f32 %v6326, %v6339
    %v6341 = vpop.f32.mrf.mxu0
    %v6342 = vadd.f32 %v6328, %v6341
    %6343 = vdwg.mxu0
    %6344 = vmatpush.bf16.msra.mxu0 %v5152
    %6345 = vmatpush.bf16.msra.mxu0 %v5145
    %6346 = vmatpush.bf16.msra.mxu0 %v5138
    %6347 = vmatpush.bf16.msra.mxu0 %v5131
    %6348 = vmatpush.bf16.msra.mxu0 %v5124
    %6349 = vmatpush.bf16.msra.mxu0 %v5117
    %6350 = vmatpush.bf16.msra.mxu0 %v5110
    %6351 = vmatpush.bf16.msra.mxu0 %v5103
    %6352 = vmatmul.bf16.gmra.mxu0 %v2875
    %v6353 = vpop.f32.mrf.mxu0
    %v6354 = vadd.f32 %v6340, %v6353
    %v6355 = vpop.f32.mrf.mxu0
    %v6356 = vadd.f32 %v6342, %v6355
    %6357 = vdwg.mxu0
    %6358 = vmatpush.bf16.msra.mxu0 %v5208
    %6359 = vmatpush.bf16.msra.mxu0 %v5201
    %6360 = vmatpush.bf16.msra.mxu0 %v5194
    %6361 = vmatpush.bf16.msra.mxu0 %v5187
    %6362 = vmatpush.bf16.msra.mxu0 %v5180
    %6363 = vmatpush.bf16.msra.mxu0 %v5173
    %6364 = vmatpush.bf16.msra.mxu0 %v5166
    %6365 = vmatpush.bf16.msra.mxu0 %v5159
    %6366 = vmatmul.bf16.gmra.mxu0 %v2876
    %v6367 = vpop.f32.mrf.mxu0
    %v6368 = vadd.f32 %v6354, %v6367
    %v6369 = vpop.f32.mrf.mxu0
    %v6370 = vadd.f32 %v6356, %v6369
    %6371 = vdwg.mxu0
    %6372 = vmatpush.bf16.msra.mxu0 %v5264
    %6373 = vmatpush.bf16.msra.mxu0 %v5257
    %6374 = vmatpush.bf16.msra.mxu0 %v5250
    %6375 = vmatpush.bf16.msra.mxu0 %v5243
    %6376 = vmatpush.bf16.msra.mxu0 %v5236
    %6377 = vmatpush.bf16.msra.mxu0 %v5229
    %6378 = vmatpush.bf16.msra.mxu0 %v5222
    %6379 = vmatpush.bf16.msra.mxu0 %v5215
    %6380 = vmatmul.bf16.gmra.mxu0 %v2877
    %v6381 = vpop.f32.mrf.mxu0
    %v6382 = vadd.f32 %v6368, %v6381
    %v6383 = vpop.f32.mrf.mxu0
    %v6384 = vadd.f32 %v6370, %v6383
    %6385 = vdwg.mxu0
    %6386 = vmatpush.bf16.msra.mxu0 %v4873
    %6387 = vmatpush.bf16.msra.mxu0 %v4866
    %6388 = vmatpush.bf16.msra.mxu0 %v4859
    %6389 = vmatpush.bf16.msra.mxu0 %v4852
    %6390 = vmatpush.bf16.msra.mxu0 %v4845
    %6391 = vmatpush.bf16.msra.mxu0 %v4838
    %6392 = vmatpush.bf16.msra.mxu0 %v4831
    %6393 = vmatpush.bf16.msra.mxu0 %v4824
    %6394 = vmatmul.bf16.gmra.mxu0 %v2870
    %v6395 = vpop.f32.mrf.mxu0
    %v6396 = vadd.f32 %v3402, %v6395
    %v6397 = vpop.f32.mrf.mxu0
    %v6398 = vadd.f32 %v3402, %v6397
    %6399 = vdwg.mxu0
    %6400 = vmatpush.bf16.msra.mxu0 %v4929
    %6401 = vmatpush.bf16.msra.mxu0 %v4922
    %6402 = vmatpush.bf16.msra.mxu0 %v4915
    %6403 = vmatpush.bf16.msra.mxu0 %v4908
    %6404 = vmatpush.bf16.msra.mxu0 %v4901
    %6405 = vmatpush.bf16.msra.mxu0 %v4894
    %6406 = vmatpush.bf16.msra.mxu0 %v4887
    %6407 = vmatpush.bf16.msra.mxu0 %v4880
    %6408 = vmatmul.bf16.gmra.mxu0 %v2871
    %v6409 = vpop.f32.mrf.mxu0
    %v6410 = vadd.f32 %v6396, %v6409
    %v6411 = vpop.f32.mrf.mxu0
    %v6412 = vadd.f32 %v6398, %v6411
    %6413 = vdwg.mxu0
    %6414 = vmatpush.bf16.msra.mxu0 %v4985
    %6415 = vmatpush.bf16.msra.mxu0 %v4978
    %6416 = vmatpush.bf16.msra.mxu0 %v4971
    %6417 = vmatpush.bf16.msra.mxu0 %v4964
    %6418 = vmatpush.bf16.msra.mxu0 %v4957
    %6419 = vmatpush.bf16.msra.mxu0 %v4950
    %6420 = vmatpush.bf16.msra.mxu0 %v4943
    %6421 = vmatpush.bf16.msra.mxu0 %v4936
    %6422 = vmatmul.bf16.gmra.mxu0 %v2872
    %v6423 = vpop.f32.mrf.mxu0
    %v6424 = vadd.f32 %v6410, %v6423
    %v6425 = vpop.f32.mrf.mxu0
    %v6426 = vadd.f32 %v6412, %v6425
    %6427 = vdwg.mxu0
    %6428 = vmatpush.bf16.msra.mxu0 %v5041
    %6429 = vmatpush.bf16.msra.mxu0 %v5034
    %6430 = vmatpush.bf16.msra.mxu0 %v5027
    %6431 = vmatpush.bf16.msra.mxu0 %v5020
    %6432 = vmatpush.bf16.msra.mxu0 %v5013
    %6433 = vmatpush.bf16.msra.mxu0 %v5006
    %6434 = vmatpush.bf16.msra.mxu0 %v4999
    %6435 = vmatpush.bf16.msra.mxu0 %v4992
    %6436 = vmatmul.bf16.gmra.mxu0 %v2873
    %v6437 = vpop.f32.mrf.mxu0
    %v6438 = vadd.f32 %v6424, %v6437
    %v6439 = vpop.f32.mrf.mxu0
    %v6440 = vadd.f32 %v6426, %v6439
    %6441 = vdwg.mxu0
    %6442 = vmatpush.bf16.msra.mxu0 %v5097
    %6443 = vmatpush.bf16.msra.mxu0 %v5090
    %6444 = vmatpush.bf16.msra.mxu0 %v5083
    %6445 = vmatpush.bf16.msra.mxu0 %v5076
    %6446 = vmatpush.bf16.msra.mxu0 %v5069
    %6447 = vmatpush.bf16.msra.mxu0 %v5062
    %6448 = vmatpush.bf16.msra.mxu0 %v5055
    %6449 = vmatpush.bf16.msra.mxu0 %v5048
    %6450 = vmatmul.bf16.gmra.mxu0 %v2874
    %v6451 = vpop.f32.mrf.mxu0
    %v6452 = vadd.f32 %v6438, %v6451
    %v6453 = vpop.f32.mrf.mxu0
    %v6454 = vadd.f32 %v6440, %v6453
    %6455 = vdwg.mxu0
    %6456 = vmatpush.bf16.msra.mxu0 %v5153
    %6457 = vmatpush.bf16.msra.mxu0 %v5146
    %6458 = vmatpush.bf16.msra.mxu0 %v5139
    %6459 = vmatpush.bf16.msra.mxu0 %v5132
    %6460 = vmatpush.bf16.msra.mxu0 %v5125
    %6461 = vmatpush.bf16.msra.mxu0 %v5118
    %6462 = vmatpush.bf16.msra.mxu0 %v5111
    %6463 = vmatpush.bf16.msra.mxu0 %v5104
    %6464 = vmatmul.bf16.gmra.mxu0 %v2875
    %v6465 = vpop.f32.mrf.mxu0
    %v6466 = vadd.f32 %v6452, %v6465
    %v6467 = vpop.f32.mrf.mxu0
    %v6468 = vadd.f32 %v6454, %v6467
    %6469 = vdwg.mxu0
    %6470 = vmatpush.bf16.msra.mxu0 %v5209
    %6471 = vmatpush.bf16.msra.mxu0 %v5202
    %6472 = vmatpush.bf16.msra.mxu0 %v5195
    %6473 = vmatpush.bf16.msra.mxu0 %v5188
    %6474 = vmatpush.bf16.msra.mxu0 %v5181
    %6475 = vmatpush.bf16.msra.mxu0 %v5174
    %6476 = vmatpush.bf16.msra.mxu0 %v5167
    %6477 = vmatpush.bf16.msra.mxu0 %v5160
    %6478 = vmatmul.bf16.gmra.mxu0 %v2876
    %v6479 = vpop.f32.mrf.mxu0
    %v6480 = vadd.f32 %v6466, %v6479
    %v6481 = vpop.f32.mrf.mxu0
    %v6482 = vadd.f32 %v6468, %v6481
    %6483 = vdwg.mxu0
    %6484 = vmatpush.bf16.msra.mxu0 %v5265
    %6485 = vmatpush.bf16.msra.mxu0 %v5258
    %6486 = vmatpush.bf16.msra.mxu0 %v5251
    %6487 = vmatpush.bf16.msra.mxu0 %v5244
    %6488 = vmatpush.bf16.msra.mxu0 %v5237
    %6489 = vmatpush.bf16.msra.mxu0 %v5230
    %6490 = vmatpush.bf16.msra.mxu0 %v5223
    %6491 = vmatpush.bf16.msra.mxu0 %v5216
    %6492 = vmatmul.bf16.gmra.mxu0 %v2877
    %v6493 = vpop.f32.mrf.mxu0
    %v6494 = vadd.f32 %v6480, %v6493
    %v6495 = vpop.f32.mrf.mxu0
    %v6496 = vadd.f32 %v6482, %v6495
    %6497 = vdwg.mxu0
    %v6498 = vtanh.pop %v5822
    %v6499 = vtanh.pop %v5934
    %v6500 = vtanh.pop %v6046
    %v6501 = vtanh.pop %v6158
    %v6502 = vtanh.pop %v6270
    %v6503 = vtanh.pop %v6382
    %v6504 = vtanh.pop %v6494
    %v6505 = vtanh.pop %v5824
    %v6506 = vtanh.pop %v5936
    %v6507 = vtanh.pop %v6048
    %v6508 = vtanh.pop %v6160
    %v6509 = vtanh.pop %v6272
    %v6510 = vtanh.pop %v6384
    %v6511 = vtanh.pop %v6496
    %6512 = vst [vmem:[#allocation17] sm:$0xff] %v6498
    %6513 = vst [vmem:[#allocation17 + $0x8] sm:$0xff] %v6499
    %6514 = vst [vmem:[#allocation17 + $0x10] sm:$0xff] %v6500
    %6515 = vst [vmem:[#allocation17 + $0x18] sm:$0xff] %v6501
    %6516 = vst [vmem:[#allocation17 + $0x20] sm:$0xff] %v6502
    %6517 = vst [vmem:[#allocation17 + $0x28] sm:$0xff] %v6503
    %6518 = vst [vmem:[#allocation17 + $0x30] sm:$0xff] %v6504
    %6519 = vst [vmem:[#allocation17 + $0x38] sm:$0xff] %v6505
    %6520 = vst [vmem:[#allocation17 + $0x40] sm:$0xff] %v6506
    %6521 = vst [vmem:[#allocation17 + $0x48] sm:$0xff] %v6507
    %6522 = vst [vmem:[#allocation17 + $0x50] sm:$0xff] %v6508
    %6523 = vst [vmem:[#allocation17 + $0x58] sm:$0xff] %v6509
    %6524 = vst [vmem:[#allocation17 + $0x60] sm:$0xff] %v6510
    %6525 = vst [vmem:[#allocation17 + $0x68] sm:$0xff] %v6511
    // Predicated region
    $region62: #{tpu_custom_call.1} parent=1 // pred_check
      _
    $region63: #{tpu_custom_call.1} parent=1 // pred_check_branch
      %6527 = sbr.rel (0) target = $region65
    $region64: #{tpu_custom_call.1} parent=1 // pred_region
      %6529 = vsyncadd [#allocation8], 0
      %s6530 = sshll.u32 [#allocation17], 4
      %s6531 = int_to_ptr.vmem [resolvable:$true] %s6530
      %s6532 = sshll.u32 %s9, 4
      %s6533 = int_to_ptr.hbm [resolvable:$true] %s6532
      %6538 = dma.vmem_to_hbm [thread:$0]  %s6531, 1792, %s6533, [#allocation8], 896, 896, 56
    $region65: #{tpu_custom_call.1} parent=1 // pred_fallthru
      _
    // Predicated region
    $region66: #{tpu_custom_call.1} parent=1 // pred_check
      _
    $region67: #{tpu_custom_call.1} parent=1 // pred_check_branch
      %6540 = sbr.rel (0) target = $region69
    $region68: #{tpu_custom_call.1} parent=1 // pred_region
      %6542 = dma.done [#allocation8], 1792
    $region69: #{tpu_custom_call.1} parent=1 // pred_fallthru
      _
    %6543 = vsyncpa [#allocation7], 1
    %6544 = vsyncpa [#allocation10], 1
    %6545 = vsyncpa [#allocation13], 1
    %6546 = vsyncpa [#allocation16], 1
    %6547 = vsyncpa [#allocation8], 1
  %6548 = vsyncmov [#allocation5]
  %s6549 = vpop.sfrf %6548
  %p6550 = scmp.eq.s32.totalorder %s6549, 0
  %p6551 = pneg %p6550
  %6553 = shalt.err (%p6551)
  %s6554 = scalar_lea.sflag [#allocation5], 1
  %6555 = vsyncmov %s6554
  %s6556 = vpop.sfrf %6555
  %p6557 = scmp.eq.s32.totalorder %s6556, 0
  %p6558 = pneg %p6557
  %6560 = shalt.err (%p6558)
  %s6561 = scalar_lea.sflag [#allocation5], 2
  %6562 = vsyncmov %s6561
  %s6563 = vpop.sfrf %6562
  %p6564 = scmp.eq.s32.totalorder %s6563, 0
  %p6565 = pneg %p6564
  %6567 = shalt.err (%p6565)

</llo_original>
